<compile_context>
chip_gen: v7x
topology: tpu7x:2x2x1
jax: 0.10.0
libtpu: 0.0.40
codegen_flags: <defaults>
</compile_context>

<pallas_src>
import functools

import jax
import jax.numpy as jnp
from jax import lax
from jax.experimental import pallas as pl
from jax.experimental.pallas import tpu as pltpu

_INV_SQRT2 = 0.7071067811865476


def _layer_norm(x, g, b, eps=1e-5):
    mu = jnp.mean(x, axis=-1, keepdims=True)
    var = jnp.mean(jnp.square(x - mu), axis=-1, keepdims=True)
    return (x - mu) * lax.rsqrt(var + eps) * g + b


def _gelu(x):
    # exact (erf-based) GELU — torch.nn.functional.gelu default.
    return 0.5 * x * (1.0 + lax.erf(x * _INV_SQRT2))


# -----------------------------------------------------------------------------
# Fused Pallas kernel: all transformer layers + output head
# -----------------------------------------------------------------------------
def fused_chessformer_kernel(
        x_ref, bias_ref,
        ln1g_ref, ln1b_ref,
        wq_ref, bq_ref, wk_ref, bk_ref, wv_ref, bv_ref, wo_ref, bo_ref,
        ln2g_ref, ln2b_ref, w1_ref, b1_ref, w2_ref, b2_ref,
        ng_ref, nb_ref, ow1_ref, ob1_ref, ow2_ref, ob2_ref,
        o_ref, *, num_heads, num_layers):
    B, S, D = x_ref.shape
    dk = D // num_heads
    scale = dk ** -0.5

    # Activation stays resident for the whole network; flatten batch for matmuls.
    x = x_ref[...].reshape(B * S, D)
    bias = bias_ref[...]                       # (B, 1, S) additive key-padding bias

    for l in range(num_layers):                # static unroll over layers
        # ---- pre-LN multi-head self-attention ----
        xn = _layer_norm(x, ln1g_ref[l], ln1b_ref[l])
        q = jnp.dot(xn, wq_ref[l], preferred_element_type=jnp.float32) + bq_ref[l]
        k = jnp.dot(xn, wk_ref[l], preferred_element_type=jnp.float32) + bk_ref[l]
        v = jnp.dot(xn, wv_ref[l], preferred_element_type=jnp.float32) + bv_ref[l]
        q3 = q.reshape(B, S, D)
        k3 = k.reshape(B, S, D)
        v3 = v.reshape(B, S, D)

        wo_l = wo_ref[l]
        attn = jnp.zeros((B * S, D), jnp.float32)
        for h in range(num_heads):             # small static head loop, no concat
            sl = slice(h * dk, (h + 1) * dk)
            s = jnp.einsum('bqd,bkd->bqk', q3[:, :, sl], k3[:, :, sl],
                           preferred_element_type=jnp.float32) * scale + bias
            m = jnp.max(s, axis=-1, keepdims=True)
            e = jnp.exp(s - m)
            # exact reciprocal keeps us within 1e-4 of the f32 reference;
            # approx=True (EUP) is the production lever at larger sizes.
            p = e * pl.reciprocal(jnp.sum(e, axis=-1, keepdims=True), approx=False)
            oh = jnp.einsum('bqk,bkd->bqd', p, v3[:, :, sl],
                            preferred_element_type=jnp.float32)
            # concat_h(oh) @ Wo  ==  sum_h  oh @ Wo[h*dk:(h+1)*dk, :]
            attn = attn + jnp.dot(oh.reshape(B * S, dk), wo_l[sl, :],
                                  preferred_element_type=jnp.float32)
        x = x + attn + bo_ref[l]

        # ---- pre-LN feed-forward ----
        xn2 = _layer_norm(x, ln2g_ref[l], ln2b_ref[l])
        h1 = _gelu(jnp.dot(xn2, w1_ref[l], preferred_element_type=jnp.float32)
                   + b1_ref[l])
        x = x + jnp.dot(h1, w2_ref[l], preferred_element_type=jnp.float32) + b2_ref[l]

    # ---- final LN + output head on the first token of each batch element ----
    xf = x.reshape(B, S, D)[:, 0, :]                              # (B, D)
    xf = _layer_norm(xf, ng_ref[...], nb_ref[...])
    hh = _gelu(jnp.dot(xf, ow1_ref[...], preferred_element_type=jnp.float32)
               + ob1_ref[...])
    o_ref[...] = jnp.dot(hh, ow2_ref[...], preferred_element_type=jnp.float32) \
        + ob2_ref[...]


# -----------------------------------------------------------------------------
# Wrapper
# -----------------------------------------------------------------------------
def chess_model_forward(params, sequence_tokens, squares_tokens, num_heads):
    emb = params["embedding"]                   # (num_tokens + 1, D); last row == 0
    V = emb.shape[0]
    # TODO(synk): embedding gather is data-dependent; kept in JAX glue rather than Pallas.
    seq_idx = jnp.where(sequence_tokens < 0, V - 1, sequence_tokens)
    sq_idx = jnp.where(squares_tokens < 0, V - 1, squares_tokens)
    seq_emb = emb[seq_idx]
    square_mask = (squares_tokens != -1)[..., None]
    sq_emb = jnp.where(square_mask, emb[sq_idx], 0.0)
    meta_mask = (squares_tokens == -1)[..., None]
    tt = jnp.where(meta_mask, params["meta_embedding"], params["token_embedding"])
    x = (seq_emb + sq_emb + tt).astype(jnp.float32)

    # Additive key-padding bias (numerically identical to masked_fill(-1e9)).
    bias = jnp.where(sequence_tokens == -1, jnp.float32(-1e9),
                     jnp.float32(0.0))[:, None, :]                # (B, 1, S)

    L = params["layers"]                       # stacked per-layer weights (leading L axis)
    B, S, D = x.shape
    num_layers = L["wq"].shape[0]
    C = params["op_w2"].shape[1]

    def full(shape):
        return pl.BlockSpec(shape, lambda i, _n=len(shape): (0,) * _n)

    args = (x, bias,
            L["ln1_g"], L["ln1_b"],
            L["wq"], L["bq"], L["wk"], L["bk"], L["wv"], L["bv"],
            L["wo"], L["bo"],
            L["ln2_g"], L["ln2_b"], L["w1"], L["b1"], L["w2"], L["b2"],
            params["norm_g"], params["norm_b"],
            params["op_w1"], params["op_b1"], params["op_w2"], params["op_b2"])
    in_specs = [full(a.shape) for a in args]

    return pl.pallas_call(
        functools.partial(fused_chessformer_kernel,
                          num_heads=num_heads, num_layers=num_layers),
        out_shape=jax.ShapeDtypeStruct((B, C), jnp.float32),
        grid=(1,),
        in_specs=in_specs,
        out_specs=full((B, C)),
        compiler_params=pltpu.CompilerParams(
            dimension_semantics=("arbitrary",)),
        # At production sizes set vmem_limit_bytes explicitly (64 MiB physical on v7x)
        # and/or keep stacked weights in HBM with manual per-layer prefetch.
    )(*args)


# -----------------------------------------------------------------------------
# Pure-JAX reference (for correctness check)
# -----------------------------------------------------------------------------
def reference_forward(params, sequence_tokens, squares_tokens, num_heads):
    emb = params["embedding"]
    V = emb.shape[0]
    seq_idx = jnp.where(sequence_tokens < 0, V - 1, sequence_tokens)
    sq_idx = jnp.where(squares_tokens < 0, V - 1, squares_tokens)
    seq_emb = emb[seq_idx]
    square_mask = (squares_tokens != -1)[..., None]
    sq_emb = jnp.where(square_mask, emb[sq_idx], 0.0)
    meta_mask = (squares_tokens == -1)[..., None]
    tt = jnp.where(meta_mask, params["meta_embedding"], params["token_embedding"])
    x = seq_emb + sq_emb + tt
    pad = sequence_tokens == -1
    B, S, D = x.shape
    dk = D // num_heads
    L = params["layers"]
    for l in range(L["wq"].shape[0]):
        lw = jax.tree_util.tree_map(lambda a: a[l], L)
        xn = _layer_norm(x, lw["ln1_g"], lw["ln1_b"])
        q = (xn @ lw["wq"] + lw["bq"]).reshape(B, S, num_heads, dk).transpose(0, 2, 1, 3)
        k = (xn @ lw["wk"] + lw["bk"]).reshape(B, S, num_heads, dk).transpose(0, 2, 1, 3)
        v = (xn @ lw["wv"] + lw["bv"]).reshape(B, S, num_heads, dk).transpose(0, 2, 1, 3)
        s = jnp.einsum("bhqd,bhkd->bhqk", q, k) * dk ** -0.5
        s = jnp.where(pad[:, None, None, :], -1e9, s)
        p = jax.nn.softmax(s, axis=-1)
        o = jnp.einsum("bhqk,bhkd->bhqd", p, v).transpose(0, 2, 1, 3).reshape(B, S, D)
        x = x + o @ lw["wo"] + lw["bo"]
        xn2 = _layer_norm(x, lw["ln2_g"], lw["ln2_b"])
        x = x + _gelu(xn2 @ lw["w1"] + lw["b1"]) @ lw["w2"] + lw["b2"]
    xf = _layer_norm(x[:, 0], params["norm_g"], params["norm_b"])
    return _gelu(xf @ params["op_w1"] + params["op_b1"]) @ params["op_w2"] + params["op_b2"]


# -----------------------------------------------------------------------------
# Deterministic parameter init (synthetic; shapes follow ChessModel.__init__,
# per-layer weights stacked along a leading num_layers axis)
# -----------------------------------------------------------------------------
def init_params(key, num_tokens, num_classes, d_model, num_layers):
    d_ff = 4 * d_model
    keys = jax.random.split(key, 5)

    def dense(k, fan_in, fan_out):
        k1, k2 = jax.random.split(k)
        w = jax.random.normal(k1, (fan_in, fan_out), jnp.float32) / jnp.sqrt(float(fan_in))
        b = jax.random.normal(k2, (1, fan_out), jnp.float32) * 0.01
        return w, b

    def stacked_dense(k, fan_in, fan_out, n):
        k1, k2 = jax.random.split(k)
        w = jax.random.normal(k1, (n, fan_in, fan_out), jnp.float32) / jnp.sqrt(float(fan_in))
        b = jax.random.normal(k2, (n, 1, fan_out), jnp.float32) * 0.01
        return w, b

    emb = jax.random.normal(keys[0], (num_tokens + 1, d_model), jnp.float32) * 0.02
    emb = emb.at[-1].set(0.0)          # padding_idx=-1 row is zero
    params = {
        "embedding": emb,
        "meta_embedding": jax.random.normal(keys[1], (1, 1, d_model), jnp.float32),
        "token_embedding": jax.random.normal(keys[2], (1, 1, d_model), jnp.float32),
        "norm_g": jnp.ones((1, d_model), jnp.float32),
        "norm_b": jnp.zeros((1, d_model), jnp.float32),
    }
    kh = jax.random.split(keys[3], 2)
    params["op_w1"], params["op_b1"] = dense(kh[0], d_model, 2 * d_model)
    params["op_w2"], params["op_b2"] = dense(kh[1], 2 * d_model, num_classes)

    ks = jax.random.split(keys[4], 6)
    layers = {
        "ln1_g": jnp.ones((num_layers, 1, d_model), jnp.float32),
        "ln1_b": jnp.zeros((num_layers, 1, d_model), jnp.float32),
        "ln2_g": jnp.ones((num_layers, 1, d_model), jnp.float32),
        "ln2_b": jnp.zeros((num_layers, 1, d_model), jnp.float32),
    }
    layers["wq"], layers["bq"] = stacked_dense(ks[0], d_model, d_model, num_layers)
    layers["wk"], layers["bk"] = stacked_dense(ks[1], d_model, d_model, num_layers)
    layers["wv"], layers["bv"] = stacked_dense(ks[2], d_model, d_model, num_layers)
    layers["wo"], layers["bo"] = stacked_dense(ks[3], d_model, d_model, num_layers)
    layers["w1"], layers["b1"] = stacked_dense(ks[4], d_model, d_ff, num_layers)
    layers["w2"], layers["b2"] = stacked_dense(ks[5], d_ff, d_model, num_layers)
    params["layers"] = layers
    return params


if __name__ == "__main__":
    # Small config consistent with the module (scaled-down ChessModel defaults).
    B, S = 2, 8
    num_tokens, num_classes, d_model, nhead, num_layers = 33, 12, 32, 4, 2

    key = jax.random.PRNGKey(0)
    kp, k1, k2 = jax.random.split(key, 3)
    params = init_params(kp, num_tokens, num_classes, d_model, num_layers)

    sequence_tokens = jax.random.randint(k1, (B, S), 0, num_tokens)
    sequence_tokens = sequence_tokens.at[1, -2:].set(-1)          # padding tail
    squares_tokens = jax.random.randint(k2, (B, S), 0, num_tokens)
    squares_tokens = squares_tokens.at[:, 0].set(-1)              # meta token position
    squares_tokens = squares_tokens.at[1, -2:].set(-1)

    logits = chess_model_forward(params, sequence_tokens, squares_tokens, nhead)
    logits = jax.block_until_ready(logits)

    ref = reference_forward(params, sequence_tokens, squares_tokens, nhead)
    assert logits.shape == (B, num_classes)
    err = float(jnp.max(jnp.abs(logits - ref)))
    assert jnp.allclose(logits, ref, atol=1e-4, rtol=1e-4), f"max abs err {err}"
    print("KERNEL_OK")
</pallas_src>

<mosaic_0001>
module attributes {stable_mosaic.version = 11 : i64} {
  func.func @fused_chessformer_kernel(%arg0: i32, %arg1: memref<2x8x32xf32, #tpu.memory_space<vmem>>, %arg2: memref<2x1x8xf32, #tpu.memory_space<vmem>>, %arg3: memref<2x1x32xf32, #tpu.memory_space<vmem>>, %arg4: memref<2x1x32xf32, #tpu.memory_space<vmem>>, %arg5: memref<2x32x32xf32, #tpu.memory_space<vmem>>, %arg6: memref<2x1x32xf32, #tpu.memory_space<vmem>>, %arg7: memref<2x32x32xf32, #tpu.memory_space<vmem>>, %arg8: memref<2x1x32xf32, #tpu.memory_space<vmem>>, %arg9: memref<2x32x32xf32, #tpu.memory_space<vmem>>, %arg10: memref<2x1x32xf32, #tpu.memory_space<vmem>>, %arg11: memref<2x32x32xf32, #tpu.memory_space<vmem>>, %arg12: memref<2x1x32xf32, #tpu.memory_space<vmem>>, %arg13: memref<2x1x32xf32, #tpu.memory_space<vmem>>, %arg14: memref<2x1x32xf32, #tpu.memory_space<vmem>>, %arg15: memref<2x32x128xf32, #tpu.memory_space<vmem>>, %arg16: memref<2x1x128xf32, #tpu.memory_space<vmem>>, %arg17: memref<2x128x32xf32, #tpu.memory_space<vmem>>, %arg18: memref<2x1x32xf32, #tpu.memory_space<vmem>>, %arg19: memref<1x32xf32, #tpu.memory_space<vmem>>, %arg20: memref<1x32xf32, #tpu.memory_space<vmem>>, %arg21: memref<32x64xf32, #tpu.memory_space<vmem>>, %arg22: memref<1x64xf32, #tpu.memory_space<vmem>>, %arg23: memref<64x12xf32, #tpu.memory_space<vmem>>, %arg24: memref<1x12xf32, #tpu.memory_space<vmem>>, %arg25: memref<2x12xf32, #tpu.memory_space<vmem>>) attributes {dimension_semantics = [#tpu.dimension_semantics<arbitrary>], iteration_bounds = array<i64: 1>, scalar_prefetch = 0 : i64, scratch_operands = 0 : i64, tpu.core_type = #tpu.core_type<tc>, window_params = [{pipeline_mode = #tpu.pipeline_mode<synchronous>, transform_indices = @transform_0, window_bounds = array<i64: 2, 8, 32>}, {pipeline_mode = #tpu.pipeline_mode<synchronous>, transform_indices = @transform_1, window_bounds = array<i64: 2, 1, 8>}, {pipeline_mode = #tpu.pipeline_mode<synchronous>, transform_indices = @transform_2, window_bounds = array<i64: 2, 1, 32>}, {pipeline_mode = #tpu.pipeline_mode<synchronous>, transform_indices = @transform_3, window_bounds = array<i64: 2, 1, 32>}, {pipeline_mode = #tpu.pipeline_mode<synchronous>, transform_indices = @transform_4, window_bounds = array<i64: 2, 32, 32>}, {pipeline_mode = #tpu.pipeline_mode<synchronous>, transform_indices = @transform_5, window_bounds = array<i64: 2, 1, 32>}, {pipeline_mode = #tpu.pipeline_mode<synchronous>, transform_indices = @transform_6, window_bounds = array<i64: 2, 32, 32>}, {pipeline_mode = #tpu.pipeline_mode<synchronous>, transform_indices = @transform_7, window_bounds = array<i64: 2, 1, 32>}, {pipeline_mode = #tpu.pipeline_mode<synchronous>, transform_indices = @transform_8, window_bounds = array<i64: 2, 32, 32>}, {pipeline_mode = #tpu.pipeline_mode<synchronous>, transform_indices = @transform_9, window_bounds = array<i64: 2, 1, 32>}, {pipeline_mode = #tpu.pipeline_mode<synchronous>, transform_indices = @transform_10, window_bounds = array<i64: 2, 32, 32>}, {pipeline_mode = #tpu.pipeline_mode<synchronous>, transform_indices = @transform_11, window_bounds = array<i64: 2, 1, 32>}, {pipeline_mode = #tpu.pipeline_mode<synchronous>, transform_indices = @transform_12, window_bounds = array<i64: 2, 1, 32>}, {pipeline_mode = #tpu.pipeline_mode<synchronous>, transform_indices = @transform_13, window_bounds = array<i64: 2, 1, 32>}, {pipeline_mode = #tpu.pipeline_mode<synchronous>, transform_indices = @transform_14, window_bounds = array<i64: 2, 32, 128>}, {pipeline_mode = #tpu.pipeline_mode<synchronous>, transform_indices = @transform_15, window_bounds = array<i64: 2, 1, 128>}, {pipeline_mode = #tpu.pipeline_mode<synchronous>, transform_indices = @transform_16, window_bounds = array<i64: 2, 128, 32>}, {pipeline_mode = #tpu.pipeline_mode<synchronous>, transform_indices = @transform_17, window_bounds = array<i64: 2, 1, 32>}, {pipeline_mode = #tpu.pipeline_mode<synchronous>, transform_indices = @transform_18, window_bounds = array<i64: 1, 32>}, {pipeline_mode = #tpu.pipeline_mode<synchronous>, transform_indices = @transform_19, window_bounds = array<i64: 1, 32>}, {pipeline_mode = #tpu.pipeline_mode<synchronous>, transform_indices = @transform_20, window_bounds = array<i64: 32, 64>}, {pipeline_mode = #tpu.pipeline_mode<synchronous>, transform_indices = @transform_21, window_bounds = array<i64: 1, 64>}, {pipeline_mode = #tpu.pipeline_mode<synchronous>, transform_indices = @transform_22, window_bounds = array<i64: 64, 12>}, {pipeline_mode = #tpu.pipeline_mode<synchronous>, transform_indices = @transform_23, window_bounds = array<i64: 1, 12>}, {pipeline_mode = #tpu.pipeline_mode<synchronous>, transform_indices = @transform_24, window_bounds = array<i64: 2, 12>}]} {
    %c0 = arith.constant 0 : index
    %c0_0 = arith.constant 0 : index
    %c0_1 = arith.constant 0 : index
    %0 = vector.load %arg1[%c0, %c0_0, %c0_1] : memref<2x8x32xf32, #tpu.memory_space<vmem>>, vector<2x8x32xf32>
    %1 = vector.shape_cast %0 : vector<2x8x32xf32> to vector<16x32xf32>
    %c0_2 = arith.constant 0 : index
    %c0_3 = arith.constant 0 : index
    %c0_4 = arith.constant 0 : index
    %2 = vector.load %arg2[%c0_2, %c0_3, %c0_4] : memref<2x1x8xf32, #tpu.memory_space<vmem>>, vector<2x1x8xf32>
    %c0_5 = arith.constant 0 : index
    %c0_6 = arith.constant 0 : index
    %c0_7 = arith.constant 0 : index
    %3 = vector.load %arg3[%c0_5, %c0_6, %c0_7] : memref<2x1x32xf32, #tpu.memory_space<vmem>>, vector<1x1x32xf32>
    %4 = vector.shape_cast %3 : vector<1x1x32xf32> to vector<1x32xf32>
    %c0_8 = arith.constant 0 : index
    %c0_9 = arith.constant 0 : index
    %c0_10 = arith.constant 0 : index
    %5 = vector.load %arg4[%c0_8, %c0_9, %c0_10] : memref<2x1x32xf32, #tpu.memory_space<vmem>>, vector<1x1x32xf32>
    %6 = vector.shape_cast %5 : vector<1x1x32xf32> to vector<1x32xf32>
    %cst = arith.constant dense<0.000000e+00> : vector<16xf32>
    %7 = vector.multi_reduction <add>, %1, %cst [1] : vector<16x32xf32> to vector<16xf32>
    %8 = vector.shape_cast %7 : vector<16xf32> to vector<16x1xf32>
    %cst_11 = arith.constant 3.200000e+01 : f32
    %9 = vector.broadcast %cst_11 : f32 to vector<16x1xf32>
    %10 = arith.divf %8, %9 : vector<16x1xf32>
    %11 = vector.broadcast %10 : vector<16x1xf32> to vector<16x32xf32>
    %12 = arith.subf %1, %11 : vector<16x32xf32>
    %13 = arith.mulf %12, %12 : vector<16x32xf32>
    %cst_12 = arith.constant dense<0.000000e+00> : vector<16xf32>
    %14 = vector.multi_reduction <add>, %13, %cst_12 [1] : vector<16x32xf32> to vector<16xf32>
    %15 = vector.shape_cast %14 : vector<16xf32> to vector<16x1xf32>
    %cst_13 = arith.constant 3.200000e+01 : f32
    %16 = vector.broadcast %cst_13 : f32 to vector<16x1xf32>
    %17 = arith.divf %15, %16 : vector<16x1xf32>
    %18 = vector.broadcast %10 : vector<16x1xf32> to vector<16x32xf32>
    %19 = arith.subf %1, %18 : vector<16x32xf32>
    %cst_14 = arith.constant 9.99999974E-6 : f32
    %20 = vector.broadcast %cst_14 : f32 to vector<16x1xf32>
    %21 = arith.addf %17, %20 : vector<16x1xf32>
    %22 = math.rsqrt %21 : vector<16x1xf32>
    %23 = vector.broadcast %22 : vector<16x1xf32> to vector<16x32xf32>
    %24 = arith.mulf %19, %23 : vector<16x32xf32>
    %25 = vector.broadcast %4 : vector<1x32xf32> to vector<16x32xf32>
    %26 = arith.mulf %24, %25 : vector<16x32xf32>
    %27 = vector.broadcast %6 : vector<1x32xf32> to vector<16x32xf32>
    %28 = arith.addf %26, %27 : vector<16x32xf32>
    %c0_15 = arith.constant 0 : index
    %c0_16 = arith.constant 0 : index
    %c0_17 = arith.constant 0 : index
    %29 = vector.load %arg5[%c0_15, %c0_16, %c0_17] : memref<2x32x32xf32, #tpu.memory_space<vmem>>, vector<1x32x32xf32>
    %30 = vector.shape_cast %29 : vector<1x32x32xf32> to vector<32x32xf32>
    %cst_18 = arith.constant dense<0.000000e+00> : vector<16x32xf32>
    %31 = tpu.matmul %28, %30, %cst_18 {dimension_numbers = #tpu.dot_dimension_numbers<[1], [0], [0], [1], [0, 0, 1, 1], [], []>} : vector<16x32xf32>, vector<32x32xf32>, vector<16x32xf32> -> vector<16x32xf32>
    %c0_19 = arith.constant 0 : index
    %c0_20 = arith.constant 0 : index
    %c0_21 = arith.constant 0 : index
    %32 = vector.load %arg6[%c0_19, %c0_20, %c0_21] : memref<2x1x32xf32, #tpu.memory_space<vmem>>, vector<1x1x32xf32>
    %33 = vector.shape_cast %32 : vector<1x1x32xf32> to vector<1x32xf32>
    %34 = vector.broadcast %33 : vector<1x32xf32> to vector<16x32xf32>
    %35 = arith.addf %31, %34 : vector<16x32xf32>
    %c0_22 = arith.constant 0 : index
    %c0_23 = arith.constant 0 : index
    %c0_24 = arith.constant 0 : index
    %36 = vector.load %arg7[%c0_22, %c0_23, %c0_24] : memref<2x32x32xf32, #tpu.memory_space<vmem>>, vector<1x32x32xf32>
    %37 = vector.shape_cast %36 : vector<1x32x32xf32> to vector<32x32xf32>
    %cst_25 = arith.constant dense<0.000000e+00> : vector<16x32xf32>
    %38 = tpu.matmul %28, %37, %cst_25 {dimension_numbers = #tpu.dot_dimension_numbers<[1], [0], [0], [1], [0, 0, 1, 1], [], []>} : vector<16x32xf32>, vector<32x32xf32>, vector<16x32xf32> -> vector<16x32xf32>
    %c0_26 = arith.constant 0 : index
    %c0_27 = arith.constant 0 : index
    %c0_28 = arith.constant 0 : index
    %39 = vector.load %arg8[%c0_26, %c0_27, %c0_28] : memref<2x1x32xf32, #tpu.memory_space<vmem>>, vector<1x1x32xf32>
    %40 = vector.shape_cast %39 : vector<1x1x32xf32> to vector<1x32xf32>
    %41 = vector.broadcast %40 : vector<1x32xf32> to vector<16x32xf32>
    %42 = arith.addf %38, %41 : vector<16x32xf32>
    %c0_29 = arith.constant 0 : index
    %c0_30 = arith.constant 0 : index
    %c0_31 = arith.constant 0 : index
    %43 = vector.load %arg9[%c0_29, %c0_30, %c0_31] : memref<2x32x32xf32, #tpu.memory_space<vmem>>, vector<1x32x32xf32>
    %44 = vector.shape_cast %43 : vector<1x32x32xf32> to vector<32x32xf32>
    %cst_32 = arith.constant dense<0.000000e+00> : vector<16x32xf32>
    %45 = tpu.matmul %28, %44, %cst_32 {dimension_numbers = #tpu.dot_dimension_numbers<[1], [0], [0], [1], [0, 0, 1, 1], [], []>} : vector<16x32xf32>, vector<32x32xf32>, vector<16x32xf32> -> vector<16x32xf32>
    %c0_33 = arith.constant 0 : index
    %c0_34 = arith.constant 0 : index
    %c0_35 = arith.constant 0 : index
    %46 = vector.load %arg10[%c0_33, %c0_34, %c0_35] : memref<2x1x32xf32, #tpu.memory_space<vmem>>, vector<1x1x32xf32>
    %47 = vector.shape_cast %46 : vector<1x1x32xf32> to vector<1x32xf32>
    %48 = vector.broadcast %47 : vector<1x32xf32> to vector<16x32xf32>
    %49 = arith.addf %45, %48 : vector<16x32xf32>
    %50 = vector.shape_cast %35 : vector<16x32xf32> to vector<2x8x32xf32>
    %51 = vector.shape_cast %42 : vector<16x32xf32> to vector<2x8x32xf32>
    %52 = vector.shape_cast %49 : vector<16x32xf32> to vector<2x8x32xf32>
    %c0_36 = arith.constant 0 : index
    %c0_37 = arith.constant 0 : index
    %c0_38 = arith.constant 0 : index
    %53 = vector.load %arg11[%c0_36, %c0_37, %c0_38] : memref<2x32x32xf32, #tpu.memory_space<vmem>>, vector<1x32x32xf32>
    %54 = vector.shape_cast %53 : vector<1x32x32xf32> to vector<32x32xf32>
    %cst_39 = arith.constant 0.000000e+00 : f32
    %55 = vector.broadcast %cst_39 : f32 to vector<16x32xf32>
    %56 = vector.extract_strided_slice %50 {offsets = [0, 0, 0], sizes = [2, 8, 8], strides = [1, 1, 1]} : vector<2x8x32xf32> to vector<2x8x8xf32>
    %57 = vector.extract_strided_slice %51 {offsets = [0, 0, 0], sizes = [2, 8, 8], strides = [1, 1, 1]} : vector<2x8x32xf32> to vector<2x8x8xf32>
    "tpu.trace_start"() <{level = 10 : i32, message = "bqd,bkd->bqk"}> : () -> ()
    %cst_40 = arith.constant dense<0.000000e+00> : vector<2x8x8xf32>
    %58 = tpu.matmul %56, %57, %cst_40 {dimension_numbers = #tpu.dot_dimension_numbers<[2], [2], [1], [1], [0, 0, 0, 1, 1, 1], [0], [0]>} : vector<2x8x8xf32>, vector<2x8x8xf32>, vector<2x8x8xf32> -> vector<2x8x8xf32>
    "tpu.trace_stop"() : () -> ()
    %cst_41 = arith.constant 0.353553385 : f32
    %59 = vector.broadcast %cst_41 : f32 to vector<2x8x8xf32>
    %60 = arith.mulf %58, %59 : vector<2x8x8xf32>
    %61 = vector.broadcast %2 : vector<2x1x8xf32> to vector<2x8x8xf32>
    %62 = arith.addf %60, %61 : vector<2x8x8xf32>
    %cst_42 = arith.constant dense<0xFF800000> : vector<2x8xf32>
    %63 = vector.multi_reduction <maximumf>, %62, %cst_42 [2] : vector<2x8x8xf32> to vector<2x8xf32>
    %64 = vector.shape_cast %63 : vector<2x8xf32> to vector<2x8x1xf32>
    %65 = vector.broadcast %64 : vector<2x8x1xf32> to vector<2x8x8xf32>
    %66 = arith.subf %62, %65 : vector<2x8x8xf32>
    %67 = math.exp %66 : vector<2x8x8xf32>
    %cst_43 = arith.constant dense<0.000000e+00> : vector<2x8xf32>
    %68 = vector.multi_reduction <add>, %67, %cst_43 [2] : vector<2x8x8xf32> to vector<2x8xf32>
    %69 = vector.shape_cast %68 : vector<2x8xf32> to vector<2x8x1xf32>
    %70 = tpu.reciprocal %69 : vector<2x8x1xf32> -> vector<2x8x1xf32>
    %71 = vector.broadcast %70 : vector<2x8x1xf32> to vector<2x8x8xf32>
    %72 = arith.mulf %67, %71 : vector<2x8x8xf32>
    %73 = vector.extract_strided_slice %52 {offsets = [0, 0, 0], sizes = [2, 8, 8], strides = [1, 1, 1]} : vector<2x8x32xf32> to vector<2x8x8xf32>
    "tpu.trace_start"() <{level = 10 : i32, message = "bqk,bkd->bqd"}> : () -> ()
    %cst_44 = arith.constant dense<0.000000e+00> : vector<2x8x8xf32>
    %74 = tpu.matmul %72, %73, %cst_44 {dimension_numbers = #tpu.dot_dimension_numbers<[2], [1], [1], [2], [0, 0, 0, 1, 1, 2], [0], [0]>} : vector<2x8x8xf32>, vector<2x8x8xf32>, vector<2x8x8xf32> -> vector<2x8x8xf32>
    "tpu.trace_stop"() : () -> ()
    %75 = vector.shape_cast %74 : vector<2x8x8xf32> to vector<16x8xf32>
    %76 = vector.extract_strided_slice %54 {offsets = [0, 0], sizes = [8, 32], strides = [1, 1]} : vector<32x32xf32> to vector<8x32xf32>
    %cst_45 = arith.constant dense<0.000000e+00> : vector<16x32xf32>
    %77 = tpu.matmul %75, %76, %cst_45 {dimension_numbers = #tpu.dot_dimension_numbers<[1], [0], [0], [1], [0, 0, 1, 1], [], []>} : vector<16x8xf32>, vector<8x32xf32>, vector<16x32xf32> -> vector<16x32xf32>
    %78 = arith.addf %55, %77 : vector<16x32xf32>
    %79 = vector.extract_strided_slice %50 {offsets = [0, 0, 8], sizes = [2, 8, 8], strides = [1, 1, 1]} : vector<2x8x32xf32> to vector<2x8x8xf32>
    %80 = vector.extract_strided_slice %51 {offsets = [0, 0, 8], sizes = [2, 8, 8], strides = [1, 1, 1]} : vector<2x8x32xf32> to vector<2x8x8xf32>
    "tpu.trace_start"() <{level = 10 : i32, message = "bqd,bkd->bqk"}> : () -> ()
    %cst_46 = arith.constant dense<0.000000e+00> : vector<2x8x8xf32>
    %81 = tpu.matmul %79, %80, %cst_46 {dimension_numbers = #tpu.dot_dimension_numbers<[2], [2], [1], [1], [0, 0, 0, 1, 1, 1], [0], [0]>} : vector<2x8x8xf32>, vector<2x8x8xf32>, vector<2x8x8xf32> -> vector<2x8x8xf32>
    "tpu.trace_stop"() : () -> ()
    %cst_47 = arith.constant 0.353553385 : f32
    %82 = vector.broadcast %cst_47 : f32 to vector<2x8x8xf32>
    %83 = arith.mulf %81, %82 : vector<2x8x8xf32>
    %84 = vector.broadcast %2 : vector<2x1x8xf32> to vector<2x8x8xf32>
    %85 = arith.addf %83, %84 : vector<2x8x8xf32>
    %cst_48 = arith.constant dense<0xFF800000> : vector<2x8xf32>
    %86 = vector.multi_reduction <maximumf>, %85, %cst_48 [2] : vector<2x8x8xf32> to vector<2x8xf32>
    %87 = vector.shape_cast %86 : vector<2x8xf32> to vector<2x8x1xf32>
    %88 = vector.broadcast %87 : vector<2x8x1xf32> to vector<2x8x8xf32>
    %89 = arith.subf %85, %88 : vector<2x8x8xf32>
    %90 = math.exp %89 : vector<2x8x8xf32>
    %cst_49 = arith.constant dense<0.000000e+00> : vector<2x8xf32>
    %91 = vector.multi_reduction <add>, %90, %cst_49 [2] : vector<2x8x8xf32> to vector<2x8xf32>
    %92 = vector.shape_cast %91 : vector<2x8xf32> to vector<2x8x1xf32>
    %93 = tpu.reciprocal %92 : vector<2x8x1xf32> -> vector<2x8x1xf32>
    %94 = vector.broadcast %93 : vector<2x8x1xf32> to vector<2x8x8xf32>
    %95 = arith.mulf %90, %94 : vector<2x8x8xf32>
    %96 = vector.extract_strided_slice %52 {offsets = [0, 0, 8], sizes = [2, 8, 8], strides = [1, 1, 1]} : vector<2x8x32xf32> to vector<2x8x8xf32>
    "tpu.trace_start"() <{level = 10 : i32, message = "bqk,bkd->bqd"}> : () -> ()
    %cst_50 = arith.constant dense<0.000000e+00> : vector<2x8x8xf32>
    %97 = tpu.matmul %95, %96, %cst_50 {dimension_numbers = #tpu.dot_dimension_numbers<[2], [1], [1], [2], [0, 0, 0, 1, 1, 2], [0], [0]>} : vector<2x8x8xf32>, vector<2x8x8xf32>, vector<2x8x8xf32> -> vector<2x8x8xf32>
    "tpu.trace_stop"() : () -> ()
    %98 = vector.shape_cast %97 : vector<2x8x8xf32> to vector<16x8xf32>
    %99 = vector.extract_strided_slice %54 {offsets = [8, 0], sizes = [8, 32], strides = [1, 1]} : vector<32x32xf32> to vector<8x32xf32>
    %cst_51 = arith.constant dense<0.000000e+00> : vector<16x32xf32>
    %100 = tpu.matmul %98, %99, %cst_51 {dimension_numbers = #tpu.dot_dimension_numbers<[1], [0], [0], [1], [0, 0, 1, 1], [], []>} : vector<16x8xf32>, vector<8x32xf32>, vector<16x32xf32> -> vector<16x32xf32>
    %101 = arith.addf %78, %100 : vector<16x32xf32>
    %102 = vector.extract_strided_slice %50 {offsets = [0, 0, 16], sizes = [2, 8, 8], strides = [1, 1, 1]} : vector<2x8x32xf32> to vector<2x8x8xf32>
    %103 = vector.extract_strided_slice %51 {offsets = [0, 0, 16], sizes = [2, 8, 8], strides = [1, 1, 1]} : vector<2x8x32xf32> to vector<2x8x8xf32>
    "tpu.trace_start"() <{level = 10 : i32, message = "bqd,bkd->bqk"}> : () -> ()
    %cst_52 = arith.constant dense<0.000000e+00> : vector<2x8x8xf32>
    %104 = tpu.matmul %102, %103, %cst_52 {dimension_numbers = #tpu.dot_dimension_numbers<[2], [2], [1], [1], [0, 0, 0, 1, 1, 1], [0], [0]>} : vector<2x8x8xf32>, vector<2x8x8xf32>, vector<2x8x8xf32> -> vector<2x8x8xf32>
    "tpu.trace_stop"() : () -> ()
    %cst_53 = arith.constant 0.353553385 : f32
    %105 = vector.broadcast %cst_53 : f32 to vector<2x8x8xf32>
    %106 = arith.mulf %104, %105 : vector<2x8x8xf32>
    %107 = vector.broadcast %2 : vector<2x1x8xf32> to vector<2x8x8xf32>
    %108 = arith.addf %106, %107 : vector<2x8x8xf32>
    %cst_54 = arith.constant dense<0xFF800000> : vector<2x8xf32>
    %109 = vector.multi_reduction <maximumf>, %108, %cst_54 [2] : vector<2x8x8xf32> to vector<2x8xf32>
    %110 = vector.shape_cast %109 : vector<2x8xf32> to vector<2x8x1xf32>
    %111 = vector.broadcast %110 : vector<2x8x1xf32> to vector<2x8x8xf32>
    %112 = arith.subf %108, %111 : vector<2x8x8xf32>
    %113 = math.exp %112 : vector<2x8x8xf32>
    %cst_55 = arith.constant dense<0.000000e+00> : vector<2x8xf32>
    %114 = vector.multi_reduction <add>, %113, %cst_55 [2] : vector<2x8x8xf32> to vector<2x8xf32>
    %115 = vector.shape_cast %114 : vector<2x8xf32> to vector<2x8x1xf32>
    %116 = tpu.reciprocal %115 : vector<2x8x1xf32> -> vector<2x8x1xf32>
    %117 = vector.broadcast %116 : vector<2x8x1xf32> to vector<2x8x8xf32>
    %118 = arith.mulf %113, %117 : vector<2x8x8xf32>
    %119 = vector.extract_strided_slice %52 {offsets = [0, 0, 16], sizes = [2, 8, 8], strides = [1, 1, 1]} : vector<2x8x32xf32> to vector<2x8x8xf32>
    "tpu.trace_start"() <{level = 10 : i32, message = "bqk,bkd->bqd"}> : () -> ()
    %cst_56 = arith.constant dense<0.000000e+00> : vector<2x8x8xf32>
    %120 = tpu.matmul %118, %119, %cst_56 {dimension_numbers = #tpu.dot_dimension_numbers<[2], [1], [1], [2], [0, 0, 0, 1, 1, 2], [0], [0]>} : vector<2x8x8xf32>, vector<2x8x8xf32>, vector<2x8x8xf32> -> vector<2x8x8xf32>
    "tpu.trace_stop"() : () -> ()
    %121 = vector.shape_cast %120 : vector<2x8x8xf32> to vector<16x8xf32>
    %122 = vector.extract_strided_slice %54 {offsets = [16, 0], sizes = [8, 32], strides = [1, 1]} : vector<32x32xf32> to vector<8x32xf32>
    %cst_57 = arith.constant dense<0.000000e+00> : vector<16x32xf32>
    %123 = tpu.matmul %121, %122, %cst_57 {dimension_numbers = #tpu.dot_dimension_numbers<[1], [0], [0], [1], [0, 0, 1, 1], [], []>} : vector<16x8xf32>, vector<8x32xf32>, vector<16x32xf32> -> vector<16x32xf32>
    %124 = arith.addf %101, %123 : vector<16x32xf32>
    %125 = vector.extract_strided_slice %50 {offsets = [0, 0, 24], sizes = [2, 8, 8], strides = [1, 1, 1]} : vector<2x8x32xf32> to vector<2x8x8xf32>
    %126 = vector.extract_strided_slice %51 {offsets = [0, 0, 24], sizes = [2, 8, 8], strides = [1, 1, 1]} : vector<2x8x32xf32> to vector<2x8x8xf32>
    "tpu.trace_start"() <{level = 10 : i32, message = "bqd,bkd->bqk"}> : () -> ()
    %cst_58 = arith.constant dense<0.000000e+00> : vector<2x8x8xf32>
    %127 = tpu.matmul %125, %126, %cst_58 {dimension_numbers = #tpu.dot_dimension_numbers<[2], [2], [1], [1], [0, 0, 0, 1, 1, 1], [0], [0]>} : vector<2x8x8xf32>, vector<2x8x8xf32>, vector<2x8x8xf32> -> vector<2x8x8xf32>
    "tpu.trace_stop"() : () -> ()
    %cst_59 = arith.constant 0.353553385 : f32
    %128 = vector.broadcast %cst_59 : f32 to vector<2x8x8xf32>
    %129 = arith.mulf %127, %128 : vector<2x8x8xf32>
    %130 = vector.broadcast %2 : vector<2x1x8xf32> to vector<2x8x8xf32>
    %131 = arith.addf %129, %130 : vector<2x8x8xf32>
    %cst_60 = arith.constant dense<0xFF800000> : vector<2x8xf32>
    %132 = vector.multi_reduction <maximumf>, %131, %cst_60 [2] : vector<2x8x8xf32> to vector<2x8xf32>
    %133 = vector.shape_cast %132 : vector<2x8xf32> to vector<2x8x1xf32>
    %134 = vector.broadcast %133 : vector<2x8x1xf32> to vector<2x8x8xf32>
    %135 = arith.subf %131, %134 : vector<2x8x8xf32>
    %136 = math.exp %135 : vector<2x8x8xf32>
    %cst_61 = arith.constant dense<0.000000e+00> : vector<2x8xf32>
    %137 = vector.multi_reduction <add>, %136, %cst_61 [2] : vector<2x8x8xf32> to vector<2x8xf32>
    %138 = vector.shape_cast %137 : vector<2x8xf32> to vector<2x8x1xf32>
    %139 = tpu.reciprocal %138 : vector<2x8x1xf32> -> vector<2x8x1xf32>
    %140 = vector.broadcast %139 : vector<2x8x1xf32> to vector<2x8x8xf32>
    %141 = arith.mulf %136, %140 : vector<2x8x8xf32>
    %142 = vector.extract_strided_slice %52 {offsets = [0, 0, 24], sizes = [2, 8, 8], strides = [1, 1, 1]} : vector<2x8x32xf32> to vector<2x8x8xf32>
    "tpu.trace_start"() <{level = 10 : i32, message = "bqk,bkd->bqd"}> : () -> ()
    %cst_62 = arith.constant dense<0.000000e+00> : vector<2x8x8xf32>
    %143 = tpu.matmul %141, %142, %cst_62 {dimension_numbers = #tpu.dot_dimension_numbers<[2], [1], [1], [2], [0, 0, 0, 1, 1, 2], [0], [0]>} : vector<2x8x8xf32>, vector<2x8x8xf32>, vector<2x8x8xf32> -> vector<2x8x8xf32>
    "tpu.trace_stop"() : () -> ()
    %144 = vector.shape_cast %143 : vector<2x8x8xf32> to vector<16x8xf32>
    %145 = vector.extract_strided_slice %54 {offsets = [24, 0], sizes = [8, 32], strides = [1, 1]} : vector<32x32xf32> to vector<8x32xf32>
    %cst_63 = arith.constant dense<0.000000e+00> : vector<16x32xf32>
    %146 = tpu.matmul %144, %145, %cst_63 {dimension_numbers = #tpu.dot_dimension_numbers<[1], [0], [0], [1], [0, 0, 1, 1], [], []>} : vector<16x8xf32>, vector<8x32xf32>, vector<16x32xf32> -> vector<16x32xf32>
    %147 = arith.addf %124, %146 : vector<16x32xf32>
    %148 = arith.addf %1, %147 : vector<16x32xf32>
    %c0_64 = arith.constant 0 : index
    %c0_65 = arith.constant 0 : index
    %c0_66 = arith.constant 0 : index
    %149 = vector.load %arg12[%c0_64, %c0_65, %c0_66] : memref<2x1x32xf32, #tpu.memory_space<vmem>>, vector<1x1x32xf32>
    %150 = vector.shape_cast %149 : vector<1x1x32xf32> to vector<1x32xf32>
    %151 = vector.broadcast %150 : vector<1x32xf32> to vector<16x32xf32>
    %152 = arith.addf %148, %151 : vector<16x32xf32>
    %c0_67 = arith.constant 0 : index
    %c0_68 = arith.constant 0 : index
    %c0_69 = arith.constant 0 : index
    %153 = vector.load %arg13[%c0_67, %c0_68, %c0_69] : memref<2x1x32xf32, #tpu.memory_space<vmem>>, vector<1x1x32xf32>
    %154 = vector.shape_cast %153 : vector<1x1x32xf32> to vector<1x32xf32>
    %c0_70 = arith.constant 0 : index
    %c0_71 = arith.constant 0 : index
    %c0_72 = arith.constant 0 : index
    %155 = vector.load %arg14[%c0_70, %c0_71, %c0_72] : memref<2x1x32xf32, #tpu.memory_space<vmem>>, vector<1x1x32xf32>
    %156 = vector.shape_cast %155 : vector<1x1x32xf32> to vector<1x32xf32>
    %cst_73 = arith.constant dense<0.000000e+00> : vector<16xf32>
    %157 = vector.multi_reduction <add>, %152, %cst_73 [1] : vector<16x32xf32> to vector<16xf32>
    %158 = vector.shape_cast %157 : vector<16xf32> to vector<16x1xf32>
    %cst_74 = arith.constant 3.200000e+01 : f32
    %159 = vector.broadcast %cst_74 : f32 to vector<16x1xf32>
    %160 = arith.divf %158, %159 : vector<16x1xf32>
    %161 = vector.broadcast %160 : vector<16x1xf32> to vector<16x32xf32>
    %162 = arith.subf %152, %161 : vector<16x32xf32>
    %163 = arith.mulf %162, %162 : vector<16x32xf32>
    %cst_75 = arith.constant dense<0.000000e+00> : vector<16xf32>
    %164 = vector.multi_reduction <add>, %163, %cst_75 [1] : vector<16x32xf32> to vector<16xf32>
    %165 = vector.shape_cast %164 : vector<16xf32> to vector<16x1xf32>
    %cst_76 = arith.constant 3.200000e+01 : f32
    %166 = vector.broadcast %cst_76 : f32 to vector<16x1xf32>
    %167 = arith.divf %165, %166 : vector<16x1xf32>
    %168 = vector.broadcast %160 : vector<16x1xf32> to vector<16x32xf32>
    %169 = arith.subf %152, %168 : vector<16x32xf32>
    %cst_77 = arith.constant 9.99999974E-6 : f32
    %170 = vector.broadcast %cst_77 : f32 to vector<16x1xf32>
    %171 = arith.addf %167, %170 : vector<16x1xf32>
    %172 = math.rsqrt %171 : vector<16x1xf32>
    %173 = vector.broadcast %172 : vector<16x1xf32> to vector<16x32xf32>
    %174 = arith.mulf %169, %173 : vector<16x32xf32>
    %175 = vector.broadcast %154 : vector<1x32xf32> to vector<16x32xf32>
    %176 = arith.mulf %174, %175 : vector<16x32xf32>
    %177 = vector.broadcast %156 : vector<1x32xf32> to vector<16x32xf32>
    %178 = arith.addf %176, %177 : vector<16x32xf32>
    %c0_78 = arith.constant 0 : index
    %c0_79 = arith.constant 0 : index
    %c0_80 = arith.constant 0 : index
    %179 = vector.load %arg15[%c0_78, %c0_79, %c0_80] : memref<2x32x128xf32, #tpu.memory_space<vmem>>, vector<1x32x128xf32>
    %180 = vector.shape_cast %179 : vector<1x32x128xf32> to vector<32x128xf32>
    %cst_81 = arith.constant dense<0.000000e+00> : vector<16x128xf32>
    %181 = tpu.matmul %178, %180, %cst_81 {dimension_numbers = #tpu.dot_dimension_numbers<[1], [0], [0], [1], [0, 0, 1, 1], [], []>} : vector<16x32xf32>, vector<32x128xf32>, vector<16x128xf32> -> vector<16x128xf32>
    %c0_82 = arith.constant 0 : index
    %c0_83 = arith.constant 0 : index
    %c0_84 = arith.constant 0 : index
    %182 = vector.load %arg16[%c0_82, %c0_83, %c0_84] : memref<2x1x128xf32, #tpu.memory_space<vmem>>, vector<1x1x128xf32>
    %183 = vector.shape_cast %182 : vector<1x1x128xf32> to vector<1x128xf32>
    %184 = vector.broadcast %183 : vector<1x128xf32> to vector<16x128xf32>
    %185 = arith.addf %181, %184 : vector<16x128xf32>
    %cst_85 = arith.constant 5.000000e-01 : f32
    %186 = vector.broadcast %cst_85 : f32 to vector<16x128xf32>
    %187 = arith.mulf %186, %185 : vector<16x128xf32>
    %cst_86 = arith.constant 0.707106769 : f32
    %188 = vector.broadcast %cst_86 : f32 to vector<16x128xf32>
    %189 = arith.mulf %185, %188 : vector<16x128xf32>
    %190 = math.erf %189 : vector<16x128xf32>
    %cst_87 = arith.constant 1.000000e+00 : f32
    %191 = vector.broadcast %cst_87 : f32 to vector<16x128xf32>
    %192 = arith.addf %191, %190 : vector<16x128xf32>
    %193 = arith.mulf %187, %192 : vector<16x128xf32>
    %c0_88 = arith.constant 0 : index
    %c0_89 = arith.constant 0 : index
    %c0_90 = arith.constant 0 : index
    %194 = vector.load %arg17[%c0_88, %c0_89, %c0_90] : memref<2x128x32xf32, #tpu.memory_space<vmem>>, vector<1x128x32xf32>
    %195 = vector.shape_cast %194 : vector<1x128x32xf32> to vector<128x32xf32>
    %cst_91 = arith.constant dense<0.000000e+00> : vector<16x32xf32>
    %196 = tpu.matmul %193, %195, %cst_91 {dimension_numbers = #tpu.dot_dimension_numbers<[1], [0], [0], [1], [0, 0, 1, 1], [], []>} : vector<16x128xf32>, vector<128x32xf32>, vector<16x32xf32> -> vector<16x32xf32>
    %197 = arith.addf %152, %196 : vector<16x32xf32>
    %c0_92 = arith.constant 0 : index
    %c0_93 = arith.constant 0 : index
    %c0_94 = arith.constant 0 : index
    %198 = vector.load %arg18[%c0_92, %c0_93, %c0_94] : memref<2x1x32xf32, #tpu.memory_space<vmem>>, vector<1x1x32xf32>
    %199 = vector.shape_cast %198 : vector<1x1x32xf32> to vector<1x32xf32>
    %200 = vector.broadcast %199 : vector<1x32xf32> to vector<16x32xf32>
    %201 = arith.addf %197, %200 : vector<16x32xf32>
    %c1 = arith.constant 1 : index
    %c0_95 = arith.constant 0 : index
    %c0_96 = arith.constant 0 : index
    %202 = vector.load %arg3[%c1, %c0_95, %c0_96] : memref<2x1x32xf32, #tpu.memory_space<vmem>>, vector<1x1x32xf32>
    %203 = vector.shape_cast %202 : vector<1x1x32xf32> to vector<1x32xf32>
    %c1_97 = arith.constant 1 : index
    %c0_98 = arith.constant 0 : index
    %c0_99 = arith.constant 0 : index
    %204 = vector.load %arg4[%c1_97, %c0_98, %c0_99] : memref<2x1x32xf32, #tpu.memory_space<vmem>>, vector<1x1x32xf32>
    %205 = vector.shape_cast %204 : vector<1x1x32xf32> to vector<1x32xf32>
    %cst_100 = arith.constant dense<0.000000e+00> : vector<16xf32>
    %206 = vector.multi_reduction <add>, %201, %cst_100 [1] : vector<16x32xf32> to vector<16xf32>
    %207 = vector.shape_cast %206 : vector<16xf32> to vector<16x1xf32>
    %cst_101 = arith.constant 3.200000e+01 : f32
    %208 = vector.broadcast %cst_101 : f32 to vector<16x1xf32>
    %209 = arith.divf %207, %208 : vector<16x1xf32>
    %210 = vector.broadcast %209 : vector<16x1xf32> to vector<16x32xf32>
    %211 = arith.subf %201, %210 : vector<16x32xf32>
    %212 = arith.mulf %211, %211 : vector<16x32xf32>
    %cst_102 = arith.constant dense<0.000000e+00> : vector<16xf32>
    %213 = vector.multi_reduction <add>, %212, %cst_102 [1] : vector<16x32xf32> to vector<16xf32>
    %214 = vector.shape_cast %213 : vector<16xf32> to vector<16x1xf32>
    %cst_103 = arith.constant 3.200000e+01 : f32
    %215 = vector.broadcast %cst_103 : f32 to vector<16x1xf32>
    %216 = arith.divf %214, %215 : vector<16x1xf32>
    %217 = vector.broadcast %209 : vector<16x1xf32> to vector<16x32xf32>
    %218 = arith.subf %201, %217 : vector<16x32xf32>
    %cst_104 = arith.constant 9.99999974E-6 : f32
    %219 = vector.broadcast %cst_104 : f32 to vector<16x1xf32>
    %220 = arith.addf %216, %219 : vector<16x1xf32>
    %221 = math.rsqrt %220 : vector<16x1xf32>
    %222 = vector.broadcast %221 : vector<16x1xf32> to vector<16x32xf32>
    %223 = arith.mulf %218, %222 : vector<16x32xf32>
    %224 = vector.broadcast %203 : vector<1x32xf32> to vector<16x32xf32>
    %225 = arith.mulf %223, %224 : vector<16x32xf32>
    %226 = vector.broadcast %205 : vector<1x32xf32> to vector<16x32xf32>
    %227 = arith.addf %225, %226 : vector<16x32xf32>
    %c1_105 = arith.constant 1 : index
    %c0_106 = arith.constant 0 : index
    %c0_107 = arith.constant 0 : index
    %228 = vector.load %arg5[%c1_105, %c0_106, %c0_107] : memref<2x32x32xf32, #tpu.memory_space<vmem>>, vector<1x32x32xf32>
    %229 = vector.shape_cast %228 : vector<1x32x32xf32> to vector<32x32xf32>
    %cst_108 = arith.constant dense<0.000000e+00> : vector<16x32xf32>
    %230 = tpu.matmul %227, %229, %cst_108 {dimension_numbers = #tpu.dot_dimension_numbers<[1], [0], [0], [1], [0, 0, 1, 1], [], []>} : vector<16x32xf32>, vector<32x32xf32>, vector<16x32xf32> -> vector<16x32xf32>
    %c1_109 = arith.constant 1 : index
    %c0_110 = arith.constant 0 : index
    %c0_111 = arith.constant 0 : index
    %231 = vector.load %arg6[%c1_109, %c0_110, %c0_111] : memref<2x1x32xf32, #tpu.memory_space<vmem>>, vector<1x1x32xf32>
    %232 = vector.shape_cast %231 : vector<1x1x32xf32> to vector<1x32xf32>
    %233 = vector.broadcast %232 : vector<1x32xf32> to vector<16x32xf32>
    %234 = arith.addf %230, %233 : vector<16x32xf32>
    %c1_112 = arith.constant 1 : index
    %c0_113 = arith.constant 0 : index
    %c0_114 = arith.constant 0 : index
    %235 = vector.load %arg7[%c1_112, %c0_113, %c0_114] : memref<2x32x32xf32, #tpu.memory_space<vmem>>, vector<1x32x32xf32>
    %236 = vector.shape_cast %235 : vector<1x32x32xf32> to vector<32x32xf32>
    %cst_115 = arith.constant dense<0.000000e+00> : vector<16x32xf32>
    %237 = tpu.matmul %227, %236, %cst_115 {dimension_numbers = #tpu.dot_dimension_numbers<[1], [0], [0], [1], [0, 0, 1, 1], [], []>} : vector<16x32xf32>, vector<32x32xf32>, vector<16x32xf32> -> vector<16x32xf32>
    %c1_116 = arith.constant 1 : index
    %c0_117 = arith.constant 0 : index
    %c0_118 = arith.constant 0 : index
    %238 = vector.load %arg8[%c1_116, %c0_117, %c0_118] : memref<2x1x32xf32, #tpu.memory_space<vmem>>, vector<1x1x32xf32>
    %239 = vector.shape_cast %238 : vector<1x1x32xf32> to vector<1x32xf32>
    %240 = vector.broadcast %239 : vector<1x32xf32> to vector<16x32xf32>
    %241 = arith.addf %237, %240 : vector<16x32xf32>
    %c1_119 = arith.constant 1 : index
    %c0_120 = arith.constant 0 : index
    %c0_121 = arith.constant 0 : index
    %242 = vector.load %arg9[%c1_119, %c0_120, %c0_121] : memref<2x32x32xf32, #tpu.memory_space<vmem>>, vector<1x32x32xf32>
    %243 = vector.shape_cast %242 : vector<1x32x32xf32> to vector<32x32xf32>
    %cst_122 = arith.constant dense<0.000000e+00> : vector<16x32xf32>
    %244 = tpu.matmul %227, %243, %cst_122 {dimension_numbers = #tpu.dot_dimension_numbers<[1], [0], [0], [1], [0, 0, 1, 1], [], []>} : vector<16x32xf32>, vector<32x32xf32>, vector<16x32xf32> -> vector<16x32xf32>
    %c1_123 = arith.constant 1 : index
    %c0_124 = arith.constant 0 : index
    %c0_125 = arith.constant 0 : index
    %245 = vector.load %arg10[%c1_123, %c0_124, %c0_125] : memref<2x1x32xf32, #tpu.memory_space<vmem>>, vector<1x1x32xf32>
    %246 = vector.shape_cast %245 : vector<1x1x32xf32> to vector<1x32xf32>
    %247 = vector.broadcast %246 : vector<1x32xf32> to vector<16x32xf32>
    %248 = arith.addf %244, %247 : vector<16x32xf32>
    %249 = vector.shape_cast %234 : vector<16x32xf32> to vector<2x8x32xf32>
    %250 = vector.shape_cast %241 : vector<16x32xf32> to vector<2x8x32xf32>
    %251 = vector.shape_cast %248 : vector<16x32xf32> to vector<2x8x32xf32>
    %c1_126 = arith.constant 1 : index
    %c0_127 = arith.constant 0 : index
    %c0_128 = arith.constant 0 : index
    %252 = vector.load %arg11[%c1_126, %c0_127, %c0_128] : memref<2x32x32xf32, #tpu.memory_space<vmem>>, vector<1x32x32xf32>
    %253 = vector.shape_cast %252 : vector<1x32x32xf32> to vector<32x32xf32>
    %cst_129 = arith.constant 0.000000e+00 : f32
    %254 = vector.broadcast %cst_129 : f32 to vector<16x32xf32>
    %255 = vector.extract_strided_slice %249 {offsets = [0, 0, 0], sizes = [2, 8, 8], strides = [1, 1, 1]} : vector<2x8x32xf32> to vector<2x8x8xf32>
    %256 = vector.extract_strided_slice %250 {offsets = [0, 0, 0], sizes = [2, 8, 8], strides = [1, 1, 1]} : vector<2x8x32xf32> to vector<2x8x8xf32>
    "tpu.trace_start"() <{level = 10 : i32, message = "bqd,bkd->bqk"}> : () -> ()
    %cst_130 = arith.constant dense<0.000000e+00> : vector<2x8x8xf32>
    %257 = tpu.matmul %255, %256, %cst_130 {dimension_numbers = #tpu.dot_dimension_numbers<[2], [2], [1], [1], [0, 0, 0, 1, 1, 1], [0], [0]>} : vector<2x8x8xf32>, vector<2x8x8xf32>, vector<2x8x8xf32> -> vector<2x8x8xf32>
    "tpu.trace_stop"() : () -> ()
    %cst_131 = arith.constant 0.353553385 : f32
    %258 = vector.broadcast %cst_131 : f32 to vector<2x8x8xf32>
    %259 = arith.mulf %257, %258 : vector<2x8x8xf32>
    %260 = vector.broadcast %2 : vector<2x1x8xf32> to vector<2x8x8xf32>
    %261 = arith.addf %259, %260 : vector<2x8x8xf32>
    %cst_132 = arith.constant dense<0xFF800000> : vector<2x8xf32>
    %262 = vector.multi_reduction <maximumf>, %261, %cst_132 [2] : vector<2x8x8xf32> to vector<2x8xf32>
    %263 = vector.shape_cast %262 : vector<2x8xf32> to vector<2x8x1xf32>
    %264 = vector.broadcast %263 : vector<2x8x1xf32> to vector<2x8x8xf32>
    %265 = arith.subf %261, %264 : vector<2x8x8xf32>
    %266 = math.exp %265 : vector<2x8x8xf32>
    %cst_133 = arith.constant dense<0.000000e+00> : vector<2x8xf32>
    %267 = vector.multi_reduction <add>, %266, %cst_133 [2] : vector<2x8x8xf32> to vector<2x8xf32>
    %268 = vector.shape_cast %267 : vector<2x8xf32> to vector<2x8x1xf32>
    %269 = tpu.reciprocal %268 : vector<2x8x1xf32> -> vector<2x8x1xf32>
    %270 = vector.broadcast %269 : vector<2x8x1xf32> to vector<2x8x8xf32>
    %271 = arith.mulf %266, %270 : vector<2x8x8xf32>
    %272 = vector.extract_strided_slice %251 {offsets = [0, 0, 0], sizes = [2, 8, 8], strides = [1, 1, 1]} : vector<2x8x32xf32> to vector<2x8x8xf32>
    "tpu.trace_start"() <{level = 10 : i32, message = "bqk,bkd->bqd"}> : () -> ()
    %cst_134 = arith.constant dense<0.000000e+00> : vector<2x8x8xf32>
    %273 = tpu.matmul %271, %272, %cst_134 {dimension_numbers = #tpu.dot_dimension_numbers<[2], [1], [1], [2], [0, 0, 0, 1, 1, 2], [0], [0]>} : vector<2x8x8xf32>, vector<2x8x8xf32>, vector<2x8x8xf32> -> vector<2x8x8xf32>
    "tpu.trace_stop"() : () -> ()
    %274 = vector.shape_cast %273 : vector<2x8x8xf32> to vector<16x8xf32>
    %275 = vector.extract_strided_slice %253 {offsets = [0, 0], sizes = [8, 32], strides = [1, 1]} : vector<32x32xf32> to vector<8x32xf32>
    %cst_135 = arith.constant dense<0.000000e+00> : vector<16x32xf32>
    %276 = tpu.matmul %274, %275, %cst_135 {dimension_numbers = #tpu.dot_dimension_numbers<[1], [0], [0], [1], [0, 0, 1, 1], [], []>} : vector<16x8xf32>, vector<8x32xf32>, vector<16x32xf32> -> vector<16x32xf32>
    %277 = arith.addf %254, %276 : vector<16x32xf32>
    %278 = vector.extract_strided_slice %249 {offsets = [0, 0, 8], sizes = [2, 8, 8], strides = [1, 1, 1]} : vector<2x8x32xf32> to vector<2x8x8xf32>
    %279 = vector.extract_strided_slice %250 {offsets = [0, 0, 8], sizes = [2, 8, 8], strides = [1, 1, 1]} : vector<2x8x32xf32> to vector<2x8x8xf32>
    "tpu.trace_start"() <{level = 10 : i32, message = "bqd,bkd->bqk"}> : () -> ()
    %cst_136 = arith.constant dense<0.000000e+00> : vector<2x8x8xf32>
    %280 = tpu.matmul %278, %279, %cst_136 {dimension_numbers = #tpu.dot_dimension_numbers<[2], [2], [1], [1], [0, 0, 0, 1, 1, 1], [0], [0]>} : vector<2x8x8xf32>, vector<2x8x8xf32>, vector<2x8x8xf32> -> vector<2x8x8xf32>
    "tpu.trace_stop"() : () -> ()
    %cst_137 = arith.constant 0.353553385 : f32
    %281 = vector.broadcast %cst_137 : f32 to vector<2x8x8xf32>
    %282 = arith.mulf %280, %281 : vector<2x8x8xf32>
    %283 = vector.broadcast %2 : vector<2x1x8xf32> to vector<2x8x8xf32>
    %284 = arith.addf %282, %283 : vector<2x8x8xf32>
    %cst_138 = arith.constant dense<0xFF800000> : vector<2x8xf32>
    %285 = vector.multi_reduction <maximumf>, %284, %cst_138 [2] : vector<2x8x8xf32> to vector<2x8xf32>
    %286 = vector.shape_cast %285 : vector<2x8xf32> to vector<2x8x1xf32>
    %287 = vector.broadcast %286 : vector<2x8x1xf32> to vector<2x8x8xf32>
    %288 = arith.subf %284, %287 : vector<2x8x8xf32>
    %289 = math.exp %288 : vector<2x8x8xf32>
    %cst_139 = arith.constant dense<0.000000e+00> : vector<2x8xf32>
    %290 = vector.multi_reduction <add>, %289, %cst_139 [2] : vector<2x8x8xf32> to vector<2x8xf32>
    %291 = vector.shape_cast %290 : vector<2x8xf32> to vector<2x8x1xf32>
    %292 = tpu.reciprocal %291 : vector<2x8x1xf32> -> vector<2x8x1xf32>
    %293 = vector.broadcast %292 : vector<2x8x1xf32> to vector<2x8x8xf32>
    %294 = arith.mulf %289, %293 : vector<2x8x8xf32>
    %295 = vector.extract_strided_slice %251 {offsets = [0, 0, 8], sizes = [2, 8, 8], strides = [1, 1, 1]} : vector<2x8x32xf32> to vector<2x8x8xf32>
    "tpu.trace_start"() <{level = 10 : i32, message = "bqk,bkd->bqd"}> : () -> ()
    %cst_140 = arith.constant dense<0.000000e+00> : vector<2x8x8xf32>
    %296 = tpu.matmul %294, %295, %cst_140 {dimension_numbers = #tpu.dot_dimension_numbers<[2], [1], [1], [2], [0, 0, 0, 1, 1, 2], [0], [0]>} : vector<2x8x8xf32>, vector<2x8x8xf32>, vector<2x8x8xf32> -> vector<2x8x8xf32>
    "tpu.trace_stop"() : () -> ()
    %297 = vector.shape_cast %296 : vector<2x8x8xf32> to vector<16x8xf32>
    %298 = vector.extract_strided_slice %253 {offsets = [8, 0], sizes = [8, 32], strides = [1, 1]} : vector<32x32xf32> to vector<8x32xf32>
    %cst_141 = arith.constant dense<0.000000e+00> : vector<16x32xf32>
    %299 = tpu.matmul %297, %298, %cst_141 {dimension_numbers = #tpu.dot_dimension_numbers<[1], [0], [0], [1], [0, 0, 1, 1], [], []>} : vector<16x8xf32>, vector<8x32xf32>, vector<16x32xf32> -> vector<16x32xf32>
    %300 = arith.addf %277, %299 : vector<16x32xf32>
    %301 = vector.extract_strided_slice %249 {offsets = [0, 0, 16], sizes = [2, 8, 8], strides = [1, 1, 1]} : vector<2x8x32xf32> to vector<2x8x8xf32>
    %302 = vector.extract_strided_slice %250 {offsets = [0, 0, 16], sizes = [2, 8, 8], strides = [1, 1, 1]} : vector<2x8x32xf32> to vector<2x8x8xf32>
    "tpu.trace_start"() <{level = 10 : i32, message = "bqd,bkd->bqk"}> : () -> ()
    %cst_142 = arith.constant dense<0.000000e+00> : vector<2x8x8xf32>
    %303 = tpu.matmul %301, %302, %cst_142 {dimension_numbers = #tpu.dot_dimension_numbers<[2], [2], [1], [1], [0, 0, 0, 1, 1, 1], [0], [0]>} : vector<2x8x8xf32>, vector<2x8x8xf32>, vector<2x8x8xf32> -> vector<2x8x8xf32>
    "tpu.trace_stop"() : () -> ()
    %cst_143 = arith.constant 0.353553385 : f32
    %304 = vector.broadcast %cst_143 : f32 to vector<2x8x8xf32>
    %305 = arith.mulf %303, %304 : vector<2x8x8xf32>
    %306 = vector.broadcast %2 : vector<2x1x8xf32> to vector<2x8x8xf32>
    %307 = arith.addf %305, %306 : vector<2x8x8xf32>
    %cst_144 = arith.constant dense<0xFF800000> : vector<2x8xf32>
    %308 = vector.multi_reduction <maximumf>, %307, %cst_144 [2] : vector<2x8x8xf32> to vector<2x8xf32>
    %309 = vector.shape_cast %308 : vector<2x8xf32> to vector<2x8x1xf32>
    %310 = vector.broadcast %309 : vector<2x8x1xf32> to vector<2x8x8xf32>
    %311 = arith.subf %307, %310 : vector<2x8x8xf32>
    %312 = math.exp %311 : vector<2x8x8xf32>
    %cst_145 = arith.constant dense<0.000000e+00> : vector<2x8xf32>
    %313 = vector.multi_reduction <add>, %312, %cst_145 [2] : vector<2x8x8xf32> to vector<2x8xf32>
    %314 = vector.shape_cast %313 : vector<2x8xf32> to vector<2x8x1xf32>
    %315 = tpu.reciprocal %314 : vector<2x8x1xf32> -> vector<2x8x1xf32>
    %316 = vector.broadcast %315 : vector<2x8x1xf32> to vector<2x8x8xf32>
    %317 = arith.mulf %312, %316 : vector<2x8x8xf32>
    %318 = vector.extract_strided_slice %251 {offsets = [0, 0, 16], sizes = [2, 8, 8], strides = [1, 1, 1]} : vector<2x8x32xf32> to vector<2x8x8xf32>
    "tpu.trace_start"() <{level = 10 : i32, message = "bqk,bkd->bqd"}> : () -> ()
    %cst_146 = arith.constant dense<0.000000e+00> : vector<2x8x8xf32>
    %319 = tpu.matmul %317, %318, %cst_146 {dimension_numbers = #tpu.dot_dimension_numbers<[2], [1], [1], [2], [0, 0, 0, 1, 1, 2], [0], [0]>} : vector<2x8x8xf32>, vector<2x8x8xf32>, vector<2x8x8xf32> -> vector<2x8x8xf32>
    "tpu.trace_stop"() : () -> ()
    %320 = vector.shape_cast %319 : vector<2x8x8xf32> to vector<16x8xf32>
    %321 = vector.extract_strided_slice %253 {offsets = [16, 0], sizes = [8, 32], strides = [1, 1]} : vector<32x32xf32> to vector<8x32xf32>
    %cst_147 = arith.constant dense<0.000000e+00> : vector<16x32xf32>
    %322 = tpu.matmul %320, %321, %cst_147 {dimension_numbers = #tpu.dot_dimension_numbers<[1], [0], [0], [1], [0, 0, 1, 1], [], []>} : vector<16x8xf32>, vector<8x32xf32>, vector<16x32xf32> -> vector<16x32xf32>
    %323 = arith.addf %300, %322 : vector<16x32xf32>
    %324 = vector.extract_strided_slice %249 {offsets = [0, 0, 24], sizes = [2, 8, 8], strides = [1, 1, 1]} : vector<2x8x32xf32> to vector<2x8x8xf32>
    %325 = vector.extract_strided_slice %250 {offsets = [0, 0, 24], sizes = [2, 8, 8], strides = [1, 1, 1]} : vector<2x8x32xf32> to vector<2x8x8xf32>
    "tpu.trace_start"() <{level = 10 : i32, message = "bqd,bkd->bqk"}> : () -> ()
    %cst_148 = arith.constant dense<0.000000e+00> : vector<2x8x8xf32>
    %326 = tpu.matmul %324, %325, %cst_148 {dimension_numbers = #tpu.dot_dimension_numbers<[2], [2], [1], [1], [0, 0, 0, 1, 1, 1], [0], [0]>} : vector<2x8x8xf32>, vector<2x8x8xf32>, vector<2x8x8xf32> -> vector<2x8x8xf32>
    "tpu.trace_stop"() : () -> ()
    %cst_149 = arith.constant 0.353553385 : f32
    %327 = vector.broadcast %cst_149 : f32 to vector<2x8x8xf32>
    %328 = arith.mulf %326, %327 : vector<2x8x8xf32>
    %329 = vector.broadcast %2 : vector<2x1x8xf32> to vector<2x8x8xf32>
    %330 = arith.addf %328, %329 : vector<2x8x8xf32>
    %cst_150 = arith.constant dense<0xFF800000> : vector<2x8xf32>
    %331 = vector.multi_reduction <maximumf>, %330, %cst_150 [2] : vector<2x8x8xf32> to vector<2x8xf32>
    %332 = vector.shape_cast %331 : vector<2x8xf32> to vector<2x8x1xf32>
    %333 = vector.broadcast %332 : vector<2x8x1xf32> to vector<2x8x8xf32>
    %334 = arith.subf %330, %333 : vector<2x8x8xf32>
    %335 = math.exp %334 : vector<2x8x8xf32>
    %cst_151 = arith.constant dense<0.000000e+00> : vector<2x8xf32>
    %336 = vector.multi_reduction <add>, %335, %cst_151 [2] : vector<2x8x8xf32> to vector<2x8xf32>
    %337 = vector.shape_cast %336 : vector<2x8xf32> to vector<2x8x1xf32>
    %338 = tpu.reciprocal %337 : vector<2x8x1xf32> -> vector<2x8x1xf32>
    %339 = vector.broadcast %338 : vector<2x8x1xf32> to vector<2x8x8xf32>
    %340 = arith.mulf %335, %339 : vector<2x8x8xf32>
    %341 = vector.extract_strided_slice %251 {offsets = [0, 0, 24], sizes = [2, 8, 8], strides = [1, 1, 1]} : vector<2x8x32xf32> to vector<2x8x8xf32>
    "tpu.trace_start"() <{level = 10 : i32, message = "bqk,bkd->bqd"}> : () -> ()
    %cst_152 = arith.constant dense<0.000000e+00> : vector<2x8x8xf32>
    %342 = tpu.matmul %340, %341, %cst_152 {dimension_numbers = #tpu.dot_dimension_numbers<[2], [1], [1], [2], [0, 0, 0, 1, 1, 2], [0], [0]>} : vector<2x8x8xf32>, vector<2x8x8xf32>, vector<2x8x8xf32> -> vector<2x8x8xf32>
    "tpu.trace_stop"() : () -> ()
    %343 = vector.shape_cast %342 : vector<2x8x8xf32> to vector<16x8xf32>
    %344 = vector.extract_strided_slice %253 {offsets = [24, 0], sizes = [8, 32], strides = [1, 1]} : vector<32x32xf32> to vector<8x32xf32>
    %cst_153 = arith.constant dense<0.000000e+00> : vector<16x32xf32>
    %345 = tpu.matmul %343, %344, %cst_153 {dimension_numbers = #tpu.dot_dimension_numbers<[1], [0], [0], [1], [0, 0, 1, 1], [], []>} : vector<16x8xf32>, vector<8x32xf32>, vector<16x32xf32> -> vector<16x32xf32>
    %346 = arith.addf %323, %345 : vector<16x32xf32>
    %347 = arith.addf %201, %346 : vector<16x32xf32>
    %c1_154 = arith.constant 1 : index
    %c0_155 = arith.constant 0 : index
    %c0_156 = arith.constant 0 : index
    %348 = vector.load %arg12[%c1_154, %c0_155, %c0_156] : memref<2x1x32xf32, #tpu.memory_space<vmem>>, vector<1x1x32xf32>
    %349 = vector.shape_cast %348 : vector<1x1x32xf32> to vector<1x32xf32>
    %350 = vector.broadcast %349 : vector<1x32xf32> to vector<16x32xf32>
    %351 = arith.addf %347, %350 : vector<16x32xf32>
    %c1_157 = arith.constant 1 : index
    %c0_158 = arith.constant 0 : index
    %c0_159 = arith.constant 0 : index
    %352 = vector.load %arg13[%c1_157, %c0_158, %c0_159] : memref<2x1x32xf32, #tpu.memory_space<vmem>>, vector<1x1x32xf32>
    %353 = vector.shape_cast %352 : vector<1x1x32xf32> to vector<1x32xf32>
    %c1_160 = arith.constant 1 : index
    %c0_161 = arith.constant 0 : index
    %c0_162 = arith.constant 0 : index
    %354 = vector.load %arg14[%c1_160, %c0_161, %c0_162] : memref<2x1x32xf32, #tpu.memory_space<vmem>>, vector<1x1x32xf32>
    %355 = vector.shape_cast %354 : vector<1x1x32xf32> to vector<1x32xf32>
    %cst_163 = arith.constant dense<0.000000e+00> : vector<16xf32>
    %356 = vector.multi_reduction <add>, %351, %cst_163 [1] : vector<16x32xf32> to vector<16xf32>
    %357 = vector.shape_cast %356 : vector<16xf32> to vector<16x1xf32>
    %cst_164 = arith.constant 3.200000e+01 : f32
    %358 = vector.broadcast %cst_164 : f32 to vector<16x1xf32>
    %359 = arith.divf %357, %358 : vector<16x1xf32>
    %360 = vector.broadcast %359 : vector<16x1xf32> to vector<16x32xf32>
    %361 = arith.subf %351, %360 : vector<16x32xf32>
    %362 = arith.mulf %361, %361 : vector<16x32xf32>
    %cst_165 = arith.constant dense<0.000000e+00> : vector<16xf32>
    %363 = vector.multi_reduction <add>, %362, %cst_165 [1] : vector<16x32xf32> to vector<16xf32>
    %364 = vector.shape_cast %363 : vector<16xf32> to vector<16x1xf32>
    %cst_166 = arith.constant 3.200000e+01 : f32
    %365 = vector.broadcast %cst_166 : f32 to vector<16x1xf32>
    %366 = arith.divf %364, %365 : vector<16x1xf32>
    %367 = vector.broadcast %359 : vector<16x1xf32> to vector<16x32xf32>
    %368 = arith.subf %351, %367 : vector<16x32xf32>
    %cst_167 = arith.constant 9.99999974E-6 : f32
    %369 = vector.broadcast %cst_167 : f32 to vector<16x1xf32>
    %370 = arith.addf %366, %369 : vector<16x1xf32>
    %371 = math.rsqrt %370 : vector<16x1xf32>
    %372 = vector.broadcast %371 : vector<16x1xf32> to vector<16x32xf32>
    %373 = arith.mulf %368, %372 : vector<16x32xf32>
    %374 = vector.broadcast %353 : vector<1x32xf32> to vector<16x32xf32>
    %375 = arith.mulf %373, %374 : vector<16x32xf32>
    %376 = vector.broadcast %355 : vector<1x32xf32> to vector<16x32xf32>
    %377 = arith.addf %375, %376 : vector<16x32xf32>
    %c1_168 = arith.constant 1 : index
    %c0_169 = arith.constant 0 : index
    %c0_170 = arith.constant 0 : index
    %378 = vector.load %arg15[%c1_168, %c0_169, %c0_170] : memref<2x32x128xf32, #tpu.memory_space<vmem>>, vector<1x32x128xf32>
    %379 = vector.shape_cast %378 : vector<1x32x128xf32> to vector<32x128xf32>
    %cst_171 = arith.constant dense<0.000000e+00> : vector<16x128xf32>
    %380 = tpu.matmul %377, %379, %cst_171 {dimension_numbers = #tpu.dot_dimension_numbers<[1], [0], [0], [1], [0, 0, 1, 1], [], []>} : vector<16x32xf32>, vector<32x128xf32>, vector<16x128xf32> -> vector<16x128xf32>
    %c1_172 = arith.constant 1 : index
    %c0_173 = arith.constant 0 : index
    %c0_174 = arith.constant 0 : index
    %381 = vector.load %arg16[%c1_172, %c0_173, %c0_174] : memref<2x1x128xf32, #tpu.memory_space<vmem>>, vector<1x1x128xf32>
    %382 = vector.shape_cast %381 : vector<1x1x128xf32> to vector<1x128xf32>
    %383 = vector.broadcast %382 : vector<1x128xf32> to vector<16x128xf32>
    %384 = arith.addf %380, %383 : vector<16x128xf32>
    %cst_175 = arith.constant 5.000000e-01 : f32
    %385 = vector.broadcast %cst_175 : f32 to vector<16x128xf32>
    %386 = arith.mulf %385, %384 : vector<16x128xf32>
    %cst_176 = arith.constant 0.707106769 : f32
    %387 = vector.broadcast %cst_176 : f32 to vector<16x128xf32>
    %388 = arith.mulf %384, %387 : vector<16x128xf32>
    %389 = math.erf %388 : vector<16x128xf32>
    %cst_177 = arith.constant 1.000000e+00 : f32
    %390 = vector.broadcast %cst_177 : f32 to vector<16x128xf32>
    %391 = arith.addf %390, %389 : vector<16x128xf32>
    %392 = arith.mulf %386, %391 : vector<16x128xf32>
    %c1_178 = arith.constant 1 : index
    %c0_179 = arith.constant 0 : index
    %c0_180 = arith.constant 0 : index
    %393 = vector.load %arg17[%c1_178, %c0_179, %c0_180] : memref<2x128x32xf32, #tpu.memory_space<vmem>>, vector<1x128x32xf32>
    %394 = vector.shape_cast %393 : vector<1x128x32xf32> to vector<128x32xf32>
    %cst_181 = arith.constant dense<0.000000e+00> : vector<16x32xf32>
    %395 = tpu.matmul %392, %394, %cst_181 {dimension_numbers = #tpu.dot_dimension_numbers<[1], [0], [0], [1], [0, 0, 1, 1], [], []>} : vector<16x128xf32>, vector<128x32xf32>, vector<16x32xf32> -> vector<16x32xf32>
    %396 = arith.addf %351, %395 : vector<16x32xf32>
    %c1_182 = arith.constant 1 : index
    %c0_183 = arith.constant 0 : index
    %c0_184 = arith.constant 0 : index
    %397 = vector.load %arg18[%c1_182, %c0_183, %c0_184] : memref<2x1x32xf32, #tpu.memory_space<vmem>>, vector<1x1x32xf32>
    %398 = vector.shape_cast %397 : vector<1x1x32xf32> to vector<1x32xf32>
    %399 = vector.broadcast %398 : vector<1x32xf32> to vector<16x32xf32>
    %400 = arith.addf %396, %399 : vector<16x32xf32>
    %401 = vector.shape_cast %400 : vector<16x32xf32> to vector<2x8x32xf32>
    %402 = vector.extract_strided_slice %401 {offsets = [0, 0, 0], sizes = [2, 1, 32], strides = [1, 1, 1]} : vector<2x8x32xf32> to vector<2x1x32xf32>
    %403 = vector.shape_cast %402 : vector<2x1x32xf32> to vector<2x32xf32>
    %c0_185 = arith.constant 0 : index
    %c0_186 = arith.constant 0 : index
    %404 = vector.load %arg19[%c0_185, %c0_186] : memref<1x32xf32, #tpu.memory_space<vmem>>, vector<1x32xf32>
    %c0_187 = arith.constant 0 : index
    %c0_188 = arith.constant 0 : index
    %405 = vector.load %arg20[%c0_187, %c0_188] : memref<1x32xf32, #tpu.memory_space<vmem>>, vector<1x32xf32>
    %cst_189 = arith.constant dense<0.000000e+00> : vector<2xf32>
    %406 = vector.multi_reduction <add>, %403, %cst_189 [1] : vector<2x32xf32> to vector<2xf32>
    %407 = vector.shape_cast %406 : vector<2xf32> to vector<2x1xf32>
    %cst_190 = arith.constant 3.200000e+01 : f32
    %408 = vector.broadcast %cst_190 : f32 to vector<2x1xf32>
    %409 = arith.divf %407, %408 : vector<2x1xf32>
    %410 = vector.broadcast %409 : vector<2x1xf32> to vector<2x32xf32>
    %411 = arith.subf %403, %410 : vector<2x32xf32>
    %412 = arith.mulf %411, %411 : vector<2x32xf32>
    %cst_191 = arith.constant dense<0.000000e+00> : vector<2xf32>
    %413 = vector.multi_reduction <add>, %412, %cst_191 [1] : vector<2x32xf32> to vector<2xf32>
    %414 = vector.shape_cast %413 : vector<2xf32> to vector<2x1xf32>
    %cst_192 = arith.constant 3.200000e+01 : f32
    %415 = vector.broadcast %cst_192 : f32 to vector<2x1xf32>
    %416 = arith.divf %414, %415 : vector<2x1xf32>
    %417 = vector.broadcast %409 : vector<2x1xf32> to vector<2x32xf32>
    %418 = arith.subf %403, %417 : vector<2x32xf32>
    %cst_193 = arith.constant 9.99999974E-6 : f32
    %419 = vector.broadcast %cst_193 : f32 to vector<2x1xf32>
    %420 = arith.addf %416, %419 : vector<2x1xf32>
    %421 = math.rsqrt %420 : vector<2x1xf32>
    %422 = vector.broadcast %421 : vector<2x1xf32> to vector<2x32xf32>
    %423 = arith.mulf %418, %422 : vector<2x32xf32>
    %424 = vector.broadcast %404 : vector<1x32xf32> to vector<2x32xf32>
    %425 = arith.mulf %423, %424 : vector<2x32xf32>
    %426 = vector.broadcast %405 : vector<1x32xf32> to vector<2x32xf32>
    %427 = arith.addf %425, %426 : vector<2x32xf32>
    %c0_194 = arith.constant 0 : index
    %c0_195 = arith.constant 0 : index
    %428 = vector.load %arg21[%c0_194, %c0_195] : memref<32x64xf32, #tpu.memory_space<vmem>>, vector<32x64xf32>
    %cst_196 = arith.constant dense<0.000000e+00> : vector<2x64xf32>
    %429 = tpu.matmul %427, %428, %cst_196 {dimension_numbers = #tpu.dot_dimension_numbers<[1], [0], [0], [1], [0, 0, 1, 1], [], []>} : vector<2x32xf32>, vector<32x64xf32>, vector<2x64xf32> -> vector<2x64xf32>
    %c0_197 = arith.constant 0 : index
    %c0_198 = arith.constant 0 : index
    %430 = vector.load %arg22[%c0_197, %c0_198] : memref<1x64xf32, #tpu.memory_space<vmem>>, vector<1x64xf32>
    %431 = vector.broadcast %430 : vector<1x64xf32> to vector<2x64xf32>
    %432 = arith.addf %429, %431 : vector<2x64xf32>
    %cst_199 = arith.constant 5.000000e-01 : f32
    %433 = vector.broadcast %cst_199 : f32 to vector<2x64xf32>
    %434 = arith.mulf %433, %432 : vector<2x64xf32>
    %cst_200 = arith.constant 0.707106769 : f32
    %435 = vector.broadcast %cst_200 : f32 to vector<2x64xf32>
    %436 = arith.mulf %432, %435 : vector<2x64xf32>
    %437 = math.erf %436 : vector<2x64xf32>
    %cst_201 = arith.constant 1.000000e+00 : f32
    %438 = vector.broadcast %cst_201 : f32 to vector<2x64xf32>
    %439 = arith.addf %438, %437 : vector<2x64xf32>
    %440 = arith.mulf %434, %439 : vector<2x64xf32>
    %c0_202 = arith.constant 0 : index
    %c0_203 = arith.constant 0 : index
    %441 = vector.load %arg23[%c0_202, %c0_203] : memref<64x12xf32, #tpu.memory_space<vmem>>, vector<64x12xf32>
    %cst_204 = arith.constant dense<0.000000e+00> : vector<2x12xf32>
    %442 = tpu.matmul %440, %441, %cst_204 {dimension_numbers = #tpu.dot_dimension_numbers<[1], [0], [0], [1], [0, 0, 1, 1], [], []>} : vector<2x64xf32>, vector<64x12xf32>, vector<2x12xf32> -> vector<2x12xf32>
    %c0_205 = arith.constant 0 : index
    %c0_206 = arith.constant 0 : index
    %443 = vector.load %arg24[%c0_205, %c0_206] : memref<1x12xf32, #tpu.memory_space<vmem>>, vector<1x12xf32>
    %444 = vector.broadcast %443 : vector<1x12xf32> to vector<2x12xf32>
    %445 = arith.addf %442, %444 : vector<2x12xf32>
    %c0_207 = arith.constant 0 : index
    %c0_208 = arith.constant 0 : index
    %446 = vector.load %arg25[%c0_207, %c0_208] : memref<2x12xf32, #tpu.memory_space<vmem>>, vector<2x12xf32>
    tpu.vector_store %arg25[%c0_207, %c0_208], %445 {strides = array<i32>} : memref<2x12xf32, #tpu.memory_space<vmem>>, vector<2x12xf32>,
    return
  }
  func.func @transform_0(%arg0: i32) -> (i32, i32, i32) {
    %c0_i32 = arith.constant 0 : i32
    %c0_i32_0 = arith.constant 0 : i32
    %c0_i32_1 = arith.constant 0 : i32
    %c0_i32_2 = arith.constant 0 : i32
    return %c0_i32, %c0_i32_0, %c0_i32_1 : i32, i32, i32
  }
  func.func @transform_1(%arg0: i32) -> (i32, i32, i32) {
    %c0_i32 = arith.constant 0 : i32
    %c0_i32_0 = arith.constant 0 : i32
    %c0_i32_1 = arith.constant 0 : i32
    %c0_i32_2 = arith.constant 0 : i32
    return %c0_i32, %c0_i32_0, %c0_i32_1 : i32, i32, i32
  }
  func.func @transform_2(%arg0: i32) -> (i32, i32, i32) {
    %c0_i32 = arith.constant 0 : i32
    %c0_i32_0 = arith.constant 0 : i32
    %c0_i32_1 = arith.constant 0 : i32
    %c0_i32_2 = arith.constant 0 : i32
    return %c0_i32, %c0_i32_0, %c0_i32_1 : i32, i32, i32
  }
  func.func @transform_3(%arg0: i32) -> (i32, i32, i32) {
    %c0_i32 = arith.constant 0 : i32
    %c0_i32_0 = arith.constant 0 : i32
    %c0_i32_1 = arith.constant 0 : i32
    %c0_i32_2 = arith.constant 0 : i32
    return %c0_i32, %c0_i32_0, %c0_i32_1 : i32, i32, i32
  }
  func.func @transform_4(%arg0: i32) -> (i32, i32, i32) {
    %c0_i32 = arith.constant 0 : i32
    %c0_i32_0 = arith.constant 0 : i32
    %c0_i32_1 = arith.constant 0 : i32
    %c0_i32_2 = arith.constant 0 : i32
    return %c0_i32, %c0_i32_0, %c0_i32_1 : i32, i32, i32
  }
  func.func @transform_5(%arg0: i32) -> (i32, i32, i32) {
    %c0_i32 = arith.constant 0 : i32
    %c0_i32_0 = arith.constant 0 : i32
    %c0_i32_1 = arith.constant 0 : i32
    %c0_i32_2 = arith.constant 0 : i32
    return %c0_i32, %c0_i32_0, %c0_i32_1 : i32, i32, i32
  }
  func.func @transform_6(%arg0: i32) -> (i32, i32, i32) {
    %c0_i32 = arith.constant 0 : i32
    %c0_i32_0 = arith.constant 0 : i32
    %c0_i32_1 = arith.constant 0 : i32
    %c0_i32_2 = arith.constant 0 : i32
    return %c0_i32, %c0_i32_0, %c0_i32_1 : i32, i32, i32
  }
  func.func @transform_7(%arg0: i32) -> (i32, i32, i32) {
    %c0_i32 = arith.constant 0 : i32
    %c0_i32_0 = arith.constant 0 : i32
    %c0_i32_1 = arith.constant 0 : i32
    %c0_i32_2 = arith.constant 0 : i32
    return %c0_i32, %c0_i32_0, %c0_i32_1 : i32, i32, i32
  }
  func.func @transform_8(%arg0: i32) -> (i32, i32, i32) {
    %c0_i32 = arith.constant 0 : i32
    %c0_i32_0 = arith.constant 0 : i32
    %c0_i32_1 = arith.constant 0 : i32
    %c0_i32_2 = arith.constant 0 : i32
    return %c0_i32, %c0_i32_0, %c0_i32_1 : i32, i32, i32
  }
  func.func @transform_9(%arg0: i32) -> (i32, i32, i32) {
    %c0_i32 = arith.constant 0 : i32
    %c0_i32_0 = arith.constant 0 : i32
    %c0_i32_1 = arith.constant 0 : i32
    %c0_i32_2 = arith.constant 0 : i32
    return %c0_i32, %c0_i32_0, %c0_i32_1 : i32, i32, i32
  }
  func.func @transform_10(%arg0: i32) -> (i32, i32, i32) {
    %c0_i32 = arith.constant 0 : i32
    %c0_i32_0 = arith.constant 0 : i32
    %c0_i32_1 = arith.constant 0 : i32
    %c0_i32_2 = arith.constant 0 : i32
    return %c0_i32, %c0_i32_0, %c0_i32_1 : i32, i32, i32
  }
  func.func @transform_11(%arg0: i32) -> (i32, i32, i32) {
    %c0_i32 = arith.constant 0 : i32
    %c0_i32_0 = arith.constant 0 : i32
    %c0_i32_1 = arith.constant 0 : i32
    %c0_i32_2 = arith.constant 0 : i32
    return %c0_i32, %c0_i32_0, %c0_i32_1 : i32, i32, i32
  }
  func.func @transform_12(%arg0: i32) -> (i32, i32, i32) {
    %c0_i32 = arith.constant 0 : i32
    %c0_i32_0 = arith.constant 0 : i32
    %c0_i32_1 = arith.constant 0 : i32
    %c0_i32_2 = arith.constant 0 : i32
    return %c0_i32, %c0_i32_0, %c0_i32_1 : i32, i32, i32
  }
  func.func @transform_13(%arg0: i32) -> (i32, i32, i32) {
    %c0_i32 = arith.constant 0 : i32
    %c0_i32_0 = arith.constant 0 : i32
    %c0_i32_1 = arith.constant 0 : i32
    %c0_i32_2 = arith.constant 0 : i32
    return %c0_i32, %c0_i32_0, %c0_i32_1 : i32, i32, i32
  }
  func.func @transform_14(%arg0: i32) -> (i32, i32, i32) {
    %c0_i32 = arith.constant 0 : i32
    %c0_i32_0 = arith.constant 0 : i32
    %c0_i32_1 = arith.constant 0 : i32
    %c0_i32_2 = arith.constant 0 : i32
    return %c0_i32, %c0_i32_0, %c0_i32_1 : i32, i32, i32
  }
  func.func @transform_15(%arg0: i32) -> (i32, i32, i32) {
    %c0_i32 = arith.constant 0 : i32
    %c0_i32_0 = arith.constant 0 : i32
    %c0_i32_1 = arith.constant 0 : i32
    %c0_i32_2 = arith.constant 0 : i32
    return %c0_i32, %c0_i32_0, %c0_i32_1 : i32, i32, i32
  }
  func.func @transform_16(%arg0: i32) -> (i32, i32, i32) {
    %c0_i32 = arith.constant 0 : i32
    %c0_i32_0 = arith.constant 0 : i32
    %c0_i32_1 = arith.constant 0 : i32
    %c0_i32_2 = arith.constant 0 : i32
    return %c0_i32, %c0_i32_0, %c0_i32_1 : i32, i32, i32
  }
  func.func @transform_17(%arg0: i32) -> (i32, i32, i32) {
    %c0_i32 = arith.constant 0 : i32
    %c0_i32_0 = arith.constant 0 : i32
    %c0_i32_1 = arith.constant 0 : i32
    %c0_i32_2 = arith.constant 0 : i32
    return %c0_i32, %c0_i32_0, %c0_i32_1 : i32, i32, i32
  }
  func.func @transform_18(%arg0: i32) -> (i32, i32) {
    %c0_i32 = arith.constant 0 : i32
    %c0_i32_0 = arith.constant 0 : i32
    %c0_i32_1 = arith.constant 0 : i32
    return %c0_i32, %c0_i32_0 : i32, i32
  }
  func.func @transform_19(%arg0: i32) -> (i32, i32) {
    %c0_i32 = arith.constant 0 : i32
    %c0_i32_0 = arith.constant 0 : i32
    %c0_i32_1 = arith.constant 0 : i32
    return %c0_i32, %c0_i32_0 : i32, i32
  }
  func.func @transform_20(%arg0: i32) -> (i32, i32) {
    %c0_i32 = arith.constant 0 : i32
    %c0_i32_0 = arith.constant 0 : i32
    %c0_i32_1 = arith.constant 0 : i32
    return %c0_i32, %c0_i32_0 : i32, i32
  }
  func.func @transform_21(%arg0: i32) -> (i32, i32) {
    %c0_i32 = arith.constant 0 : i32
    %c0_i32_0 = arith.constant 0 : i32
    %c0_i32_1 = arith.constant 0 : i32
    return %c0_i32, %c0_i32_0 : i32, i32
  }
  func.func @transform_22(%arg0: i32) -> (i32, i32) {
    %c0_i32 = arith.constant 0 : i32
    %c0_i32_0 = arith.constant 0 : i32
    %c0_i32_1 = arith.constant 0 : i32
    return %c0_i32, %c0_i32_0 : i32, i32
  }
  func.func @transform_23(%arg0: i32) -> (i32, i32) {
    %c0_i32 = arith.constant 0 : i32
    %c0_i32_0 = arith.constant 0 : i32
    %c0_i32_1 = arith.constant 0 : i32
    return %c0_i32, %c0_i32_0 : i32, i32
  }
  func.func @transform_24(%arg0: i32) -> (i32, i32) {
    %c0_i32 = arith.constant 0 : i32
    %c0_i32_0 = arith.constant 0 : i32
    %c0_i32_1 = arith.constant 0 : i32
    return %c0_i32, %c0_i32_0 : i32, i32
  }
}

</mosaic_0001>

<llo_original>
// kernel: tpu_custom_call.1
$region0: #{tpu_custom_call.1}
  #allocation0 [shape = 'u32[]', space=smem, size = 0x4, offset = 0x4, fixed_abs, tag = 'smem constant byte address 0x4 - core index']
  #allocation1 [shape = 'u32[144,128]{1,0:T(1,128)}', space=vmem, size = 0x12000, scoped, tag = 'internal scratch']
  %s0 = inlined_call_operand.vmem [shape: f32[2,8,32], index: 0, kind: input, shape index: {}]
  %s1 = inlined_call_operand.vmem [shape: f32[2,1,8], index: 1, kind: input, shape index: {}]
  %s2 = inlined_call_operand.vmem [shape: f32[2,1,32], index: 2, kind: input, shape index: {}]
  %s3 = inlined_call_operand.hbm [shape: f32[2,1,32], index: 3, kind: input, shape index: {}]
  %s4 = inlined_call_operand.vmem [shape: f32[2,32,32], index: 4, kind: input, shape index: {}]
  %s5 = inlined_call_operand.hbm [shape: f32[2,1,32], index: 5, kind: input, shape index: {}]
  %s6 = inlined_call_operand.vmem [shape: f32[2,32,32], index: 6, kind: input, shape index: {}]
  %s7 = inlined_call_operand.hbm [shape: f32[2,1,32], index: 7, kind: input, shape index: {}]
  %s8 = inlined_call_operand.vmem [shape: f32[2,32,32], index: 8, kind: input, shape index: {}]
  %s9 = inlined_call_operand.hbm [shape: f32[2,1,32], index: 9, kind: input, shape index: {}]
  %s10 = inlined_call_operand.vmem [shape: f32[2,32,32], index: 10, kind: input, shape index: {}]
  %s11 = inlined_call_operand.hbm [shape: f32[2,1,32], index: 11, kind: input, shape index: {}]
  %s12 = inlined_call_operand.hbm [shape: f32[2,1,32], index: 12, kind: input, shape index: {}]
  %s13 = inlined_call_operand.hbm [shape: f32[2,1,32], index: 13, kind: input, shape index: {}]
  %s14 = inlined_call_operand.vmem [shape: f32[2,32,128], index: 14, kind: input, shape index: {}]
  %s15 = inlined_call_operand.hbm [shape: f32[2,1,128], index: 15, kind: input, shape index: {}]
  %s16 = inlined_call_operand.vmem [shape: f32[2,128,32], index: 16, kind: input, shape index: {}]
  %s17 = inlined_call_operand.vmem [shape: f32[2,1,32], index: 17, kind: input, shape index: {}]
  %s18 = inlined_call_operand.vmem [shape: f32[1,32], index: 18, kind: input, shape index: {}]
  %s19 = inlined_call_operand.vmem [shape: f32[1,32], index: 19, kind: input, shape index: {}]
  %s20 = inlined_call_operand.vmem [shape: f32[32,64], index: 20, kind: input, shape index: {}]
  %s21 = inlined_call_operand.vmem [shape: f32[1,64], index: 21, kind: input, shape index: {}]
  %s22 = inlined_call_operand.vmem [shape: f32[64,12], index: 22, kind: input, shape index: {}]
  %s23 = inlined_call_operand.vmem [shape: f32[1,12], index: 23, kind: input, shape index: {}]
  %s24 = inlined_call_operand.hbm [shape: f32[2,12], index: 24, kind: output, shape index: {}]
  %s25 = sld [smem:[#allocation0]]
  $region138: #{tpu_custom_call.1} parent=0
    _
  %s27 = ssub.s32 1, %s25
  %s28 = scalar_select 0, %s27, %s25
  $region1: #{tpu_custom_call.1} parent=0
    #allocation2 [shape = 'u8[1024]{0}', space=vmem, size = 0x400, scoped, tag = 'input window, operand 3, single buffered']
    #allocation3 [shape = 's32[1]{0}', space=sflag, size = 0x4, scoped, tag = 'scoped memory for tpu_custom_call.1']
    #allocation4 [shape = 's32[1]{0}', space=sflag, size = 0x4, scoped, tag = 'scoped memory for tpu_custom_call.1']
    #allocation5 [shape = 'u8[1024]{0}', space=vmem, size = 0x400, scoped, tag = 'input window, operand 5, single buffered']
    #allocation6 [shape = 's32[1]{0}', space=sflag, size = 0x4, scoped, tag = 'scoped memory for tpu_custom_call.1']
    #allocation7 [shape = 'u8[1024]{0}', space=vmem, size = 0x400, scoped, tag = 'input window, operand 7, single buffered']
    #allocation8 [shape = 'u8[1024]{0}', space=vmem, size = 0x400, scoped, tag = 'input window, operand 9, single buffered']
    #allocation9 [shape = 's32[1]{0}', space=sflag, size = 0x4, scoped, tag = 'scoped memory for tpu_custom_call.1']
    #allocation10 [shape = 'u8[1024]{0}', space=vmem, size = 0x400, scoped, tag = 'input window, operand 11, single buffered']
    #allocation11 [shape = 'u8[1024]{0}', space=vmem, size = 0x400, scoped, tag = 'input window, operand 12, single buffered']
    #allocation12 [shape = 's32[1]{0}', space=sflag, size = 0x4, scoped, tag = 'scoped memory for tpu_custom_call.1']
    #allocation13 [shape = 'u8[1024]{0}', space=vmem, size = 0x400, scoped, tag = 'input window, operand 13, single buffered']
    #allocation14 [shape = 'u8[1024]{0}', space=vmem, size = 0x400, scoped, tag = 'input window, operand 15, single buffered']
    #allocation15 [shape = 's32[1]{0}', space=sflag, size = 0x4, scoped, tag = 'scoped memory for tpu_custom_call.1']
    #allocation16 [shape = 'u8[1024]{0}', space=vmem, size = 0x400, scoped, tag = 'output window, operand 0, single buffered']
    %29 = vsyncpa [#allocation3], 0
    %30 = vsyncpa [#allocation6], 0
    %31 = vsyncpa [#allocation9], 0
    %32 = vsyncpa [#allocation12], 0
    %33 = vsyncpa [#allocation15], 0
    %34 = vsyncpa [#allocation4], 0
    // Predicated region
    $region2: #{tpu_custom_call.1} parent=1 // pred_check
      _
    $region3: #{tpu_custom_call.1} parent=1 // pred_check_branch
      %36 = sbr.rel (0) target = $region5
    $region4: #{tpu_custom_call.1} parent=1 // pred_region
      _
    $region5: #{tpu_custom_call.1} parent=1 // pred_fallthru
      _
    // Predicated region
    $region6: #{tpu_custom_call.1} parent=1 // pred_check
      _
    $region7: #{tpu_custom_call.1} parent=1 // pred_check_branch
      %38 = sbr.rel (0) target = $region9
    $region8: #{tpu_custom_call.1} parent=1 // pred_region
      _
    $region9: #{tpu_custom_call.1} parent=1 // pred_fallthru
      _
    // Predicated region
    $region10: #{tpu_custom_call.1} parent=1 // pred_check
      _
    $region11: #{tpu_custom_call.1} parent=1 // pred_check_branch
      %40 = sbr.rel (0) target = $region13
    $region12: #{tpu_custom_call.1} parent=1 // pred_region
      _
    $region13: #{tpu_custom_call.1} parent=1 // pred_fallthru
      _
    // Predicated region
    $region14: #{tpu_custom_call.1} parent=1 // pred_check
      _
    $region15: #{tpu_custom_call.1} parent=1 // pred_check_branch
      %42 = sbr.rel (0) target = $region17
    $region16: #{tpu_custom_call.1} parent=1 // pred_region
      %s44 = ssub.s32 32, 32
      %45 = vsyncadd [#allocation3], %s44
      %s46 = sshll.u32 [#allocation2], 4
      %s47 = int_to_ptr.vmem [resolvable:$true] %s46
      %52 = dma.hbm_to_vmem [thread:$0]  %s3, 32, %s47, [#allocation3], 16, 16, 1
    $region17: #{tpu_custom_call.1} parent=1 // pred_fallthru
      _
    // Predicated region
    $region18: #{tpu_custom_call.1} parent=1 // pred_check
      _
    $region19: #{tpu_custom_call.1} parent=1 // pred_check_branch
      %54 = sbr.rel (0) target = $region21
    $region20: #{tpu_custom_call.1} parent=1 // pred_region
      _
    $region21: #{tpu_custom_call.1} parent=1 // pred_fallthru
      _
    // Predicated region
    $region22: #{tpu_custom_call.1} parent=1 // pred_check
      _
    $region23: #{tpu_custom_call.1} parent=1 // pred_check_branch
      %56 = sbr.rel (0) target = $region25
    $region24: #{tpu_custom_call.1} parent=1 // pred_region
      %s58 = ssub.s32 32, 32
      %59 = vsyncadd [#allocation6], %s58
      %s60 = sshll.u32 [#allocation5], 4
      %s61 = int_to_ptr.vmem [resolvable:$true] %s60
      %66 = dma.hbm_to_vmem [thread:$0]  %s5, 32, %s61, [#allocation6], 16, 16, 1
    $region25: #{tpu_custom_call.1} parent=1 // pred_fallthru
      _
    // Predicated region
    $region26: #{tpu_custom_call.1} parent=1 // pred_check
      _
    $region27: #{tpu_custom_call.1} parent=1 // pred_check_branch
      %68 = sbr.rel (0) target = $region29
    $region28: #{tpu_custom_call.1} parent=1 // pred_region
      _
    $region29: #{tpu_custom_call.1} parent=1 // pred_fallthru
      _
    // Predicated region
    $region30: #{tpu_custom_call.1} parent=1 // pred_check
      _
    $region31: #{tpu_custom_call.1} parent=1 // pred_check_branch
      %70 = sbr.rel (0) target = $region33
    $region32: #{tpu_custom_call.1} parent=1 // pred_region
      %s72 = ssub.s32 32, 32
      %73 = vsyncadd [#allocation6], %s72
      %s74 = sshll.u32 [#allocation7], 4
      %s75 = int_to_ptr.vmem [resolvable:$true] %s74
      %80 = dma.hbm_to_vmem [thread:$0]  %s7, 32, %s75, [#allocation6], 16, 16, 1
    $region33: #{tpu_custom_call.1} parent=1 // pred_fallthru
      _
    // Predicated region
    $region34: #{tpu_custom_call.1} parent=1 // pred_check
      _
    $region35: #{tpu_custom_call.1} parent=1 // pred_check_branch
      %82 = sbr.rel (0) target = $region37
    $region36: #{tpu_custom_call.1} parent=1 // pred_region
      _
    $region37: #{tpu_custom_call.1} parent=1 // pred_fallthru
      _
    // Predicated region
    $region38: #{tpu_custom_call.1} parent=1 // pred_check
      _
    $region39: #{tpu_custom_call.1} parent=1 // pred_check_branch
      %84 = sbr.rel (0) target = $region41
    $region40: #{tpu_custom_call.1} parent=1 // pred_region
      %s86 = ssub.s32 32, 32
      %87 = vsyncadd [#allocation9], %s86
      %s88 = sshll.u32 [#allocation8], 4
      %s89 = int_to_ptr.vmem [resolvable:$true] %s88
      %94 = dma.hbm_to_vmem [thread:$0]  %s9, 32, %s89, [#allocation9], 16, 16, 1
    $region41: #{tpu_custom_call.1} parent=1 // pred_fallthru
      _
    // Predicated region
    $region42: #{tpu_custom_call.1} parent=1 // pred_check
      _
    $region43: #{tpu_custom_call.1} parent=1 // pred_check_branch
      %96 = sbr.rel (0) target = $region45
    $region44: #{tpu_custom_call.1} parent=1 // pred_region
      _
    $region45: #{tpu_custom_call.1} parent=1 // pred_fallthru
      _
    // Predicated region
    $region46: #{tpu_custom_call.1} parent=1 // pred_check
      _
    $region47: #{tpu_custom_call.1} parent=1 // pred_check_branch
      %98 = sbr.rel (0) target = $region49
    $region48: #{tpu_custom_call.1} parent=1 // pred_region
      %s100 = ssub.s32 32, 32
      %101 = vsyncadd [#allocation9], %s100
      %s102 = sshll.u32 [#allocation10], 4
      %s103 = int_to_ptr.vmem [resolvable:$true] %s102
      %108 = dma.hbm_to_vmem [thread:$0]  %s11, 32, %s103, [#allocation9], 16, 16, 1
    $region49: #{tpu_custom_call.1} parent=1 // pred_fallthru
      _
    // Predicated region
    $region50: #{tpu_custom_call.1} parent=1 // pred_check
      _
    $region51: #{tpu_custom_call.1} parent=1 // pred_check_branch
      %110 = sbr.rel (0) target = $region53
    $region52: #{tpu_custom_call.1} parent=1 // pred_region
      %s112 = ssub.s32 32, 32
      %113 = vsyncadd [#allocation12], %s112
      %s114 = sshll.u32 [#allocation11], 4
      %s115 = int_to_ptr.vmem [resolvable:$true] %s114
      %120 = dma.hbm_to_vmem [thread:$0]  %s12, 32, %s115, [#allocation12], 16, 16, 1
    $region53: #{tpu_custom_call.1} parent=1 // pred_fallthru
      _
    // Predicated region
    $region54: #{tpu_custom_call.1} parent=1 // pred_check
      _
    $region55: #{tpu_custom_call.1} parent=1 // pred_check_branch
      %122 = sbr.rel (0) target = $region57
    $region56: #{tpu_custom_call.1} parent=1 // pred_region
      %s124 = ssub.s32 32, 32
      %125 = vsyncadd [#allocation12], %s124
      %s126 = sshll.u32 [#allocation13], 4
      %s127 = int_to_ptr.vmem [resolvable:$true] %s126
      %132 = dma.hbm_to_vmem [thread:$0]  %s13, 32, %s127, [#allocation12], 16, 16, 1
    $region57: #{tpu_custom_call.1} parent=1 // pred_fallthru
      _
    // Predicated region
    $region58: #{tpu_custom_call.1} parent=1 // pred_check
      _
    $region59: #{tpu_custom_call.1} parent=1 // pred_check_branch
      %134 = sbr.rel (0) target = $region61
    $region60: #{tpu_custom_call.1} parent=1 // pred_region
      _
    $region61: #{tpu_custom_call.1} parent=1 // pred_fallthru
      _
    // Predicated region
    $region62: #{tpu_custom_call.1} parent=1 // pred_check
      _
    $region63: #{tpu_custom_call.1} parent=1 // pred_check_branch
      %136 = sbr.rel (0) target = $region65
    $region64: #{tpu_custom_call.1} parent=1 // pred_region
      %s138 = ssub.s32 32, 32
      %139 = vsyncadd [#allocation15], %s138
      %s140 = sshll.u32 [#allocation14], 4
      %s141 = int_to_ptr.vmem [resolvable:$true] %s140
      %146 = dma.hbm_to_vmem [thread:$0]  %s15, 32, %s141, [#allocation15], 16, 16, 1
    $region65: #{tpu_custom_call.1} parent=1 // pred_fallthru
      _
    // Predicated region
    $region66: #{tpu_custom_call.1} parent=1 // pred_check
      _
    $region67: #{tpu_custom_call.1} parent=1 // pred_check_branch
      %148 = sbr.rel (0) target = $region69
    $region68: #{tpu_custom_call.1} parent=1 // pred_region
      _
    $region69: #{tpu_custom_call.1} parent=1 // pred_fallthru
      _
    // Predicated region
    $region70: #{tpu_custom_call.1} parent=1 // pred_check
      _
    $region71: #{tpu_custom_call.1} parent=1 // pred_check_branch
      %150 = sbr.rel (0) target = $region73
    $region72: #{tpu_custom_call.1} parent=1 // pred_region
      _
    $region73: #{tpu_custom_call.1} parent=1 // pred_fallthru
      _
    // Predicated region
    $region74: #{tpu_custom_call.1} parent=1 // pred_check
      _
    $region75: #{tpu_custom_call.1} parent=1 // pred_check_branch
      %152 = sbr.rel (0) target = $region77
    $region76: #{tpu_custom_call.1} parent=1 // pred_region
      _
    $region77: #{tpu_custom_call.1} parent=1 // pred_fallthru
      _
    // Predicated region
    $region78: #{tpu_custom_call.1} parent=1 // pred_check
      _
    $region79: #{tpu_custom_call.1} parent=1 // pred_check_branch
      %154 = sbr.rel (0) target = $region81
    $region80: #{tpu_custom_call.1} parent=1 // pred_region
      _
    $region81: #{tpu_custom_call.1} parent=1 // pred_fallthru
      _
    // Predicated region
    $region82: #{tpu_custom_call.1} parent=1 // pred_check
      _
    $region83: #{tpu_custom_call.1} parent=1 // pred_check_branch
      %156 = sbr.rel (0) target = $region85
    $region84: #{tpu_custom_call.1} parent=1 // pred_region
      _
    $region85: #{tpu_custom_call.1} parent=1 // pred_fallthru
      _
    // Predicated region
    $region86: #{tpu_custom_call.1} parent=1 // pred_check
      _
    $region87: #{tpu_custom_call.1} parent=1 // pred_check_branch
      %158 = sbr.rel (0) target = $region89
    $region88: #{tpu_custom_call.1} parent=1 // pred_region
      _
    $region89: #{tpu_custom_call.1} parent=1 // pred_fallthru
      _
    // Predicated region
    $region90: #{tpu_custom_call.1} parent=1 // pred_check
      _
    $region91: #{tpu_custom_call.1} parent=1 // pred_check_branch
      %160 = sbr.rel (0) target = $region93
    $region92: #{tpu_custom_call.1} parent=1 // pred_region
      _
    $region93: #{tpu_custom_call.1} parent=1 // pred_fallthru
      _
    // Predicated region
    $region94: #{tpu_custom_call.1} parent=1 // pred_check
      _
    $region95: #{tpu_custom_call.1} parent=1 // pred_check_branch
      %162 = sbr.rel (0) target = $region97
    $region96: #{tpu_custom_call.1} parent=1 // pred_region
      _
    $region97: #{tpu_custom_call.1} parent=1 // pred_fallthru
      _
    // Predicated region
    $region98: #{tpu_custom_call.1} parent=1 // pred_check
      _
    $region99: #{tpu_custom_call.1} parent=1 // pred_check_branch
      %164 = sbr.rel (0) target = $region101
    $region100: #{tpu_custom_call.1} parent=1 // pred_region
      %165 = dma.done [#allocation3], 32
    $region101: #{tpu_custom_call.1} parent=1 // pred_fallthru
      _
    // Predicated region
    $region102: #{tpu_custom_call.1} parent=1 // pred_check
      _
    $region103: #{tpu_custom_call.1} parent=1 // pred_check_branch
      %167 = sbr.rel (0) target = $region105
    $region104: #{tpu_custom_call.1} parent=1 // pred_region
      %168 = dma.done [#allocation6], 32
    $region105: #{tpu_custom_call.1} parent=1 // pred_fallthru
      _
    // Predicated region
    $region106: #{tpu_custom_call.1} parent=1 // pred_check
      _
    $region107: #{tpu_custom_call.1} parent=1 // pred_check_branch
      %170 = sbr.rel (0) target = $region109
    $region108: #{tpu_custom_call.1} parent=1 // pred_region
      %171 = dma.done [#allocation6], 32
    $region109: #{tpu_custom_call.1} parent=1 // pred_fallthru
      _
    // Predicated region
    $region110: #{tpu_custom_call.1} parent=1 // pred_check
      _
    $region111: #{tpu_custom_call.1} parent=1 // pred_check_branch
      %173 = sbr.rel (0) target = $region113
    $region112: #{tpu_custom_call.1} parent=1 // pred_region
      %174 = dma.done [#allocation9], 32
    $region113: #{tpu_custom_call.1} parent=1 // pred_fallthru
      _
    // Predicated region
    $region114: #{tpu_custom_call.1} parent=1 // pred_check
      _
    $region115: #{tpu_custom_call.1} parent=1 // pred_check_branch
      %176 = sbr.rel (0) target = $region117
    $region116: #{tpu_custom_call.1} parent=1 // pred_region
      %177 = dma.done [#allocation9], 32
    $region117: #{tpu_custom_call.1} parent=1 // pred_fallthru
      _
    // Predicated region
    $region118: #{tpu_custom_call.1} parent=1 // pred_check
      _
    $region119: #{tpu_custom_call.1} parent=1 // pred_check_branch
      %179 = sbr.rel (0) target = $region121
    $region120: #{tpu_custom_call.1} parent=1 // pred_region
      %180 = dma.done [#allocation12], 32
    $region121: #{tpu_custom_call.1} parent=1 // pred_fallthru
      _
    // Predicated region
    $region122: #{tpu_custom_call.1} parent=1 // pred_check
      _
    $region123: #{tpu_custom_call.1} parent=1 // pred_check_branch
      %182 = sbr.rel (0) target = $region125
    $region124: #{tpu_custom_call.1} parent=1 // pred_region
      %183 = dma.done [#allocation12], 32
    $region125: #{tpu_custom_call.1} parent=1 // pred_fallthru
      _
    // Predicated region
    $region126: #{tpu_custom_call.1} parent=1 // pred_check
      _
    $region127: #{tpu_custom_call.1} parent=1 // pred_check_branch
      %185 = sbr.rel (0) target = $region129
    $region128: #{tpu_custom_call.1} parent=1 // pred_region
      %186 = dma.done [#allocation15], 32
    $region129: #{tpu_custom_call.1} parent=1 // pred_fallthru
      _
    %v187 = vld [vmem:[%s0] sm:$0xff]
    %v188 = vld [vmem:[%s0 + $0x8] sm:$0xff]
    %v189 = vld [vmem:[%s1] sm:$0x1]
    %v190 = vld [vmem:[%s1 + $0x1] sm:$0x1]
    %v191 = vld [vmem:[%s2] sm:$0x1]
    %v192 = vld [vmem:[#allocation2] sm:$0x1]
    %vm193 = vcmask 261120
    %v194 = vsel %vm193, %v187, 0.0
    %195 = vadd.xlane.f32.xlu0 %v194
    %v196 = vpop.xlane.xlu0 %195
    %v197 = vsel %vm193, %v188, 0.0
    %198 = vadd.xlane.f32.xlu0 %v197
    %v199 = vpop.xlane.xlu0 %198
    %v200 = vrcp.pop 32.0
    %v201 = vmul.f32 %v196, %v200
    %v202 = vmul.f32 %v199, %v200
    %v203 = vsub.f32 %v187, %v201
    %v204 = vsub.f32 %v188, %v202
    %v205 = vmul.f32 %v203, %v203
    %v206 = vmul.f32 %v204, %v204
    %v207 = vsel %vm193, %v205, 0.0
    %208 = vadd.xlane.f32.xlu0 %v207
    %v209 = vpop.xlane.xlu0 %208
    %v210 = vsel %vm193, %v206, 0.0
    %211 = vadd.xlane.f32.xlu0 %v210
    %v212 = vpop.xlane.xlu0 %211
    %v213 = vmul.f32 %v209, %v200
    %v214 = vmul.f32 %v212, %v200
    %v215 = vadd.f32 %v213, 1e-05
    %v216 = vadd.f32 %v214, 1e-05
    %v217 = vrsqrt.pop %v215
    %v218 = vrsqrt.pop %v216
    %v219 = vmul.f32 %v203, %v217
    %v220 = vmul.f32 %v204, %v218
    %v222 = vlaneseq
    %v223 = vshrl.u32 %v222, 7
    %v224 = vsub.s32 0, %v223
    %v225 = vrot.slane %v191, %v224
    %v227 = vmul.f32 %v219, %v225
    %v228 = vmul.f32 %v220, %v225
    %v230 = vlaneseq
    %v231 = vshrl.u32 %v230, 7
    %v232 = vsub.s32 0, %v231
    %v233 = vrot.slane %v192, %v232
    %v235 = vadd.f32 %v227, %v233
    %v236 = vadd.f32 %v228, %v233
    %v237 = vld [vmem:[%s4] sm:$0xff]
    %v238 = vld [vmem:[%s4 + $0x8] sm:$0xff]
    %v239 = vld [vmem:[%s4 + $0x10] sm:$0xff]
    %v240 = vld [vmem:[%s4 + $0x18] sm:$0xff]
    %v241 = vld [vmem:[#allocation5] sm:$0x1]
    %v243 = vlaneseq
    %v244 = vshrl.u32 %v243, 7
    %v245 = vsub.s32 0, %v244
    %v246 = vrot.slane %v241, %v245
    %v249 = vsel %vm193, %v235, 0
    %v252 = vsel %vm193, %v236, 0
    %254 = vmatprep.subr.mxu0 0.0
    %255 = vmatpush1.msra.mxu0 %v237
    %256 = vmatprep.subr.mxu0 0.0
    %257 = vmatpush1.msra.mxu0 %v238
    %258 = vmatprep.subr.mxu0 0.0
    %259 = vmatpush1.msra.mxu0 %v239
    %260 = vmatprep.subr.mxu0 0.0
    %261 = vmatpush1.msra.mxu0 %v240
    %262 = vmatprep.subr.mxu0 0.0
    %263 = vmatpush1.msra.mxu0 0.0
    %264 = vmatprep.subr.mxu0 0.0
    %265 = vmatpush1.msra.mxu0 0.0
    %266 = vmatprep.subr.mxu0 0.0
    %267 = vmatpush1.msra.mxu0 0.0
    %268 = vmatprep.subr.mxu0 0.0
    %269 = vmatpush1.msra.mxu0 0.0
    %270 = vmatprep.subr.mxu0 0.0
    %271 = vmatpush1.msra.mxu0 0.0
    %272 = vmatprep.subr.mxu0 0.0
    %273 = vmatpush1.msra.mxu0 0.0
    %274 = vmatprep.subr.mxu0 0.0
    %275 = vmatpush1.msra.mxu0 0.0
    %276 = vmatprep.subr.mxu0 0.0
    %277 = vmatpush1.msra.mxu0 0.0
    %278 = vmatprep.subr.mxu0 0.0
    %279 = vmatpush1.msra.mxu0 0.0
    %280 = vmatprep.subr.mxu0 0.0
    %281 = vmatpush1.msra.mxu0 0.0
    %282 = vmatprep.subr.mxu0 0.0
    %283 = vmatpush1.msra.mxu0 0.0
    %284 = vmatprep.subr.mxu0 0.0
    %285 = vmatpush1.msra.mxu0 0.0
    %286 = vmatprep.subr.mxu0 0.0
    %287 = vmatpush1.msra.mxu0 0.0
    %288 = vmatprep.subr.mxu0 0.0
    %289 = vmatpush1.msra.mxu0 0.0
    %290 = vmatprep.subr.mxu0 0.0
    %291 = vmatpush1.msra.mxu0 0.0
    %292 = vmatprep.subr.mxu0 0.0
    %293 = vmatpush1.msra.mxu0 0.0
    %294 = vmatprep.subr.mxu0 0.0
    %295 = vmatpush1.msra.mxu0 0.0
    %296 = vmatprep.subr.mxu0 0.0
    %297 = vmatpush1.msra.mxu0 0.0
    %298 = vmatprep.subr.mxu0 0.0
    %299 = vmatpush1.msra.mxu0 0.0
    %300 = vmatprep.subr.mxu0 0.0
    %301 = vmatpush1.msra.mxu0 0.0
    %302 = vmatprep.subr.mxu0 0.0
    %303 = vmatpush1.msra.mxu0 0.0
    %304 = vmatprep.subr.mxu0 0.0
    %305 = vmatpush1.msra.mxu0 0.0
    %306 = vmatprep.subr.mxu0 0.0
    %307 = vmatpush1.msra.mxu0 0.0
    %308 = vmatprep.subr.mxu0 0.0
    %309 = vmatpush1.msra.mxu0 0.0
    %310 = vmatprep.subr.mxu0 0.0
    %311 = vmatpush1.msra.mxu0 0.0
    %312 = vmatprep.subr.mxu0 0.0
    %313 = vmatpush1.msra.mxu0 0.0
    %314 = vmatprep.subr.mxu0 0.0
    %315 = vmatpush1.msra.mxu0 0.0
    %316 = vmatprep.subr.mxu0 0.0
    %317 = vmatpush1.msra.mxu0 0.0
    %318 = vmatprep.mubr.f32.mxu0 0.0
    %319 = vmatmul.mubr.f32.gmra.mrb[0].mxu0 %v249
    %v320 = vpop.f32.mrb[0].mxu0
    %v321 = vadd.f32 %v246, %v320
    %v322 = vpop.f32.mrb[0].mxu0
    %323 = vmatprep.mubr.f32.mxu0 0.0
    %324 = vmatmul.mubr.f32.gmra.mrb[0].mxu0 %v252
    %v325 = vpop.f32.mrb[0].mxu0
    %v326 = vadd.f32 %v246, %v325
    %v327 = vpop.f32.mrb[0].mxu0
    %328 = vdwg.mxu0
    %v329 = vld [vmem:[%s6] sm:$0xff]
    %v330 = vld [vmem:[%s6 + $0x8] sm:$0xff]
    %v331 = vld [vmem:[%s6 + $0x10] sm:$0xff]
    %v332 = vld [vmem:[%s6 + $0x18] sm:$0xff]
    %v333 = vld [vmem:[#allocation7] sm:$0x1]
    %v335 = vlaneseq
    %v336 = vshrl.u32 %v335, 7
    %v337 = vsub.s32 0, %v336
    %v338 = vrot.slane %v333, %v337
    %340 = vmatprep.subr.mxu0 0.0
    %341 = vmatpush1.msra.mxu0 %v329
    %342 = vmatprep.subr.mxu0 0.0
    %343 = vmatpush1.msra.mxu0 %v330
    %344 = vmatprep.subr.mxu0 0.0
    %345 = vmatpush1.msra.mxu0 %v331
    %346 = vmatprep.subr.mxu0 0.0
    %347 = vmatpush1.msra.mxu0 %v332
    %348 = vmatprep.subr.mxu0 0.0
    %349 = vmatpush1.msra.mxu0 0.0
    %350 = vmatprep.subr.mxu0 0.0
    %351 = vmatpush1.msra.mxu0 0.0
    %352 = vmatprep.subr.mxu0 0.0
    %353 = vmatpush1.msra.mxu0 0.0
    %354 = vmatprep.subr.mxu0 0.0
    %355 = vmatpush1.msra.mxu0 0.0
    %356 = vmatprep.subr.mxu0 0.0
    %357 = vmatpush1.msra.mxu0 0.0
    %358 = vmatprep.subr.mxu0 0.0
    %359 = vmatpush1.msra.mxu0 0.0
    %360 = vmatprep.subr.mxu0 0.0
    %361 = vmatpush1.msra.mxu0 0.0
    %362 = vmatprep.subr.mxu0 0.0
    %363 = vmatpush1.msra.mxu0 0.0
    %364 = vmatprep.subr.mxu0 0.0
    %365 = vmatpush1.msra.mxu0 0.0
    %366 = vmatprep.subr.mxu0 0.0
    %367 = vmatpush1.msra.mxu0 0.0
    %368 = vmatprep.subr.mxu0 0.0
    %369 = vmatpush1.msra.mxu0 0.0
    %370 = vmatprep.subr.mxu0 0.0
    %371 = vmatpush1.msra.mxu0 0.0
    %372 = vmatprep.subr.mxu0 0.0
    %373 = vmatpush1.msra.mxu0 0.0
    %374 = vmatprep.subr.mxu0 0.0
    %375 = vmatpush1.msra.mxu0 0.0
    %376 = vmatprep.subr.mxu0 0.0
    %377 = vmatpush1.msra.mxu0 0.0
    %378 = vmatprep.subr.mxu0 0.0
    %379 = vmatpush1.msra.mxu0 0.0
    %380 = vmatprep.subr.mxu0 0.0
    %381 = vmatpush1.msra.mxu0 0.0
    %382 = vmatprep.subr.mxu0 0.0
    %383 = vmatpush1.msra.mxu0 0.0
    %384 = vmatprep.subr.mxu0 0.0
    %385 = vmatpush1.msra.mxu0 0.0
    %386 = vmatprep.subr.mxu0 0.0
    %387 = vmatpush1.msra.mxu0 0.0
    %388 = vmatprep.subr.mxu0 0.0
    %389 = vmatpush1.msra.mxu0 0.0
    %390 = vmatprep.subr.mxu0 0.0
    %391 = vmatpush1.msra.mxu0 0.0
    %392 = vmatprep.subr.mxu0 0.0
    %393 = vmatpush1.msra.mxu0 0.0
    %394 = vmatprep.subr.mxu0 0.0
    %395 = vmatpush1.msra.mxu0 0.0
    %396 = vmatprep.subr.mxu0 0.0
    %397 = vmatpush1.msra.mxu0 0.0
    %398 = vmatprep.subr.mxu0 0.0
    %399 = vmatpush1.msra.mxu0 0.0
    %400 = vmatprep.subr.mxu0 0.0
    %401 = vmatpush1.msra.mxu0 0.0
    %402 = vmatprep.subr.mxu0 0.0
    %403 = vmatpush1.msra.mxu0 0.0
    %404 = vmatprep.mubr.f32.mxu0 0.0
    %405 = vmatmul.mubr.f32.gmra.mrb[0].mxu0 %v249
    %v406 = vpop.f32.mrb[0].mxu0
    %v407 = vadd.f32 %v338, %v406
    %v408 = vpop.f32.mrb[0].mxu0
    %409 = vmatprep.mubr.f32.mxu0 0.0
    %410 = vmatmul.mubr.f32.gmra.mrb[0].mxu0 %v252
    %v411 = vpop.f32.mrb[0].mxu0
    %v412 = vadd.f32 %v338, %v411
    %v413 = vpop.f32.mrb[0].mxu0
    %414 = vdwg.mxu0
    %v415 = vld [vmem:[%s8] sm:$0xff]
    %v416 = vld [vmem:[%s8 + $0x8] sm:$0xff]
    %v417 = vld [vmem:[%s8 + $0x10] sm:$0xff]
    %v418 = vld [vmem:[%s8 + $0x18] sm:$0xff]
    %v419 = vld [vmem:[#allocation8] sm:$0x1]
    %v421 = vlaneseq
    %v422 = vshrl.u32 %v421, 7
    %v423 = vsub.s32 0, %v422
    %v424 = vrot.slane %v419, %v423
    %426 = vmatprep.subr.mxu0 0.0
    %427 = vmatpush1.msra.mxu0 %v415
    %428 = vmatprep.subr.mxu0 0.0
    %429 = vmatpush1.msra.mxu0 %v416
    %430 = vmatprep.subr.mxu0 0.0
    %431 = vmatpush1.msra.mxu0 %v417
    %432 = vmatprep.subr.mxu0 0.0
    %433 = vmatpush1.msra.mxu0 %v418
    %434 = vmatprep.subr.mxu0 0.0
    %435 = vmatpush1.msra.mxu0 0.0
    %436 = vmatprep.subr.mxu0 0.0
    %437 = vmatpush1.msra.mxu0 0.0
    %438 = vmatprep.subr.mxu0 0.0
    %439 = vmatpush1.msra.mxu0 0.0
    %440 = vmatprep.subr.mxu0 0.0
    %441 = vmatpush1.msra.mxu0 0.0
    %442 = vmatprep.subr.mxu0 0.0
    %443 = vmatpush1.msra.mxu0 0.0
    %444 = vmatprep.subr.mxu0 0.0
    %445 = vmatpush1.msra.mxu0 0.0
    %446 = vmatprep.subr.mxu0 0.0
    %447 = vmatpush1.msra.mxu0 0.0
    %448 = vmatprep.subr.mxu0 0.0
    %449 = vmatpush1.msra.mxu0 0.0
    %450 = vmatprep.subr.mxu0 0.0
    %451 = vmatpush1.msra.mxu0 0.0
    %452 = vmatprep.subr.mxu0 0.0
    %453 = vmatpush1.msra.mxu0 0.0
    %454 = vmatprep.subr.mxu0 0.0
    %455 = vmatpush1.msra.mxu0 0.0
    %456 = vmatprep.subr.mxu0 0.0
    %457 = vmatpush1.msra.mxu0 0.0
    %458 = vmatprep.subr.mxu0 0.0
    %459 = vmatpush1.msra.mxu0 0.0
    %460 = vmatprep.subr.mxu0 0.0
    %461 = vmatpush1.msra.mxu0 0.0
    %462 = vmatprep.subr.mxu0 0.0
    %463 = vmatpush1.msra.mxu0 0.0
    %464 = vmatprep.subr.mxu0 0.0
    %465 = vmatpush1.msra.mxu0 0.0
    %466 = vmatprep.subr.mxu0 0.0
    %467 = vmatpush1.msra.mxu0 0.0
    %468 = vmatprep.subr.mxu0 0.0
    %469 = vmatpush1.msra.mxu0 0.0
    %470 = vmatprep.subr.mxu0 0.0
    %471 = vmatpush1.msra.mxu0 0.0
    %472 = vmatprep.subr.mxu0 0.0
    %473 = vmatpush1.msra.mxu0 0.0
    %474 = vmatprep.subr.mxu0 0.0
    %475 = vmatpush1.msra.mxu0 0.0
    %476 = vmatprep.subr.mxu0 0.0
    %477 = vmatpush1.msra.mxu0 0.0
    %478 = vmatprep.subr.mxu0 0.0
    %479 = vmatpush1.msra.mxu0 0.0
    %480 = vmatprep.subr.mxu0 0.0
    %481 = vmatpush1.msra.mxu0 0.0
    %482 = vmatprep.subr.mxu0 0.0
    %483 = vmatpush1.msra.mxu0 0.0
    %484 = vmatprep.subr.mxu0 0.0
    %485 = vmatpush1.msra.mxu0 0.0
    %486 = vmatprep.subr.mxu0 0.0
    %487 = vmatpush1.msra.mxu0 0.0
    %488 = vmatprep.subr.mxu0 0.0
    %489 = vmatpush1.msra.mxu0 0.0
    %490 = vmatprep.mubr.f32.mxu0 0.0
    %491 = vmatmul.mubr.f32.gmra.mrb[0].mxu0 %v249
    %v492 = vpop.f32.mrb[0].mxu0
    %v493 = vadd.f32 %v424, %v492
    %v494 = vpop.f32.mrb[0].mxu0
    %495 = vmatprep.mubr.f32.mxu0 0.0
    %496 = vmatmul.mubr.f32.gmra.mrb[0].mxu0 %v252
    %v497 = vpop.f32.mrb[0].mxu0
    %v498 = vadd.f32 %v424, %v497
    %v499 = vpop.f32.mrb[0].mxu0
    %500 = vdwg.mxu0
    %v501 = vld [vmem:[%s10] sm:$0xff]
    %v502 = vld [vmem:[%s10 + $0x8] sm:$0xff]
    %v503 = vld [vmem:[%s10 + $0x10] sm:$0xff]
    %v504 = vld [vmem:[%s10 + $0x18] sm:$0xff]
    %vm505 = vcmask 64512
    %v507 = vsel %vm505, %v321, 0
    %v510 = vsel %vm505, %v407, 0
    %512 = vmatprep.subr.mxu0 0.0
    %513 = vmatpush1.xpose.msra.mxu0 %v510
    %514 = vmatprep.subr.mxu0 0.0
    %515 = vmatpush1.xpose.msra.mxu0 0.0
    %516 = vmatprep.subr.mxu0 0.0
    %517 = vmatpush1.xpose.msra.mxu0 0.0
    %518 = vmatprep.subr.mxu0 0.0
    %519 = vmatpush1.xpose.msra.mxu0 0.0
    %520 = vmatprep.subr.mxu0 0.0
    %521 = vmatpush1.xpose.msra.mxu0 0.0
    %522 = vmatprep.subr.mxu0 0.0
    %523 = vmatpush1.xpose.msra.mxu0 0.0
    %524 = vmatprep.subr.mxu0 0.0
    %525 = vmatpush1.xpose.msra.mxu0 0.0
    %526 = vmatprep.subr.mxu0 0.0
    %527 = vmatpush1.xpose.msra.mxu0 0.0
    %528 = vmatprep.subr.mxu0 0.0
    %529 = vmatpush1.xpose.msra.mxu0 0.0
    %530 = vmatprep.subr.mxu0 0.0
    %531 = vmatpush1.xpose.msra.mxu0 0.0
    %532 = vmatprep.subr.mxu0 0.0
    %533 = vmatpush1.xpose.msra.mxu0 0.0
    %534 = vmatprep.subr.mxu0 0.0
    %535 = vmatpush1.xpose.msra.mxu0 0.0
    %536 = vmatprep.subr.mxu0 0.0
    %537 = vmatpush1.xpose.msra.mxu0 0.0
    %538 = vmatprep.subr.mxu0 0.0
    %539 = vmatpush1.xpose.msra.mxu0 0.0
    %540 = vmatprep.subr.mxu0 0.0
    %541 = vmatpush1.xpose.msra.mxu0 0.0
    %542 = vmatprep.subr.mxu0 0.0
    %543 = vmatpush1.xpose.msra.mxu0 0.0
    %544 = vmatprep.subr.mxu0 0.0
    %545 = vmatpush1.xpose.msra.mxu0 0.0
    %546 = vmatprep.subr.mxu0 0.0
    %547 = vmatpush1.xpose.msra.mxu0 0.0
    %548 = vmatprep.subr.mxu0 0.0
    %549 = vmatpush1.xpose.msra.mxu0 0.0
    %550 = vmatprep.subr.mxu0 0.0
    %551 = vmatpush1.xpose.msra.mxu0 0.0
    %552 = vmatprep.subr.mxu0 0.0
    %553 = vmatpush1.xpose.msra.mxu0 0.0
    %554 = vmatprep.subr.mxu0 0.0
    %555 = vmatpush1.xpose.msra.mxu0 0.0
    %556 = vmatprep.subr.mxu0 0.0
    %557 = vmatpush1.xpose.msra.mxu0 0.0
    %558 = vmatprep.subr.mxu0 0.0
    %559 = vmatpush1.xpose.msra.mxu0 0.0
    %560 = vmatprep.subr.mxu0 0.0
    %561 = vmatpush1.xpose.msra.mxu0 0.0
    %562 = vmatprep.subr.mxu0 0.0
    %563 = vmatpush1.xpose.msra.mxu0 0.0
    %564 = vmatprep.subr.mxu0 0.0
    %565 = vmatpush1.xpose.msra.mxu0 0.0
    %566 = vmatprep.subr.mxu0 0.0
    %567 = vmatpush1.xpose.msra.mxu0 0.0
    %568 = vmatprep.subr.mxu0 0.0
    %569 = vmatpush1.xpose.msra.mxu0 0.0
    %570 = vmatprep.subr.mxu0 0.0
    %571 = vmatpush1.xpose.msra.mxu0 0.0
    %572 = vmatprep.subr.mxu0 0.0
    %573 = vmatpush1.xpose.msra.mxu0 0.0
    %574 = vmatprep.subr.mxu0 0.0
    %575 = vmatpush1.xpose.msra.mxu0 0.0
    %576 = vmatprep.mubr.f32.mxu0 0.0
    %577 = vmatmul.mubr.f32.gmra.mrb[0].mxu0 %v507
    %v578 = vpop.f32.mrb[0].mxu0
    %v579 = vadd.f32 0.0, %v578
    %v580 = vpop.f32.mrb[0].mxu0
    %581 = vdwg.mxu0
    %v583 = vsel %vm505, %v326, 0
    %v586 = vsel %vm505, %v412, 0
    %588 = vmatprep.subr.mxu0 0.0
    %589 = vmatpush1.xpose.msra.mxu0 %v586
    %590 = vmatprep.subr.mxu0 0.0
    %591 = vmatpush1.xpose.msra.mxu0 0.0
    %592 = vmatprep.subr.mxu0 0.0
    %593 = vmatpush1.xpose.msra.mxu0 0.0
    %594 = vmatprep.subr.mxu0 0.0
    %595 = vmatpush1.xpose.msra.mxu0 0.0
    %596 = vmatprep.subr.mxu0 0.0
    %597 = vmatpush1.xpose.msra.mxu0 0.0
    %598 = vmatprep.subr.mxu0 0.0
    %599 = vmatpush1.xpose.msra.mxu0 0.0
    %600 = vmatprep.subr.mxu0 0.0
    %601 = vmatpush1.xpose.msra.mxu0 0.0
    %602 = vmatprep.subr.mxu0 0.0
    %603 = vmatpush1.xpose.msra.mxu0 0.0
    %604 = vmatprep.subr.mxu0 0.0
    %605 = vmatpush1.xpose.msra.mxu0 0.0
    %606 = vmatprep.subr.mxu0 0.0
    %607 = vmatpush1.xpose.msra.mxu0 0.0
    %608 = vmatprep.subr.mxu0 0.0
    %609 = vmatpush1.xpose.msra.mxu0 0.0
    %610 = vmatprep.subr.mxu0 0.0
    %611 = vmatpush1.xpose.msra.mxu0 0.0
    %612 = vmatprep.subr.mxu0 0.0
    %613 = vmatpush1.xpose.msra.mxu0 0.0
    %614 = vmatprep.subr.mxu0 0.0
    %615 = vmatpush1.xpose.msra.mxu0 0.0
    %616 = vmatprep.subr.mxu0 0.0
    %617 = vmatpush1.xpose.msra.mxu0 0.0
    %618 = vmatprep.subr.mxu0 0.0
    %619 = vmatpush1.xpose.msra.mxu0 0.0
    %620 = vmatprep.subr.mxu0 0.0
    %621 = vmatpush1.xpose.msra.mxu0 0.0
    %622 = vmatprep.subr.mxu0 0.0
    %623 = vmatpush1.xpose.msra.mxu0 0.0
    %624 = vmatprep.subr.mxu0 0.0
    %625 = vmatpush1.xpose.msra.mxu0 0.0
    %626 = vmatprep.subr.mxu0 0.0
    %627 = vmatpush1.xpose.msra.mxu0 0.0
    %628 = vmatprep.subr.mxu0 0.0
    %629 = vmatpush1.xpose.msra.mxu0 0.0
    %630 = vmatprep.subr.mxu0 0.0
    %631 = vmatpush1.xpose.msra.mxu0 0.0
    %632 = vmatprep.subr.mxu0 0.0
    %633 = vmatpush1.xpose.msra.mxu0 0.0
    %634 = vmatprep.subr.mxu0 0.0
    %635 = vmatpush1.xpose.msra.mxu0 0.0
    %636 = vmatprep.subr.mxu0 0.0
    %637 = vmatpush1.xpose.msra.mxu0 0.0
    %638 = vmatprep.subr.mxu0 0.0
    %639 = vmatpush1.xpose.msra.mxu0 0.0
    %640 = vmatprep.subr.mxu0 0.0
    %641 = vmatpush1.xpose.msra.mxu0 0.0
    %642 = vmatprep.subr.mxu0 0.0
    %643 = vmatpush1.xpose.msra.mxu0 0.0
    %644 = vmatprep.subr.mxu0 0.0
    %645 = vmatpush1.xpose.msra.mxu0 0.0
    %646 = vmatprep.subr.mxu0 0.0
    %647 = vmatpush1.xpose.msra.mxu0 0.0
    %648 = vmatprep.subr.mxu0 0.0
    %649 = vmatpush1.xpose.msra.mxu0 0.0
    %650 = vmatprep.subr.mxu0 0.0
    %651 = vmatpush1.xpose.msra.mxu0 0.0
    %652 = vmatprep.mubr.f32.mxu0 0.0
    %653 = vmatmul.mubr.f32.gmra.mrb[0].mxu0 %v583
    %v654 = vpop.f32.mrb[0].mxu0
    %v655 = vadd.f32 0.0, %v654
    %v656 = vpop.f32.mrb[0].mxu0
    %657 = vdwg.mxu0
    %v658 = vmul.f32 %v579, 0.35355338
    %v659 = vmul.f32 %v655, 0.35355338
    %v662 = vlaneseq
    %v663 = vshrl.u32 %v662, 7
    %v664 = vsub.s32 0, %v663
    %v665 = vrot.slane %v189, %v664
    %v666 = vlaneseq
    %v667 = vshrl.u32 %v666, 7
    %v668 = vsub.s32 0, %v667
    %v669 = vrot.slane %v190, %v668
    %v672 = vadd.f32 %v658, %v665
    %v673 = vadd.f32 %v659, %v669
    %v674 = vsel %vm505, %v672, -inf
    %675 = vmax.xlane.f32.xlu0 %v674
    %v676 = vpop.xlane.xlu0 %675
    %v677 = vsel %vm505, %v673, -inf
    %678 = vmax.xlane.f32.xlu0 %v677
    %v679 = vpop.xlane.xlu0 %678
    %v680 = vsub.f32 %v672, %v676
    %v681 = vsub.f32 %v673, %v679
    %v682 = vmul.f32 %v680, 1.442695
    %v683 = vpow.pop %v682
    %v684 = vmul.f32 %v681, 1.442695
    %v685 = vpow.pop %v684
    %v686 = vsel %vm505, %v683, 0.0
    %687 = vadd.xlane.f32.xlu0 %v686
    %v688 = vpop.xlane.xlu0 %687
    %v689 = vsel %vm505, %v685, 0.0
    %690 = vadd.xlane.f32.xlu0 %v689
    %v691 = vpop.xlane.xlu0 %690
    %v692 = vrcp.pop %v688
    %v693 = vrcp.pop %v691
    %v694 = vmul.f32 %v683, %v692
    %v695 = vmul.f32 %v685, %v693
    %v697 = vsel %vm505, %v694, 0
    %699 = vmatprep.subr.mxu0 0.0
    %700 = vmatpush1.msra.mxu0 %v493
    %701 = vmatprep.subr.mxu0 0.0
    %702 = vmatpush1.msra.mxu0 0.0
    %703 = vmatprep.subr.mxu0 0.0
    %704 = vmatpush1.msra.mxu0 0.0
    %705 = vmatprep.subr.mxu0 0.0
    %706 = vmatpush1.msra.mxu0 0.0
    %707 = vmatprep.subr.mxu0 0.0
    %708 = vmatpush1.msra.mxu0 0.0
    %709 = vmatprep.subr.mxu0 0.0
    %710 = vmatpush1.msra.mxu0 0.0
    %711 = vmatprep.subr.mxu0 0.0
    %712 = vmatpush1.msra.mxu0 0.0
    %713 = vmatprep.subr.mxu0 0.0
    %714 = vmatpush1.msra.mxu0 0.0
    %715 = vmatprep.subr.mxu0 0.0
    %716 = vmatpush1.msra.mxu0 0.0
    %717 = vmatprep.subr.mxu0 0.0
    %718 = vmatpush1.msra.mxu0 0.0
    %719 = vmatprep.subr.mxu0 0.0
    %720 = vmatpush1.msra.mxu0 0.0
    %721 = vmatprep.subr.mxu0 0.0
    %722 = vmatpush1.msra.mxu0 0.0
    %723 = vmatprep.subr.mxu0 0.0
    %724 = vmatpush1.msra.mxu0 0.0
    %725 = vmatprep.subr.mxu0 0.0
    %726 = vmatpush1.msra.mxu0 0.0
    %727 = vmatprep.subr.mxu0 0.0
    %728 = vmatpush1.msra.mxu0 0.0
    %729 = vmatprep.subr.mxu0 0.0
    %730 = vmatpush1.msra.mxu0 0.0
    %731 = vmatprep.subr.mxu0 0.0
    %732 = vmatpush1.msra.mxu0 0.0
    %733 = vmatprep.subr.mxu0 0.0
    %734 = vmatpush1.msra.mxu0 0.0
    %735 = vmatprep.subr.mxu0 0.0
    %736 = vmatpush1.msra.mxu0 0.0
    %737 = vmatprep.subr.mxu0 0.0
    %738 = vmatpush1.msra.mxu0 0.0
    %739 = vmatprep.subr.mxu0 0.0
    %740 = vmatpush1.msra.mxu0 0.0
    %741 = vmatprep.subr.mxu0 0.0
    %742 = vmatpush1.msra.mxu0 0.0
    %743 = vmatprep.subr.mxu0 0.0
    %744 = vmatpush1.msra.mxu0 0.0
    %745 = vmatprep.subr.mxu0 0.0
    %746 = vmatpush1.msra.mxu0 0.0
    %747 = vmatprep.subr.mxu0 0.0
    %748 = vmatpush1.msra.mxu0 0.0
    %749 = vmatprep.subr.mxu0 0.0
    %750 = vmatpush1.msra.mxu0 0.0
    %751 = vmatprep.subr.mxu0 0.0
    %752 = vmatpush1.msra.mxu0 0.0
    %753 = vmatprep.subr.mxu0 0.0
    %754 = vmatpush1.msra.mxu0 0.0
    %755 = vmatprep.subr.mxu0 0.0
    %756 = vmatpush1.msra.mxu0 0.0
    %757 = vmatprep.subr.mxu0 0.0
    %758 = vmatpush1.msra.mxu0 0.0
    %759 = vmatprep.subr.mxu0 0.0
    %760 = vmatpush1.msra.mxu0 0.0
    %761 = vmatprep.subr.mxu0 0.0
    %762 = vmatpush1.msra.mxu0 0.0
    %763 = vmatprep.mubr.f32.mxu0 0.0
    %764 = vmatmul.mubr.f32.gmra.mrb[0].mxu0 %v697
    %v765 = vpop.f32.mrb[0].mxu0
    %v766 = vadd.f32 0.0, %v765
    %v767 = vpop.f32.mrb[0].mxu0
    %768 = vdwg.mxu0
    %v770 = vsel %vm505, %v695, 0
    %772 = vmatprep.subr.mxu0 0.0
    %773 = vmatpush1.msra.mxu0 %v498
    %774 = vmatprep.subr.mxu0 0.0
    %775 = vmatpush1.msra.mxu0 0.0
    %776 = vmatprep.subr.mxu0 0.0
    %777 = vmatpush1.msra.mxu0 0.0
    %778 = vmatprep.subr.mxu0 0.0
    %779 = vmatpush1.msra.mxu0 0.0
    %780 = vmatprep.subr.mxu0 0.0
    %781 = vmatpush1.msra.mxu0 0.0
    %782 = vmatprep.subr.mxu0 0.0
    %783 = vmatpush1.msra.mxu0 0.0
    %784 = vmatprep.subr.mxu0 0.0
    %785 = vmatpush1.msra.mxu0 0.0
    %786 = vmatprep.subr.mxu0 0.0
    %787 = vmatpush1.msra.mxu0 0.0
    %788 = vmatprep.subr.mxu0 0.0
    %789 = vmatpush1.msra.mxu0 0.0
    %790 = vmatprep.subr.mxu0 0.0
    %791 = vmatpush1.msra.mxu0 0.0
    %792 = vmatprep.subr.mxu0 0.0
    %793 = vmatpush1.msra.mxu0 0.0
    %794 = vmatprep.subr.mxu0 0.0
    %795 = vmatpush1.msra.mxu0 0.0
    %796 = vmatprep.subr.mxu0 0.0
    %797 = vmatpush1.msra.mxu0 0.0
    %798 = vmatprep.subr.mxu0 0.0
    %799 = vmatpush1.msra.mxu0 0.0
    %800 = vmatprep.subr.mxu0 0.0
    %801 = vmatpush1.msra.mxu0 0.0
    %802 = vmatprep.subr.mxu0 0.0
    %803 = vmatpush1.msra.mxu0 0.0
    %804 = vmatprep.subr.mxu0 0.0
    %805 = vmatpush1.msra.mxu0 0.0
    %806 = vmatprep.subr.mxu0 0.0
    %807 = vmatpush1.msra.mxu0 0.0
    %808 = vmatprep.subr.mxu0 0.0
    %809 = vmatpush1.msra.mxu0 0.0
    %810 = vmatprep.subr.mxu0 0.0
    %811 = vmatpush1.msra.mxu0 0.0
    %812 = vmatprep.subr.mxu0 0.0
    %813 = vmatpush1.msra.mxu0 0.0
    %814 = vmatprep.subr.mxu0 0.0
    %815 = vmatpush1.msra.mxu0 0.0
    %816 = vmatprep.subr.mxu0 0.0
    %817 = vmatpush1.msra.mxu0 0.0
    %818 = vmatprep.subr.mxu0 0.0
    %819 = vmatpush1.msra.mxu0 0.0
    %820 = vmatprep.subr.mxu0 0.0
    %821 = vmatpush1.msra.mxu0 0.0
    %822 = vmatprep.subr.mxu0 0.0
    %823 = vmatpush1.msra.mxu0 0.0
    %824 = vmatprep.subr.mxu0 0.0
    %825 = vmatpush1.msra.mxu0 0.0
    %826 = vmatprep.subr.mxu0 0.0
    %827 = vmatpush1.msra.mxu0 0.0
    %828 = vmatprep.subr.mxu0 0.0
    %829 = vmatpush1.msra.mxu0 0.0
    %830 = vmatprep.subr.mxu0 0.0
    %831 = vmatpush1.msra.mxu0 0.0
    %832 = vmatprep.subr.mxu0 0.0
    %833 = vmatpush1.msra.mxu0 0.0
    %834 = vmatprep.subr.mxu0 0.0
    %835 = vmatpush1.msra.mxu0 0.0
    %836 = vmatprep.mubr.f32.mxu0 0.0
    %837 = vmatmul.mubr.f32.gmra.mrb[0].mxu0 %v770
    %v838 = vpop.f32.mrb[0].mxu0
    %v839 = vadd.f32 0.0, %v838
    %v840 = vpop.f32.mrb[0].mxu0
    %841 = vdwg.mxu0
    %842 = vrot.lane.b32.xlu0 %v321, 120
    %v843 = vpop.permute.xlu0 %842
    %844 = vrot.lane.b32.xlu0 %v407, 120
    %v845 = vpop.permute.xlu0 %844
    %v846 = vsel %vm505, %v843, 0
    %v848 = vsel %vm505, %v845, 0
    %850 = vmatprep.subr.mxu0 0.0
    %851 = vmatpush1.xpose.msra.mxu0 %v848
    %852 = vmatprep.subr.mxu0 0.0
    %853 = vmatpush1.xpose.msra.mxu0 0.0
    %854 = vmatprep.subr.mxu0 0.0
    %855 = vmatpush1.xpose.msra.mxu0 0.0
    %856 = vmatprep.subr.mxu0 0.0
    %857 = vmatpush1.xpose.msra.mxu0 0.0
    %858 = vmatprep.subr.mxu0 0.0
    %859 = vmatpush1.xpose.msra.mxu0 0.0
    %860 = vmatprep.subr.mxu0 0.0
    %861 = vmatpush1.xpose.msra.mxu0 0.0
    %862 = vmatprep.subr.mxu0 0.0
    %863 = vmatpush1.xpose.msra.mxu0 0.0
    %864 = vmatprep.subr.mxu0 0.0
    %865 = vmatpush1.xpose.msra.mxu0 0.0
    %866 = vmatprep.subr.mxu0 0.0
    %867 = vmatpush1.xpose.msra.mxu0 0.0
    %868 = vmatprep.subr.mxu0 0.0
    %869 = vmatpush1.xpose.msra.mxu0 0.0
    %870 = vmatprep.subr.mxu0 0.0
    %871 = vmatpush1.xpose.msra.mxu0 0.0
    %872 = vmatprep.subr.mxu0 0.0
    %873 = vmatpush1.xpose.msra.mxu0 0.0
    %874 = vmatprep.subr.mxu0 0.0
    %875 = vmatpush1.xpose.msra.mxu0 0.0
    %876 = vmatprep.subr.mxu0 0.0
    %877 = vmatpush1.xpose.msra.mxu0 0.0
    %878 = vmatprep.subr.mxu0 0.0
    %879 = vmatpush1.xpose.msra.mxu0 0.0
    %880 = vmatprep.subr.mxu0 0.0
    %881 = vmatpush1.xpose.msra.mxu0 0.0
    %882 = vmatprep.subr.mxu0 0.0
    %883 = vmatpush1.xpose.msra.mxu0 0.0
    %884 = vmatprep.subr.mxu0 0.0
    %885 = vmatpush1.xpose.msra.mxu0 0.0
    %886 = vmatprep.subr.mxu0 0.0
    %887 = vmatpush1.xpose.msra.mxu0 0.0
    %888 = vmatprep.subr.mxu0 0.0
    %889 = vmatpush1.xpose.msra.mxu0 0.0
    %890 = vmatprep.subr.mxu0 0.0
    %891 = vmatpush1.xpose.msra.mxu0 0.0
    %892 = vmatprep.subr.mxu0 0.0
    %893 = vmatpush1.xpose.msra.mxu0 0.0
    %894 = vmatprep.subr.mxu0 0.0
    %895 = vmatpush1.xpose.msra.mxu0 0.0
    %896 = vmatprep.subr.mxu0 0.0
    %897 = vmatpush1.xpose.msra.mxu0 0.0
    %898 = vmatprep.subr.mxu0 0.0
    %899 = vmatpush1.xpose.msra.mxu0 0.0
    %900 = vmatprep.subr.mxu0 0.0
    %901 = vmatpush1.xpose.msra.mxu0 0.0
    %902 = vmatprep.subr.mxu0 0.0
    %903 = vmatpush1.xpose.msra.mxu0 0.0
    %904 = vmatprep.subr.mxu0 0.0
    %905 = vmatpush1.xpose.msra.mxu0 0.0
    %906 = vmatprep.subr.mxu0 0.0
    %907 = vmatpush1.xpose.msra.mxu0 0.0
    %908 = vmatprep.subr.mxu0 0.0
    %909 = vmatpush1.xpose.msra.mxu0 0.0
    %910 = vmatprep.subr.mxu0 0.0
    %911 = vmatpush1.xpose.msra.mxu0 0.0
    %912 = vmatprep.subr.mxu0 0.0
    %913 = vmatpush1.xpose.msra.mxu0 0.0
    %914 = vmatprep.mubr.f32.mxu0 0.0
    %915 = vmatmul.mubr.f32.gmra.mrb[0].mxu0 %v846
    %v916 = vpop.f32.mrb[0].mxu0
    %v917 = vadd.f32 0.0, %v916
    %v918 = vpop.f32.mrb[0].mxu0
    %919 = vdwg.mxu0
    %920 = vrot.lane.b32.xlu0 %v326, 120
    %v921 = vpop.permute.xlu0 %920
    %922 = vrot.lane.b32.xlu0 %v412, 120
    %v923 = vpop.permute.xlu0 %922
    %v924 = vsel %vm505, %v921, 0
    %v926 = vsel %vm505, %v923, 0
    %928 = vmatprep.subr.mxu0 0.0
    %929 = vmatpush1.xpose.msra.mxu0 %v926
    %930 = vmatprep.subr.mxu0 0.0
    %931 = vmatpush1.xpose.msra.mxu0 0.0
    %932 = vmatprep.subr.mxu0 0.0
    %933 = vmatpush1.xpose.msra.mxu0 0.0
    %934 = vmatprep.subr.mxu0 0.0
    %935 = vmatpush1.xpose.msra.mxu0 0.0
    %936 = vmatprep.subr.mxu0 0.0
    %937 = vmatpush1.xpose.msra.mxu0 0.0
    %938 = vmatprep.subr.mxu0 0.0
    %939 = vmatpush1.xpose.msra.mxu0 0.0
    %940 = vmatprep.subr.mxu0 0.0
    %941 = vmatpush1.xpose.msra.mxu0 0.0
    %942 = vmatprep.subr.mxu0 0.0
    %943 = vmatpush1.xpose.msra.mxu0 0.0
    %944 = vmatprep.subr.mxu0 0.0
    %945 = vmatpush1.xpose.msra.mxu0 0.0
    %946 = vmatprep.subr.mxu0 0.0
    %947 = vmatpush1.xpose.msra.mxu0 0.0
    %948 = vmatprep.subr.mxu0 0.0
    %949 = vmatpush1.xpose.msra.mxu0 0.0
    %950 = vmatprep.subr.mxu0 0.0
    %951 = vmatpush1.xpose.msra.mxu0 0.0
    %952 = vmatprep.subr.mxu0 0.0
    %953 = vmatpush1.xpose.msra.mxu0 0.0
    %954 = vmatprep.subr.mxu0 0.0
    %955 = vmatpush1.xpose.msra.mxu0 0.0
    %956 = vmatprep.subr.mxu0 0.0
    %957 = vmatpush1.xpose.msra.mxu0 0.0
    %958 = vmatprep.subr.mxu0 0.0
    %959 = vmatpush1.xpose.msra.mxu0 0.0
    %960 = vmatprep.subr.mxu0 0.0
    %961 = vmatpush1.xpose.msra.mxu0 0.0
    %962 = vmatprep.subr.mxu0 0.0
    %963 = vmatpush1.xpose.msra.mxu0 0.0
    %964 = vmatprep.subr.mxu0 0.0
    %965 = vmatpush1.xpose.msra.mxu0 0.0
    %966 = vmatprep.subr.mxu0 0.0
    %967 = vmatpush1.xpose.msra.mxu0 0.0
    %968 = vmatprep.subr.mxu0 0.0
    %969 = vmatpush1.xpose.msra.mxu0 0.0
    %970 = vmatprep.subr.mxu0 0.0
    %971 = vmatpush1.xpose.msra.mxu0 0.0
    %972 = vmatprep.subr.mxu0 0.0
    %973 = vmatpush1.xpose.msra.mxu0 0.0
    %974 = vmatprep.subr.mxu0 0.0
    %975 = vmatpush1.xpose.msra.mxu0 0.0
    %976 = vmatprep.subr.mxu0 0.0
    %977 = vmatpush1.xpose.msra.mxu0 0.0
    %978 = vmatprep.subr.mxu0 0.0
    %979 = vmatpush1.xpose.msra.mxu0 0.0
    %980 = vmatprep.subr.mxu0 0.0
    %981 = vmatpush1.xpose.msra.mxu0 0.0
    %982 = vmatprep.subr.mxu0 0.0
    %983 = vmatpush1.xpose.msra.mxu0 0.0
    %984 = vmatprep.subr.mxu0 0.0
    %985 = vmatpush1.xpose.msra.mxu0 0.0
    %986 = vmatprep.subr.mxu0 0.0
    %987 = vmatpush1.xpose.msra.mxu0 0.0
    %988 = vmatprep.subr.mxu0 0.0
    %989 = vmatpush1.xpose.msra.mxu0 0.0
    %990 = vmatprep.subr.mxu0 0.0
    %991 = vmatpush1.xpose.msra.mxu0 0.0
    %992 = vmatprep.mubr.f32.mxu0 0.0
    %993 = vmatmul.mubr.f32.gmra.mrb[0].mxu0 %v924
    %v994 = vpop.f32.mrb[0].mxu0
    %v995 = vadd.f32 0.0, %v994
    %v996 = vpop.f32.mrb[0].mxu0
    %997 = vdwg.mxu0
    %v998 = vmul.f32 %v917, 0.35355338
    %v999 = vmul.f32 %v995, 0.35355338
    %v1000 = vadd.f32 %v998, %v665
    %v1001 = vadd.f32 %v999, %v669
    %v1002 = vsel %vm505, %v1000, -inf
    %1003 = vmax.xlane.f32.xlu0 %v1002
    %v1004 = vpop.xlane.xlu0 %1003
    %v1005 = vsel %vm505, %v1001, -inf
    %1006 = vmax.xlane.f32.xlu0 %v1005
    %v1007 = vpop.xlane.xlu0 %1006
    %v1008 = vsub.f32 %v1000, %v1004
    %v1009 = vsub.f32 %v1001, %v1007
    %v1010 = vmul.f32 %v1008, 1.442695
    %v1011 = vpow.pop %v1010
    %v1012 = vmul.f32 %v1009, 1.442695
    %v1013 = vpow.pop %v1012
    %v1014 = vsel %vm505, %v1011, 0.0
    %1015 = vadd.xlane.f32.xlu0 %v1014
    %v1016 = vpop.xlane.xlu0 %1015
    %v1017 = vsel %vm505, %v1013, 0.0
    %1018 = vadd.xlane.f32.xlu0 %v1017
    %v1019 = vpop.xlane.xlu0 %1018
    %v1020 = vrcp.pop %v1016
    %v1021 = vrcp.pop %v1019
    %v1022 = vmul.f32 %v1011, %v1020
    %v1023 = vmul.f32 %v1013, %v1021
    %1025 = vrot.lane.b32.xlu0 %v493, 120
    %v1026 = vpop.permute.xlu0 %1025
    %v1029 = vsel %vm505, %v1022, 0
    %1031 = vmatprep.subr.mxu0 0.0
    %1032 = vmatpush1.msra.mxu0 %v1026
    %1033 = vmatprep.subr.mxu0 0.0
    %1034 = vmatpush1.msra.mxu0 0.0
    %1035 = vmatprep.subr.mxu0 0.0
    %1036 = vmatpush1.msra.mxu0 0.0
    %1037 = vmatprep.subr.mxu0 0.0
    %1038 = vmatpush1.msra.mxu0 0.0
    %1039 = vmatprep.subr.mxu0 0.0
    %1040 = vmatpush1.msra.mxu0 0.0
    %1041 = vmatprep.subr.mxu0 0.0
    %1042 = vmatpush1.msra.mxu0 0.0
    %1043 = vmatprep.subr.mxu0 0.0
    %1044 = vmatpush1.msra.mxu0 0.0
    %1045 = vmatprep.subr.mxu0 0.0
    %1046 = vmatpush1.msra.mxu0 0.0
    %1047 = vmatprep.subr.mxu0 0.0
    %1048 = vmatpush1.msra.mxu0 0.0
    %1049 = vmatprep.subr.mxu0 0.0
    %1050 = vmatpush1.msra.mxu0 0.0
    %1051 = vmatprep.subr.mxu0 0.0
    %1052 = vmatpush1.msra.mxu0 0.0
    %1053 = vmatprep.subr.mxu0 0.0
    %1054 = vmatpush1.msra.mxu0 0.0
    %1055 = vmatprep.subr.mxu0 0.0
    %1056 = vmatpush1.msra.mxu0 0.0
    %1057 = vmatprep.subr.mxu0 0.0
    %1058 = vmatpush1.msra.mxu0 0.0
    %1059 = vmatprep.subr.mxu0 0.0
    %1060 = vmatpush1.msra.mxu0 0.0
    %1061 = vmatprep.subr.mxu0 0.0
    %1062 = vmatpush1.msra.mxu0 0.0
    %1063 = vmatprep.subr.mxu0 0.0
    %1064 = vmatpush1.msra.mxu0 0.0
    %1065 = vmatprep.subr.mxu0 0.0
    %1066 = vmatpush1.msra.mxu0 0.0
    %1067 = vmatprep.subr.mxu0 0.0
    %1068 = vmatpush1.msra.mxu0 0.0
    %1069 = vmatprep.subr.mxu0 0.0
    %1070 = vmatpush1.msra.mxu0 0.0
    %1071 = vmatprep.subr.mxu0 0.0
    %1072 = vmatpush1.msra.mxu0 0.0
    %1073 = vmatprep.subr.mxu0 0.0
    %1074 = vmatpush1.msra.mxu0 0.0
    %1075 = vmatprep.subr.mxu0 0.0
    %1076 = vmatpush1.msra.mxu0 0.0
    %1077 = vmatprep.subr.mxu0 0.0
    %1078 = vmatpush1.msra.mxu0 0.0
    %1079 = vmatprep.subr.mxu0 0.0
    %1080 = vmatpush1.msra.mxu0 0.0
    %1081 = vmatprep.subr.mxu0 0.0
    %1082 = vmatpush1.msra.mxu0 0.0
    %1083 = vmatprep.subr.mxu0 0.0
    %1084 = vmatpush1.msra.mxu0 0.0
    %1085 = vmatprep.subr.mxu0 0.0
    %1086 = vmatpush1.msra.mxu0 0.0
    %1087 = vmatprep.subr.mxu0 0.0
    %1088 = vmatpush1.msra.mxu0 0.0
    %1089 = vmatprep.subr.mxu0 0.0
    %1090 = vmatpush1.msra.mxu0 0.0
    %1091 = vmatprep.subr.mxu0 0.0
    %1092 = vmatpush1.msra.mxu0 0.0
    %1093 = vmatprep.subr.mxu0 0.0
    %1094 = vmatpush1.msra.mxu0 0.0
    %1095 = vmatprep.mubr.f32.mxu0 0.0
    %1096 = vmatmul.mubr.f32.gmra.mrb[0].mxu0 %v1029
    %v1097 = vpop.f32.mrb[0].mxu0
    %v1098 = vadd.f32 0.0, %v1097
    %v1099 = vpop.f32.mrb[0].mxu0
    %1100 = vdwg.mxu0
    %1102 = vrot.lane.b32.xlu0 %v498, 120
    %v1103 = vpop.permute.xlu0 %1102
    %v1106 = vsel %vm505, %v1023, 0
    %1108 = vmatprep.subr.mxu0 0.0
    %1109 = vmatpush1.msra.mxu0 %v1103
    %1110 = vmatprep.subr.mxu0 0.0
    %1111 = vmatpush1.msra.mxu0 0.0
    %1112 = vmatprep.subr.mxu0 0.0
    %1113 = vmatpush1.msra.mxu0 0.0
    %1114 = vmatprep.subr.mxu0 0.0
    %1115 = vmatpush1.msra.mxu0 0.0
    %1116 = vmatprep.subr.mxu0 0.0
    %1117 = vmatpush1.msra.mxu0 0.0
    %1118 = vmatprep.subr.mxu0 0.0
    %1119 = vmatpush1.msra.mxu0 0.0
    %1120 = vmatprep.subr.mxu0 0.0
    %1121 = vmatpush1.msra.mxu0 0.0
    %1122 = vmatprep.subr.mxu0 0.0
    %1123 = vmatpush1.msra.mxu0 0.0
    %1124 = vmatprep.subr.mxu0 0.0
    %1125 = vmatpush1.msra.mxu0 0.0
    %1126 = vmatprep.subr.mxu0 0.0
    %1127 = vmatpush1.msra.mxu0 0.0
    %1128 = vmatprep.subr.mxu0 0.0
    %1129 = vmatpush1.msra.mxu0 0.0
    %1130 = vmatprep.subr.mxu0 0.0
    %1131 = vmatpush1.msra.mxu0 0.0
    %1132 = vmatprep.subr.mxu0 0.0
    %1133 = vmatpush1.msra.mxu0 0.0
    %1134 = vmatprep.subr.mxu0 0.0
    %1135 = vmatpush1.msra.mxu0 0.0
    %1136 = vmatprep.subr.mxu0 0.0
    %1137 = vmatpush1.msra.mxu0 0.0
    %1138 = vmatprep.subr.mxu0 0.0
    %1139 = vmatpush1.msra.mxu0 0.0
    %1140 = vmatprep.subr.mxu0 0.0
    %1141 = vmatpush1.msra.mxu0 0.0
    %1142 = vmatprep.subr.mxu0 0.0
    %1143 = vmatpush1.msra.mxu0 0.0
    %1144 = vmatprep.subr.mxu0 0.0
    %1145 = vmatpush1.msra.mxu0 0.0
    %1146 = vmatprep.subr.mxu0 0.0
    %1147 = vmatpush1.msra.mxu0 0.0
    %1148 = vmatprep.subr.mxu0 0.0
    %1149 = vmatpush1.msra.mxu0 0.0
    %1150 = vmatprep.subr.mxu0 0.0
    %1151 = vmatpush1.msra.mxu0 0.0
    %1152 = vmatprep.subr.mxu0 0.0
    %1153 = vmatpush1.msra.mxu0 0.0
    %1154 = vmatprep.subr.mxu0 0.0
    %1155 = vmatpush1.msra.mxu0 0.0
    %1156 = vmatprep.subr.mxu0 0.0
    %1157 = vmatpush1.msra.mxu0 0.0
    %1158 = vmatprep.subr.mxu0 0.0
    %1159 = vmatpush1.msra.mxu0 0.0
    %1160 = vmatprep.subr.mxu0 0.0
    %1161 = vmatpush1.msra.mxu0 0.0
    %1162 = vmatprep.subr.mxu0 0.0
    %1163 = vmatpush1.msra.mxu0 0.0
    %1164 = vmatprep.subr.mxu0 0.0
    %1165 = vmatpush1.msra.mxu0 0.0
    %1166 = vmatprep.subr.mxu0 0.0
    %1167 = vmatpush1.msra.mxu0 0.0
    %1168 = vmatprep.subr.mxu0 0.0
    %1169 = vmatpush1.msra.mxu0 0.0
    %1170 = vmatprep.subr.mxu0 0.0
    %1171 = vmatpush1.msra.mxu0 0.0
    %1172 = vmatprep.mubr.f32.mxu0 0.0
    %1173 = vmatmul.mubr.f32.gmra.mrb[0].mxu0 %v1106
    %v1174 = vpop.f32.mrb[0].mxu0
    %v1175 = vadd.f32 0.0, %v1174
    %v1176 = vpop.f32.mrb[0].mxu0
    %1177 = vdwg.mxu0
    %v1179 = vsel %vm505, %v1098, 0
    %v1182 = vsel %vm505, %v1175, 0
    %1184 = vmatprep.subr.mxu0 0.0
    %1185 = vmatpush1.msra.mxu0 %v502
    %1186 = vmatprep.subr.mxu0 0.0
    %1187 = vmatpush1.msra.mxu0 0.0
    %1188 = vmatprep.subr.mxu0 0.0
    %1189 = vmatpush1.msra.mxu0 0.0
    %1190 = vmatprep.subr.mxu0 0.0
    %1191 = vmatpush1.msra.mxu0 0.0
    %1192 = vmatprep.subr.mxu0 0.0
    %1193 = vmatpush1.msra.mxu0 0.0
    %1194 = vmatprep.subr.mxu0 0.0
    %1195 = vmatpush1.msra.mxu0 0.0
    %1196 = vmatprep.subr.mxu0 0.0
    %1197 = vmatpush1.msra.mxu0 0.0
    %1198 = vmatprep.subr.mxu0 0.0
    %1199 = vmatpush1.msra.mxu0 0.0
    %1200 = vmatprep.subr.mxu0 0.0
    %1201 = vmatpush1.msra.mxu0 0.0
    %1202 = vmatprep.subr.mxu0 0.0
    %1203 = vmatpush1.msra.mxu0 0.0
    %1204 = vmatprep.subr.mxu0 0.0
    %1205 = vmatpush1.msra.mxu0 0.0
    %1206 = vmatprep.subr.mxu0 0.0
    %1207 = vmatpush1.msra.mxu0 0.0
    %1208 = vmatprep.subr.mxu0 0.0
    %1209 = vmatpush1.msra.mxu0 0.0
    %1210 = vmatprep.subr.mxu0 0.0
    %1211 = vmatpush1.msra.mxu0 0.0
    %1212 = vmatprep.subr.mxu0 0.0
    %1213 = vmatpush1.msra.mxu0 0.0
    %1214 = vmatprep.subr.mxu0 0.0
    %1215 = vmatpush1.msra.mxu0 0.0
    %1216 = vmatprep.subr.mxu0 0.0
    %1217 = vmatpush1.msra.mxu0 0.0
    %1218 = vmatprep.subr.mxu0 0.0
    %1219 = vmatpush1.msra.mxu0 0.0
    %1220 = vmatprep.subr.mxu0 0.0
    %1221 = vmatpush1.msra.mxu0 0.0
    %1222 = vmatprep.subr.mxu0 0.0
    %1223 = vmatpush1.msra.mxu0 0.0
    %1224 = vmatprep.subr.mxu0 0.0
    %1225 = vmatpush1.msra.mxu0 0.0
    %1226 = vmatprep.subr.mxu0 0.0
    %1227 = vmatpush1.msra.mxu0 0.0
    %1228 = vmatprep.subr.mxu0 0.0
    %1229 = vmatpush1.msra.mxu0 0.0
    %1230 = vmatprep.subr.mxu0 0.0
    %1231 = vmatpush1.msra.mxu0 0.0
    %1232 = vmatprep.subr.mxu0 0.0
    %1233 = vmatpush1.msra.mxu0 0.0
    %1234 = vmatprep.subr.mxu0 0.0
    %1235 = vmatpush1.msra.mxu0 0.0
    %1236 = vmatprep.subr.mxu0 0.0
    %1237 = vmatpush1.msra.mxu0 0.0
    %1238 = vmatprep.subr.mxu0 0.0
    %1239 = vmatpush1.msra.mxu0 0.0
    %1240 = vmatprep.subr.mxu0 0.0
    %1241 = vmatpush1.msra.mxu0 0.0
    %1242 = vmatprep.subr.mxu0 0.0
    %1243 = vmatpush1.msra.mxu0 0.0
    %1244 = vmatprep.subr.mxu0 0.0
    %1245 = vmatpush1.msra.mxu0 0.0
    %1246 = vmatprep.subr.mxu0 0.0
    %1247 = vmatpush1.msra.mxu0 0.0
    %1248 = vmatprep.mubr.f32.mxu0 0.0
    %1249 = vmatmul.mubr.f32.gmra.mrb[0].mxu0 %v1179
    %v1250 = vpop.f32.mrb[0].mxu0
    %v1251 = vadd.f32 0.0, %v1250
    %v1252 = vpop.f32.mrb[0].mxu0
    %1253 = vmatprep.mubr.f32.mxu0 0.0
    %1254 = vmatmul.mubr.f32.gmra.mrb[0].mxu0 %v1182
    %v1255 = vpop.f32.mrb[0].mxu0
    %v1256 = vadd.f32 0.0, %v1255
    %v1257 = vpop.f32.mrb[0].mxu0
    %1258 = vdwg.mxu0
    %v1260 = vsel %vm505, %v766, 0
    %v1263 = vsel %vm505, %v839, 0
    %1265 = vmatprep.subr.mxu0 0.0
    %1266 = vmatpush1.msra.mxu0 %v501
    %1267 = vmatprep.subr.mxu0 0.0
    %1268 = vmatpush1.msra.mxu0 0.0
    %1269 = vmatprep.subr.mxu0 0.0
    %1270 = vmatpush1.msra.mxu0 0.0
    %1271 = vmatprep.subr.mxu0 0.0
    %1272 = vmatpush1.msra.mxu0 0.0
    %1273 = vmatprep.subr.mxu0 0.0
    %1274 = vmatpush1.msra.mxu0 0.0
    %1275 = vmatprep.subr.mxu0 0.0
    %1276 = vmatpush1.msra.mxu0 0.0
    %1277 = vmatprep.subr.mxu0 0.0
    %1278 = vmatpush1.msra.mxu0 0.0
    %1279 = vmatprep.subr.mxu0 0.0
    %1280 = vmatpush1.msra.mxu0 0.0
    %1281 = vmatprep.subr.mxu0 0.0
    %1282 = vmatpush1.msra.mxu0 0.0
    %1283 = vmatprep.subr.mxu0 0.0
    %1284 = vmatpush1.msra.mxu0 0.0
    %1285 = vmatprep.subr.mxu0 0.0
    %1286 = vmatpush1.msra.mxu0 0.0
    %1287 = vmatprep.subr.mxu0 0.0
    %1288 = vmatpush1.msra.mxu0 0.0
    %1289 = vmatprep.subr.mxu0 0.0
    %1290 = vmatpush1.msra.mxu0 0.0
    %1291 = vmatprep.subr.mxu0 0.0
    %1292 = vmatpush1.msra.mxu0 0.0
    %1293 = vmatprep.subr.mxu0 0.0
    %1294 = vmatpush1.msra.mxu0 0.0
    %1295 = vmatprep.subr.mxu0 0.0
    %1296 = vmatpush1.msra.mxu0 0.0
    %1297 = vmatprep.subr.mxu0 0.0
    %1298 = vmatpush1.msra.mxu0 0.0
    %1299 = vmatprep.subr.mxu0 0.0
    %1300 = vmatpush1.msra.mxu0 0.0
    %1301 = vmatprep.subr.mxu0 0.0
    %1302 = vmatpush1.msra.mxu0 0.0
    %1303 = vmatprep.subr.mxu0 0.0
    %1304 = vmatpush1.msra.mxu0 0.0
    %1305 = vmatprep.subr.mxu0 0.0
    %1306 = vmatpush1.msra.mxu0 0.0
    %1307 = vmatprep.subr.mxu0 0.0
    %1308 = vmatpush1.msra.mxu0 0.0
    %1309 = vmatprep.subr.mxu0 0.0
    %1310 = vmatpush1.msra.mxu0 0.0
    %1311 = vmatprep.subr.mxu0 0.0
    %1312 = vmatpush1.msra.mxu0 0.0
    %1313 = vmatprep.subr.mxu0 0.0
    %1314 = vmatpush1.msra.mxu0 0.0
    %1315 = vmatprep.subr.mxu0 0.0
    %1316 = vmatpush1.msra.mxu0 0.0
    %1317 = vmatprep.subr.mxu0 0.0
    %1318 = vmatpush1.msra.mxu0 0.0
    %1319 = vmatprep.subr.mxu0 0.0
    %1320 = vmatpush1.msra.mxu0 0.0
    %1321 = vmatprep.subr.mxu0 0.0
    %1322 = vmatpush1.msra.mxu0 0.0
    %1323 = vmatprep.subr.mxu0 0.0
    %1324 = vmatpush1.msra.mxu0 0.0
    %1325 = vmatprep.subr.mxu0 0.0
    %1326 = vmatpush1.msra.mxu0 0.0
    %1327 = vmatprep.subr.mxu0 0.0
    %1328 = vmatpush1.msra.mxu0 0.0
    %1329 = vmatprep.mubr.f32.mxu0 0.0
    %1330 = vmatmul.mubr.f32.gmra.mrb[0].mxu0 %v1260
    %v1331 = vpop.f32.mrb[0].mxu0
    %v1332 = vadd.f32 %v1251, %v1331
    %v1333 = vpop.f32.mrb[0].mxu0
    %1334 = vmatprep.mubr.f32.mxu0 0.0
    %1335 = vmatmul.mubr.f32.gmra.mrb[0].mxu0 %v1263
    %v1336 = vpop.f32.mrb[0].mxu0
    %v1337 = vadd.f32 %v1256, %v1336
    %v1338 = vpop.f32.mrb[0].mxu0
    %1339 = vdwg.mxu0
    %1340 = vrot.lane.b32.xlu0 %v321, 112
    %v1341 = vpop.permute.xlu0 %1340
    %1342 = vrot.lane.b32.xlu0 %v407, 112
    %v1343 = vpop.permute.xlu0 %1342
    %v1344 = vsel %vm505, %v1341, 0
    %v1346 = vsel %vm505, %v1343, 0
    %1348 = vmatprep.subr.mxu0 0.0
    %1349 = vmatpush1.xpose.msra.mxu0 %v1346
    %1350 = vmatprep.subr.mxu0 0.0
    %1351 = vmatpush1.xpose.msra.mxu0 0.0
    %1352 = vmatprep.subr.mxu0 0.0
    %1353 = vmatpush1.xpose.msra.mxu0 0.0
    %1354 = vmatprep.subr.mxu0 0.0
    %1355 = vmatpush1.xpose.msra.mxu0 0.0
    %1356 = vmatprep.subr.mxu0 0.0
    %1357 = vmatpush1.xpose.msra.mxu0 0.0
    %1358 = vmatprep.subr.mxu0 0.0
    %1359 = vmatpush1.xpose.msra.mxu0 0.0
    %1360 = vmatprep.subr.mxu0 0.0
    %1361 = vmatpush1.xpose.msra.mxu0 0.0
    %1362 = vmatprep.subr.mxu0 0.0
    %1363 = vmatpush1.xpose.msra.mxu0 0.0
    %1364 = vmatprep.subr.mxu0 0.0
    %1365 = vmatpush1.xpose.msra.mxu0 0.0
    %1366 = vmatprep.subr.mxu0 0.0
    %1367 = vmatpush1.xpose.msra.mxu0 0.0
    %1368 = vmatprep.subr.mxu0 0.0
    %1369 = vmatpush1.xpose.msra.mxu0 0.0
    %1370 = vmatprep.subr.mxu0 0.0
    %1371 = vmatpush1.xpose.msra.mxu0 0.0
    %1372 = vmatprep.subr.mxu0 0.0
    %1373 = vmatpush1.xpose.msra.mxu0 0.0
    %1374 = vmatprep.subr.mxu0 0.0
    %1375 = vmatpush1.xpose.msra.mxu0 0.0
    %1376 = vmatprep.subr.mxu0 0.0
    %1377 = vmatpush1.xpose.msra.mxu0 0.0
    %1378 = vmatprep.subr.mxu0 0.0
    %1379 = vmatpush1.xpose.msra.mxu0 0.0
    %1380 = vmatprep.subr.mxu0 0.0
    %1381 = vmatpush1.xpose.msra.mxu0 0.0
    %1382 = vmatprep.subr.mxu0 0.0
    %1383 = vmatpush1.xpose.msra.mxu0 0.0
    %1384 = vmatprep.subr.mxu0 0.0
    %1385 = vmatpush1.xpose.msra.mxu0 0.0
    %1386 = vmatprep.subr.mxu0 0.0
    %1387 = vmatpush1.xpose.msra.mxu0 0.0
    %1388 = vmatprep.subr.mxu0 0.0
    %1389 = vmatpush1.xpose.msra.mxu0 0.0
    %1390 = vmatprep.subr.mxu0 0.0
    %1391 = vmatpush1.xpose.msra.mxu0 0.0
    %1392 = vmatprep.subr.mxu0 0.0
    %1393 = vmatpush1.xpose.msra.mxu0 0.0
    %1394 = vmatprep.subr.mxu0 0.0
    %1395 = vmatpush1.xpose.msra.mxu0 0.0
    %1396 = vmatprep.subr.mxu0 0.0
    %1397 = vmatpush1.xpose.msra.mxu0 0.0
    %1398 = vmatprep.subr.mxu0 0.0
    %1399 = vmatpush1.xpose.msra.mxu0 0.0
    %1400 = vmatprep.subr.mxu0 0.0
    %1401 = vmatpush1.xpose.msra.mxu0 0.0
    %1402 = vmatprep.subr.mxu0 0.0
    %1403 = vmatpush1.xpose.msra.mxu0 0.0
    %1404 = vmatprep.subr.mxu0 0.0
    %1405 = vmatpush1.xpose.msra.mxu0 0.0
    %1406 = vmatprep.subr.mxu0 0.0
    %1407 = vmatpush1.xpose.msra.mxu0 0.0
    %1408 = vmatprep.subr.mxu0 0.0
    %1409 = vmatpush1.xpose.msra.mxu0 0.0
    %1410 = vmatprep.subr.mxu0 0.0
    %1411 = vmatpush1.xpose.msra.mxu0 0.0
    %1412 = vmatprep.mubr.f32.mxu0 0.0
    %1413 = vmatmul.mubr.f32.gmra.mrb[0].mxu0 %v1344
    %v1414 = vpop.f32.mrb[0].mxu0
    %v1415 = vadd.f32 0.0, %v1414
    %v1416 = vpop.f32.mrb[0].mxu0
    %1417 = vdwg.mxu0
    %1418 = vrot.lane.b32.xlu0 %v326, 112
    %v1419 = vpop.permute.xlu0 %1418
    %1420 = vrot.lane.b32.xlu0 %v412, 112
    %v1421 = vpop.permute.xlu0 %1420
    %v1422 = vsel %vm505, %v1419, 0
    %v1424 = vsel %vm505, %v1421, 0
    %1426 = vmatprep.subr.mxu0 0.0
    %1427 = vmatpush1.xpose.msra.mxu0 %v1424
    %1428 = vmatprep.subr.mxu0 0.0
    %1429 = vmatpush1.xpose.msra.mxu0 0.0
    %1430 = vmatprep.subr.mxu0 0.0
    %1431 = vmatpush1.xpose.msra.mxu0 0.0
    %1432 = vmatprep.subr.mxu0 0.0
    %1433 = vmatpush1.xpose.msra.mxu0 0.0
    %1434 = vmatprep.subr.mxu0 0.0
    %1435 = vmatpush1.xpose.msra.mxu0 0.0
    %1436 = vmatprep.subr.mxu0 0.0
    %1437 = vmatpush1.xpose.msra.mxu0 0.0
    %1438 = vmatprep.subr.mxu0 0.0
    %1439 = vmatpush1.xpose.msra.mxu0 0.0
    %1440 = vmatprep.subr.mxu0 0.0
    %1441 = vmatpush1.xpose.msra.mxu0 0.0
    %1442 = vmatprep.subr.mxu0 0.0
    %1443 = vmatpush1.xpose.msra.mxu0 0.0
    %1444 = vmatprep.subr.mxu0 0.0
    %1445 = vmatpush1.xpose.msra.mxu0 0.0
    %1446 = vmatprep.subr.mxu0 0.0
    %1447 = vmatpush1.xpose.msra.mxu0 0.0
    %1448 = vmatprep.subr.mxu0 0.0
    %1449 = vmatpush1.xpose.msra.mxu0 0.0
    %1450 = vmatprep.subr.mxu0 0.0
    %1451 = vmatpush1.xpose.msra.mxu0 0.0
    %1452 = vmatprep.subr.mxu0 0.0
    %1453 = vmatpush1.xpose.msra.mxu0 0.0
    %1454 = vmatprep.subr.mxu0 0.0
    %1455 = vmatpush1.xpose.msra.mxu0 0.0
    %1456 = vmatprep.subr.mxu0 0.0
    %1457 = vmatpush1.xpose.msra.mxu0 0.0
    %1458 = vmatprep.subr.mxu0 0.0
    %1459 = vmatpush1.xpose.msra.mxu0 0.0
    %1460 = vmatprep.subr.mxu0 0.0
    %1461 = vmatpush1.xpose.msra.mxu0 0.0
    %1462 = vmatprep.subr.mxu0 0.0
    %1463 = vmatpush1.xpose.msra.mxu0 0.0
    %1464 = vmatprep.subr.mxu0 0.0
    %1465 = vmatpush1.xpose.msra.mxu0 0.0
    %1466 = vmatprep.subr.mxu0 0.0
    %1467 = vmatpush1.xpose.msra.mxu0 0.0
    %1468 = vmatprep.subr.mxu0 0.0
    %1469 = vmatpush1.xpose.msra.mxu0 0.0
    %1470 = vmatprep.subr.mxu0 0.0
    %1471 = vmatpush1.xpose.msra.mxu0 0.0
    %1472 = vmatprep.subr.mxu0 0.0
    %1473 = vmatpush1.xpose.msra.mxu0 0.0
    %1474 = vmatprep.subr.mxu0 0.0
    %1475 = vmatpush1.xpose.msra.mxu0 0.0
    %1476 = vmatprep.subr.mxu0 0.0
    %1477 = vmatpush1.xpose.msra.mxu0 0.0
    %1478 = vmatprep.subr.mxu0 0.0
    %1479 = vmatpush1.xpose.msra.mxu0 0.0
    %1480 = vmatprep.subr.mxu0 0.0
    %1481 = vmatpush1.xpose.msra.mxu0 0.0
    %1482 = vmatprep.subr.mxu0 0.0
    %1483 = vmatpush1.xpose.msra.mxu0 0.0
    %1484 = vmatprep.subr.mxu0 0.0
    %1485 = vmatpush1.xpose.msra.mxu0 0.0
    %1486 = vmatprep.subr.mxu0 0.0
    %1487 = vmatpush1.xpose.msra.mxu0 0.0
    %1488 = vmatprep.subr.mxu0 0.0
    %1489 = vmatpush1.xpose.msra.mxu0 0.0
    %1490 = vmatprep.mubr.f32.mxu0 0.0
    %1491 = vmatmul.mubr.f32.gmra.mrb[0].mxu0 %v1422
    %v1492 = vpop.f32.mrb[0].mxu0
    %v1493 = vadd.f32 0.0, %v1492
    %v1494 = vpop.f32.mrb[0].mxu0
    %1495 = vdwg.mxu0
    %v1496 = vmul.f32 %v1415, 0.35355338
    %v1497 = vmul.f32 %v1493, 0.35355338
    %v1498 = vadd.f32 %v1496, %v665
    %v1499 = vadd.f32 %v1497, %v669
    %v1500 = vsel %vm505, %v1498, -inf
    %1501 = vmax.xlane.f32.xlu0 %v1500
    %v1502 = vpop.xlane.xlu0 %1501
    %v1503 = vsel %vm505, %v1499, -inf
    %1504 = vmax.xlane.f32.xlu0 %v1503
    %v1505 = vpop.xlane.xlu0 %1504
    %v1506 = vsub.f32 %v1498, %v1502
    %v1507 = vsub.f32 %v1499, %v1505
    %v1508 = vmul.f32 %v1506, 1.442695
    %v1509 = vpow.pop %v1508
    %v1510 = vmul.f32 %v1507, 1.442695
    %v1511 = vpow.pop %v1510
    %v1512 = vsel %vm505, %v1509, 0.0
    %1513 = vadd.xlane.f32.xlu0 %v1512
    %v1514 = vpop.xlane.xlu0 %1513
    %v1515 = vsel %vm505, %v1511, 0.0
    %1516 = vadd.xlane.f32.xlu0 %v1515
    %v1517 = vpop.xlane.xlu0 %1516
    %v1518 = vrcp.pop %v1514
    %v1519 = vrcp.pop %v1517
    %v1520 = vmul.f32 %v1509, %v1518
    %v1521 = vmul.f32 %v1511, %v1519
    %1522 = vrot.lane.b32.xlu0 %v493, 112
    %v1523 = vpop.permute.xlu0 %1522
    %v1526 = vsel %vm505, %v1520, 0
    %1528 = vmatprep.subr.mxu0 0.0
    %1529 = vmatpush1.msra.mxu0 %v1523
    %1530 = vmatprep.subr.mxu0 0.0
    %1531 = vmatpush1.msra.mxu0 0.0
    %1532 = vmatprep.subr.mxu0 0.0
    %1533 = vmatpush1.msra.mxu0 0.0
    %1534 = vmatprep.subr.mxu0 0.0
    %1535 = vmatpush1.msra.mxu0 0.0
    %1536 = vmatprep.subr.mxu0 0.0
    %1537 = vmatpush1.msra.mxu0 0.0
    %1538 = vmatprep.subr.mxu0 0.0
    %1539 = vmatpush1.msra.mxu0 0.0
    %1540 = vmatprep.subr.mxu0 0.0
    %1541 = vmatpush1.msra.mxu0 0.0
    %1542 = vmatprep.subr.mxu0 0.0
    %1543 = vmatpush1.msra.mxu0 0.0
    %1544 = vmatprep.subr.mxu0 0.0
    %1545 = vmatpush1.msra.mxu0 0.0
    %1546 = vmatprep.subr.mxu0 0.0
    %1547 = vmatpush1.msra.mxu0 0.0
    %1548 = vmatprep.subr.mxu0 0.0
    %1549 = vmatpush1.msra.mxu0 0.0
    %1550 = vmatprep.subr.mxu0 0.0
    %1551 = vmatpush1.msra.mxu0 0.0
    %1552 = vmatprep.subr.mxu0 0.0
    %1553 = vmatpush1.msra.mxu0 0.0
    %1554 = vmatprep.subr.mxu0 0.0
    %1555 = vmatpush1.msra.mxu0 0.0
    %1556 = vmatprep.subr.mxu0 0.0
    %1557 = vmatpush1.msra.mxu0 0.0
    %1558 = vmatprep.subr.mxu0 0.0
    %1559 = vmatpush1.msra.mxu0 0.0
    %1560 = vmatprep.subr.mxu0 0.0
    %1561 = vmatpush1.msra.mxu0 0.0
    %1562 = vmatprep.subr.mxu0 0.0
    %1563 = vmatpush1.msra.mxu0 0.0
    %1564 = vmatprep.subr.mxu0 0.0
    %1565 = vmatpush1.msra.mxu0 0.0
    %1566 = vmatprep.subr.mxu0 0.0
    %1567 = vmatpush1.msra.mxu0 0.0
    %1568 = vmatprep.subr.mxu0 0.0
    %1569 = vmatpush1.msra.mxu0 0.0
    %1570 = vmatprep.subr.mxu0 0.0
    %1571 = vmatpush1.msra.mxu0 0.0
    %1572 = vmatprep.subr.mxu0 0.0
    %1573 = vmatpush1.msra.mxu0 0.0
    %1574 = vmatprep.subr.mxu0 0.0
    %1575 = vmatpush1.msra.mxu0 0.0
    %1576 = vmatprep.subr.mxu0 0.0
    %1577 = vmatpush1.msra.mxu0 0.0
    %1578 = vmatprep.subr.mxu0 0.0
    %1579 = vmatpush1.msra.mxu0 0.0
    %1580 = vmatprep.subr.mxu0 0.0
    %1581 = vmatpush1.msra.mxu0 0.0
    %1582 = vmatprep.subr.mxu0 0.0
    %1583 = vmatpush1.msra.mxu0 0.0
    %1584 = vmatprep.subr.mxu0 0.0
    %1585 = vmatpush1.msra.mxu0 0.0
    %1586 = vmatprep.subr.mxu0 0.0
    %1587 = vmatpush1.msra.mxu0 0.0
    %1588 = vmatprep.subr.mxu0 0.0
    %1589 = vmatpush1.msra.mxu0 0.0
    %1590 = vmatprep.subr.mxu0 0.0
    %1591 = vmatpush1.msra.mxu0 0.0
    %1592 = vmatprep.mubr.f32.mxu0 0.0
    %1593 = vmatmul.mubr.f32.gmra.mrb[0].mxu0 %v1526
    %v1594 = vpop.f32.mrb[0].mxu0
    %v1595 = vadd.f32 0.0, %v1594
    %v1596 = vpop.f32.mrb[0].mxu0
    %1597 = vdwg.mxu0
    %1598 = vrot.lane.b32.xlu0 %v498, 112
    %v1599 = vpop.permute.xlu0 %1598
    %v1602 = vsel %vm505, %v1521, 0
    %1604 = vmatprep.subr.mxu0 0.0
    %1605 = vmatpush1.msra.mxu0 %v1599
    %1606 = vmatprep.subr.mxu0 0.0
    %1607 = vmatpush1.msra.mxu0 0.0
    %1608 = vmatprep.subr.mxu0 0.0
    %1609 = vmatpush1.msra.mxu0 0.0
    %1610 = vmatprep.subr.mxu0 0.0
    %1611 = vmatpush1.msra.mxu0 0.0
    %1612 = vmatprep.subr.mxu0 0.0
    %1613 = vmatpush1.msra.mxu0 0.0
    %1614 = vmatprep.subr.mxu0 0.0
    %1615 = vmatpush1.msra.mxu0 0.0
    %1616 = vmatprep.subr.mxu0 0.0
    %1617 = vmatpush1.msra.mxu0 0.0
    %1618 = vmatprep.subr.mxu0 0.0
    %1619 = vmatpush1.msra.mxu0 0.0
    %1620 = vmatprep.subr.mxu0 0.0
    %1621 = vmatpush1.msra.mxu0 0.0
    %1622 = vmatprep.subr.mxu0 0.0
    %1623 = vmatpush1.msra.mxu0 0.0
    %1624 = vmatprep.subr.mxu0 0.0
    %1625 = vmatpush1.msra.mxu0 0.0
    %1626 = vmatprep.subr.mxu0 0.0
    %1627 = vmatpush1.msra.mxu0 0.0
    %1628 = vmatprep.subr.mxu0 0.0
    %1629 = vmatpush1.msra.mxu0 0.0
    %1630 = vmatprep.subr.mxu0 0.0
    %1631 = vmatpush1.msra.mxu0 0.0
    %1632 = vmatprep.subr.mxu0 0.0
    %1633 = vmatpush1.msra.mxu0 0.0
    %1634 = vmatprep.subr.mxu0 0.0
    %1635 = vmatpush1.msra.mxu0 0.0
    %1636 = vmatprep.subr.mxu0 0.0
    %1637 = vmatpush1.msra.mxu0 0.0
    %1638 = vmatprep.subr.mxu0 0.0
    %1639 = vmatpush1.msra.mxu0 0.0
    %1640 = vmatprep.subr.mxu0 0.0
    %1641 = vmatpush1.msra.mxu0 0.0
    %1642 = vmatprep.subr.mxu0 0.0
    %1643 = vmatpush1.msra.mxu0 0.0
    %1644 = vmatprep.subr.mxu0 0.0
    %1645 = vmatpush1.msra.mxu0 0.0
    %1646 = vmatprep.subr.mxu0 0.0
    %1647 = vmatpush1.msra.mxu0 0.0
    %1648 = vmatprep.subr.mxu0 0.0
    %1649 = vmatpush1.msra.mxu0 0.0
    %1650 = vmatprep.subr.mxu0 0.0
    %1651 = vmatpush1.msra.mxu0 0.0
    %1652 = vmatprep.subr.mxu0 0.0
    %1653 = vmatpush1.msra.mxu0 0.0
    %1654 = vmatprep.subr.mxu0 0.0
    %1655 = vmatpush1.msra.mxu0 0.0
    %1656 = vmatprep.subr.mxu0 0.0
    %1657 = vmatpush1.msra.mxu0 0.0
    %1658 = vmatprep.subr.mxu0 0.0
    %1659 = vmatpush1.msra.mxu0 0.0
    %1660 = vmatprep.subr.mxu0 0.0
    %1661 = vmatpush1.msra.mxu0 0.0
    %1662 = vmatprep.subr.mxu0 0.0
    %1663 = vmatpush1.msra.mxu0 0.0
    %1664 = vmatprep.subr.mxu0 0.0
    %1665 = vmatpush1.msra.mxu0 0.0
    %1666 = vmatprep.subr.mxu0 0.0
    %1667 = vmatpush1.msra.mxu0 0.0
    %1668 = vmatprep.mubr.f32.mxu0 0.0
    %1669 = vmatmul.mubr.f32.gmra.mrb[0].mxu0 %v1602
    %v1670 = vpop.f32.mrb[0].mxu0
    %v1671 = vadd.f32 0.0, %v1670
    %v1672 = vpop.f32.mrb[0].mxu0
    %1673 = vdwg.mxu0
    %v1675 = vsel %vm505, %v1595, 0
    %v1678 = vsel %vm505, %v1671, 0
    %1680 = vmatprep.subr.mxu0 0.0
    %1681 = vmatpush1.msra.mxu0 %v503
    %1682 = vmatprep.subr.mxu0 0.0
    %1683 = vmatpush1.msra.mxu0 0.0
    %1684 = vmatprep.subr.mxu0 0.0
    %1685 = vmatpush1.msra.mxu0 0.0
    %1686 = vmatprep.subr.mxu0 0.0
    %1687 = vmatpush1.msra.mxu0 0.0
    %1688 = vmatprep.subr.mxu0 0.0
    %1689 = vmatpush1.msra.mxu0 0.0
    %1690 = vmatprep.subr.mxu0 0.0
    %1691 = vmatpush1.msra.mxu0 0.0
    %1692 = vmatprep.subr.mxu0 0.0
    %1693 = vmatpush1.msra.mxu0 0.0
    %1694 = vmatprep.subr.mxu0 0.0
    %1695 = vmatpush1.msra.mxu0 0.0
    %1696 = vmatprep.subr.mxu0 0.0
    %1697 = vmatpush1.msra.mxu0 0.0
    %1698 = vmatprep.subr.mxu0 0.0
    %1699 = vmatpush1.msra.mxu0 0.0
    %1700 = vmatprep.subr.mxu0 0.0
    %1701 = vmatpush1.msra.mxu0 0.0
    %1702 = vmatprep.subr.mxu0 0.0
    %1703 = vmatpush1.msra.mxu0 0.0
    %1704 = vmatprep.subr.mxu0 0.0
    %1705 = vmatpush1.msra.mxu0 0.0
    %1706 = vmatprep.subr.mxu0 0.0
    %1707 = vmatpush1.msra.mxu0 0.0
    %1708 = vmatprep.subr.mxu0 0.0
    %1709 = vmatpush1.msra.mxu0 0.0
    %1710 = vmatprep.subr.mxu0 0.0
    %1711 = vmatpush1.msra.mxu0 0.0
    %1712 = vmatprep.subr.mxu0 0.0
    %1713 = vmatpush1.msra.mxu0 0.0
    %1714 = vmatprep.subr.mxu0 0.0
    %1715 = vmatpush1.msra.mxu0 0.0
    %1716 = vmatprep.subr.mxu0 0.0
    %1717 = vmatpush1.msra.mxu0 0.0
    %1718 = vmatprep.subr.mxu0 0.0
    %1719 = vmatpush1.msra.mxu0 0.0
    %1720 = vmatprep.subr.mxu0 0.0
    %1721 = vmatpush1.msra.mxu0 0.0
    %1722 = vmatprep.subr.mxu0 0.0
    %1723 = vmatpush1.msra.mxu0 0.0
    %1724 = vmatprep.subr.mxu0 0.0
    %1725 = vmatpush1.msra.mxu0 0.0
    %1726 = vmatprep.subr.mxu0 0.0
    %1727 = vmatpush1.msra.mxu0 0.0
    %1728 = vmatprep.subr.mxu0 0.0
    %1729 = vmatpush1.msra.mxu0 0.0
    %1730 = vmatprep.subr.mxu0 0.0
    %1731 = vmatpush1.msra.mxu0 0.0
    %1732 = vmatprep.subr.mxu0 0.0
    %1733 = vmatpush1.msra.mxu0 0.0
    %1734 = vmatprep.subr.mxu0 0.0
    %1735 = vmatpush1.msra.mxu0 0.0
    %1736 = vmatprep.subr.mxu0 0.0
    %1737 = vmatpush1.msra.mxu0 0.0
    %1738 = vmatprep.subr.mxu0 0.0
    %1739 = vmatpush1.msra.mxu0 0.0
    %1740 = vmatprep.subr.mxu0 0.0
    %1741 = vmatpush1.msra.mxu0 0.0
    %1742 = vmatprep.subr.mxu0 0.0
    %1743 = vmatpush1.msra.mxu0 0.0
    %1744 = vmatprep.mubr.f32.mxu0 0.0
    %1745 = vmatmul.mubr.f32.gmra.mrb[0].mxu0 %v1675
    %v1746 = vpop.f32.mrb[0].mxu0
    %v1747 = vadd.f32 0.0, %v1746
    %v1748 = vpop.f32.mrb[0].mxu0
    %1749 = vmatprep.mubr.f32.mxu0 0.0
    %1750 = vmatmul.mubr.f32.gmra.mrb[0].mxu0 %v1678
    %v1751 = vpop.f32.mrb[0].mxu0
    %v1752 = vadd.f32 0.0, %v1751
    %v1753 = vpop.f32.mrb[0].mxu0
    %1754 = vdwg.mxu0
    %v1755 = vadd.f32 %v1332, %v1747
    %v1756 = vadd.f32 %v1337, %v1752
    %1757 = vrot.lane.b32.xlu0 %v321, 104
    %v1758 = vpop.permute.xlu0 %1757
    %1759 = vrot.lane.b32.xlu0 %v407, 104
    %v1760 = vpop.permute.xlu0 %1759
    %v1761 = vsel %vm505, %v1758, 0
    %v1763 = vsel %vm505, %v1760, 0
    %1765 = vmatprep.subr.mxu0 0.0
    %1766 = vmatpush1.xpose.msra.mxu0 %v1763
    %1767 = vmatprep.subr.mxu0 0.0
    %1768 = vmatpush1.xpose.msra.mxu0 0.0
    %1769 = vmatprep.subr.mxu0 0.0
    %1770 = vmatpush1.xpose.msra.mxu0 0.0
    %1771 = vmatprep.subr.mxu0 0.0
    %1772 = vmatpush1.xpose.msra.mxu0 0.0
    %1773 = vmatprep.subr.mxu0 0.0
    %1774 = vmatpush1.xpose.msra.mxu0 0.0
    %1775 = vmatprep.subr.mxu0 0.0
    %1776 = vmatpush1.xpose.msra.mxu0 0.0
    %1777 = vmatprep.subr.mxu0 0.0
    %1778 = vmatpush1.xpose.msra.mxu0 0.0
    %1779 = vmatprep.subr.mxu0 0.0
    %1780 = vmatpush1.xpose.msra.mxu0 0.0
    %1781 = vmatprep.subr.mxu0 0.0
    %1782 = vmatpush1.xpose.msra.mxu0 0.0
    %1783 = vmatprep.subr.mxu0 0.0
    %1784 = vmatpush1.xpose.msra.mxu0 0.0
    %1785 = vmatprep.subr.mxu0 0.0
    %1786 = vmatpush1.xpose.msra.mxu0 0.0
    %1787 = vmatprep.subr.mxu0 0.0
    %1788 = vmatpush1.xpose.msra.mxu0 0.0
    %1789 = vmatprep.subr.mxu0 0.0
    %1790 = vmatpush1.xpose.msra.mxu0 0.0
    %1791 = vmatprep.subr.mxu0 0.0
    %1792 = vmatpush1.xpose.msra.mxu0 0.0
    %1793 = vmatprep.subr.mxu0 0.0
    %1794 = vmatpush1.xpose.msra.mxu0 0.0
    %1795 = vmatprep.subr.mxu0 0.0
    %1796 = vmatpush1.xpose.msra.mxu0 0.0
    %1797 = vmatprep.subr.mxu0 0.0
    %1798 = vmatpush1.xpose.msra.mxu0 0.0
    %1799 = vmatprep.subr.mxu0 0.0
    %1800 = vmatpush1.xpose.msra.mxu0 0.0
    %1801 = vmatprep.subr.mxu0 0.0
    %1802 = vmatpush1.xpose.msra.mxu0 0.0
    %1803 = vmatprep.subr.mxu0 0.0
    %1804 = vmatpush1.xpose.msra.mxu0 0.0
    %1805 = vmatprep.subr.mxu0 0.0
    %1806 = vmatpush1.xpose.msra.mxu0 0.0
    %1807 = vmatprep.subr.mxu0 0.0
    %1808 = vmatpush1.xpose.msra.mxu0 0.0
    %1809 = vmatprep.subr.mxu0 0.0
    %1810 = vmatpush1.xpose.msra.mxu0 0.0
    %1811 = vmatprep.subr.mxu0 0.0
    %1812 = vmatpush1.xpose.msra.mxu0 0.0
    %1813 = vmatprep.subr.mxu0 0.0
    %1814 = vmatpush1.xpose.msra.mxu0 0.0
    %1815 = vmatprep.subr.mxu0 0.0
    %1816 = vmatpush1.xpose.msra.mxu0 0.0
    %1817 = vmatprep.subr.mxu0 0.0
    %1818 = vmatpush1.xpose.msra.mxu0 0.0
    %1819 = vmatprep.subr.mxu0 0.0
    %1820 = vmatpush1.xpose.msra.mxu0 0.0
    %1821 = vmatprep.subr.mxu0 0.0
    %1822 = vmatpush1.xpose.msra.mxu0 0.0
    %1823 = vmatprep.subr.mxu0 0.0
    %1824 = vmatpush1.xpose.msra.mxu0 0.0
    %1825 = vmatprep.subr.mxu0 0.0
    %1826 = vmatpush1.xpose.msra.mxu0 0.0
    %1827 = vmatprep.subr.mxu0 0.0
    %1828 = vmatpush1.xpose.msra.mxu0 0.0
    %1829 = vmatprep.mubr.f32.mxu0 0.0
    %1830 = vmatmul.mubr.f32.gmra.mrb[0].mxu0 %v1761
    %v1831 = vpop.f32.mrb[0].mxu0
    %v1832 = vadd.f32 0.0, %v1831
    %v1833 = vpop.f32.mrb[0].mxu0
    %1834 = vdwg.mxu0
    %1835 = vrot.lane.b32.xlu0 %v326, 104
    %v1836 = vpop.permute.xlu0 %1835
    %1837 = vrot.lane.b32.xlu0 %v412, 104
    %v1838 = vpop.permute.xlu0 %1837
    %v1839 = vsel %vm505, %v1836, 0
    %v1841 = vsel %vm505, %v1838, 0
    %1843 = vmatprep.subr.mxu0 0.0
    %1844 = vmatpush1.xpose.msra.mxu0 %v1841
    %1845 = vmatprep.subr.mxu0 0.0
    %1846 = vmatpush1.xpose.msra.mxu0 0.0
    %1847 = vmatprep.subr.mxu0 0.0
    %1848 = vmatpush1.xpose.msra.mxu0 0.0
    %1849 = vmatprep.subr.mxu0 0.0
    %1850 = vmatpush1.xpose.msra.mxu0 0.0
    %1851 = vmatprep.subr.mxu0 0.0
    %1852 = vmatpush1.xpose.msra.mxu0 0.0
    %1853 = vmatprep.subr.mxu0 0.0
    %1854 = vmatpush1.xpose.msra.mxu0 0.0
    %1855 = vmatprep.subr.mxu0 0.0
    %1856 = vmatpush1.xpose.msra.mxu0 0.0
    %1857 = vmatprep.subr.mxu0 0.0
    %1858 = vmatpush1.xpose.msra.mxu0 0.0
    %1859 = vmatprep.subr.mxu0 0.0
    %1860 = vmatpush1.xpose.msra.mxu0 0.0
    %1861 = vmatprep.subr.mxu0 0.0
    %1862 = vmatpush1.xpose.msra.mxu0 0.0
    %1863 = vmatprep.subr.mxu0 0.0
    %1864 = vmatpush1.xpose.msra.mxu0 0.0
    %1865 = vmatprep.subr.mxu0 0.0
    %1866 = vmatpush1.xpose.msra.mxu0 0.0
    %1867 = vmatprep.subr.mxu0 0.0
    %1868 = vmatpush1.xpose.msra.mxu0 0.0
    %1869 = vmatprep.subr.mxu0 0.0
    %1870 = vmatpush1.xpose.msra.mxu0 0.0
    %1871 = vmatprep.subr.mxu0 0.0
    %1872 = vmatpush1.xpose.msra.mxu0 0.0
    %1873 = vmatprep.subr.mxu0 0.0
    %1874 = vmatpush1.xpose.msra.mxu0 0.0
    %1875 = vmatprep.subr.mxu0 0.0
    %1876 = vmatpush1.xpose.msra.mxu0 0.0
    %1877 = vmatprep.subr.mxu0 0.0
    %1878 = vmatpush1.xpose.msra.mxu0 0.0
    %1879 = vmatprep.subr.mxu0 0.0
    %1880 = vmatpush1.xpose.msra.mxu0 0.0
    %1881 = vmatprep.subr.mxu0 0.0
    %1882 = vmatpush1.xpose.msra.mxu0 0.0
    %1883 = vmatprep.subr.mxu0 0.0
    %1884 = vmatpush1.xpose.msra.mxu0 0.0
    %1885 = vmatprep.subr.mxu0 0.0
    %1886 = vmatpush1.xpose.msra.mxu0 0.0
    %1887 = vmatprep.subr.mxu0 0.0
    %1888 = vmatpush1.xpose.msra.mxu0 0.0
    %1889 = vmatprep.subr.mxu0 0.0
    %1890 = vmatpush1.xpose.msra.mxu0 0.0
    %1891 = vmatprep.subr.mxu0 0.0
    %1892 = vmatpush1.xpose.msra.mxu0 0.0
    %1893 = vmatprep.subr.mxu0 0.0
    %1894 = vmatpush1.xpose.msra.mxu0 0.0
    %1895 = vmatprep.subr.mxu0 0.0
    %1896 = vmatpush1.xpose.msra.mxu0 0.0
    %1897 = vmatprep.subr.mxu0 0.0
    %1898 = vmatpush1.xpose.msra.mxu0 0.0
    %1899 = vmatprep.subr.mxu0 0.0
    %1900 = vmatpush1.xpose.msra.mxu0 0.0
    %1901 = vmatprep.subr.mxu0 0.0
    %1902 = vmatpush1.xpose.msra.mxu0 0.0
    %1903 = vmatprep.subr.mxu0 0.0
    %1904 = vmatpush1.xpose.msra.mxu0 0.0
    %1905 = vmatprep.subr.mxu0 0.0
    %1906 = vmatpush1.xpose.msra.mxu0 0.0
    %1907 = vmatprep.mubr.f32.mxu0 0.0
    %1908 = vmatmul.mubr.f32.gmra.mrb[0].mxu0 %v1839
    %v1909 = vpop.f32.mrb[0].mxu0
    %v1910 = vadd.f32 0.0, %v1909
    %v1911 = vpop.f32.mrb[0].mxu0
    %1912 = vdwg.mxu0
    %v1913 = vmul.f32 %v1832, 0.35355338
    %v1914 = vmul.f32 %v1910, 0.35355338
    %v1915 = vadd.f32 %v1913, %v665
    %v1916 = vadd.f32 %v1914, %v669
    %v1917 = vsel %vm505, %v1915, -inf
    %1918 = vmax.xlane.f32.xlu0 %v1917
    %v1919 = vpop.xlane.xlu0 %1918
    %v1920 = vsel %vm505, %v1916, -inf
    %1921 = vmax.xlane.f32.xlu0 %v1920
    %v1922 = vpop.xlane.xlu0 %1921
    %v1923 = vsub.f32 %v1915, %v1919
    %v1924 = vsub.f32 %v1916, %v1922
    %v1925 = vmul.f32 %v1923, 1.442695
    %v1926 = vpow.pop %v1925
    %v1927 = vmul.f32 %v1924, 1.442695
    %v1928 = vpow.pop %v1927
    %v1929 = vsel %vm505, %v1926, 0.0
    %1930 = vadd.xlane.f32.xlu0 %v1929
    %v1931 = vpop.xlane.xlu0 %1930
    %v1932 = vsel %vm505, %v1928, 0.0
    %1933 = vadd.xlane.f32.xlu0 %v1932
    %v1934 = vpop.xlane.xlu0 %1933
    %v1935 = vrcp.pop %v1931
    %v1936 = vrcp.pop %v1934
    %v1937 = vmul.f32 %v1926, %v1935
    %v1938 = vmul.f32 %v1928, %v1936
    %1939 = vrot.lane.b32.xlu0 %v493, 104
    %v1940 = vpop.permute.xlu0 %1939
    %v1943 = vsel %vm505, %v1937, 0
    %1945 = vmatprep.subr.mxu0 0.0
    %1946 = vmatpush1.msra.mxu0 %v1940
    %1947 = vmatprep.subr.mxu0 0.0
    %1948 = vmatpush1.msra.mxu0 0.0
    %1949 = vmatprep.subr.mxu0 0.0
    %1950 = vmatpush1.msra.mxu0 0.0
    %1951 = vmatprep.subr.mxu0 0.0
    %1952 = vmatpush1.msra.mxu0 0.0
    %1953 = vmatprep.subr.mxu0 0.0
    %1954 = vmatpush1.msra.mxu0 0.0
    %1955 = vmatprep.subr.mxu0 0.0
    %1956 = vmatpush1.msra.mxu0 0.0
    %1957 = vmatprep.subr.mxu0 0.0
    %1958 = vmatpush1.msra.mxu0 0.0
    %1959 = vmatprep.subr.mxu0 0.0
    %1960 = vmatpush1.msra.mxu0 0.0
    %1961 = vmatprep.subr.mxu0 0.0
    %1962 = vmatpush1.msra.mxu0 0.0
    %1963 = vmatprep.subr.mxu0 0.0
    %1964 = vmatpush1.msra.mxu0 0.0
    %1965 = vmatprep.subr.mxu0 0.0
    %1966 = vmatpush1.msra.mxu0 0.0
    %1967 = vmatprep.subr.mxu0 0.0
    %1968 = vmatpush1.msra.mxu0 0.0
    %1969 = vmatprep.subr.mxu0 0.0
    %1970 = vmatpush1.msra.mxu0 0.0
    %1971 = vmatprep.subr.mxu0 0.0
    %1972 = vmatpush1.msra.mxu0 0.0
    %1973 = vmatprep.subr.mxu0 0.0
    %1974 = vmatpush1.msra.mxu0 0.0
    %1975 = vmatprep.subr.mxu0 0.0
    %1976 = vmatpush1.msra.mxu0 0.0
    %1977 = vmatprep.subr.mxu0 0.0
    %1978 = vmatpush1.msra.mxu0 0.0
    %1979 = vmatprep.subr.mxu0 0.0
    %1980 = vmatpush1.msra.mxu0 0.0
    %1981 = vmatprep.subr.mxu0 0.0
    %1982 = vmatpush1.msra.mxu0 0.0
    %1983 = vmatprep.subr.mxu0 0.0
    %1984 = vmatpush1.msra.mxu0 0.0
    %1985 = vmatprep.subr.mxu0 0.0
    %1986 = vmatpush1.msra.mxu0 0.0
    %1987 = vmatprep.subr.mxu0 0.0
    %1988 = vmatpush1.msra.mxu0 0.0
    %1989 = vmatprep.subr.mxu0 0.0
    %1990 = vmatpush1.msra.mxu0 0.0
    %1991 = vmatprep.subr.mxu0 0.0
    %1992 = vmatpush1.msra.mxu0 0.0
    %1993 = vmatprep.subr.mxu0 0.0
    %1994 = vmatpush1.msra.mxu0 0.0
    %1995 = vmatprep.subr.mxu0 0.0
    %1996 = vmatpush1.msra.mxu0 0.0
    %1997 = vmatprep.subr.mxu0 0.0
    %1998 = vmatpush1.msra.mxu0 0.0
    %1999 = vmatprep.subr.mxu0 0.0
    %2000 = vmatpush1.msra.mxu0 0.0
    %2001 = vmatprep.subr.mxu0 0.0
    %2002 = vmatpush1.msra.mxu0 0.0
    %2003 = vmatprep.subr.mxu0 0.0
    %2004 = vmatpush1.msra.mxu0 0.0
    %2005 = vmatprep.subr.mxu0 0.0
    %2006 = vmatpush1.msra.mxu0 0.0
    %2007 = vmatprep.subr.mxu0 0.0
    %2008 = vmatpush1.msra.mxu0 0.0
    %2009 = vmatprep.mubr.f32.mxu0 0.0
    %2010 = vmatmul.mubr.f32.gmra.mrb[0].mxu0 %v1943
    %v2011 = vpop.f32.mrb[0].mxu0
    %v2012 = vadd.f32 0.0, %v2011
    %v2013 = vpop.f32.mrb[0].mxu0
    %2014 = vdwg.mxu0
    %2015 = vrot.lane.b32.xlu0 %v498, 104
    %v2016 = vpop.permute.xlu0 %2015
    %v2019 = vsel %vm505, %v1938, 0
    %2021 = vmatprep.subr.mxu0 0.0
    %2022 = vmatpush1.msra.mxu0 %v2016
    %2023 = vmatprep.subr.mxu0 0.0
    %2024 = vmatpush1.msra.mxu0 0.0
    %2025 = vmatprep.subr.mxu0 0.0
    %2026 = vmatpush1.msra.mxu0 0.0
    %2027 = vmatprep.subr.mxu0 0.0
    %2028 = vmatpush1.msra.mxu0 0.0
    %2029 = vmatprep.subr.mxu0 0.0
    %2030 = vmatpush1.msra.mxu0 0.0
    %2031 = vmatprep.subr.mxu0 0.0
    %2032 = vmatpush1.msra.mxu0 0.0
    %2033 = vmatprep.subr.mxu0 0.0
    %2034 = vmatpush1.msra.mxu0 0.0
    %2035 = vmatprep.subr.mxu0 0.0
    %2036 = vmatpush1.msra.mxu0 0.0
    %2037 = vmatprep.subr.mxu0 0.0
    %2038 = vmatpush1.msra.mxu0 0.0
    %2039 = vmatprep.subr.mxu0 0.0
    %2040 = vmatpush1.msra.mxu0 0.0
    %2041 = vmatprep.subr.mxu0 0.0
    %2042 = vmatpush1.msra.mxu0 0.0
    %2043 = vmatprep.subr.mxu0 0.0
    %2044 = vmatpush1.msra.mxu0 0.0
    %2045 = vmatprep.subr.mxu0 0.0
    %2046 = vmatpush1.msra.mxu0 0.0
    %2047 = vmatprep.subr.mxu0 0.0
    %2048 = vmatpush1.msra.mxu0 0.0
    %2049 = vmatprep.subr.mxu0 0.0
    %2050 = vmatpush1.msra.mxu0 0.0
    %2051 = vmatprep.subr.mxu0 0.0
    %2052 = vmatpush1.msra.mxu0 0.0
    %2053 = vmatprep.subr.mxu0 0.0
    %2054 = vmatpush1.msra.mxu0 0.0
    %2055 = vmatprep.subr.mxu0 0.0
    %2056 = vmatpush1.msra.mxu0 0.0
    %2057 = vmatprep.subr.mxu0 0.0
    %2058 = vmatpush1.msra.mxu0 0.0
    %2059 = vmatprep.subr.mxu0 0.0
    %2060 = vmatpush1.msra.mxu0 0.0
    %2061 = vmatprep.subr.mxu0 0.0
    %2062 = vmatpush1.msra.mxu0 0.0
    %2063 = vmatprep.subr.mxu0 0.0
    %2064 = vmatpush1.msra.mxu0 0.0
    %2065 = vmatprep.subr.mxu0 0.0
    %2066 = vmatpush1.msra.mxu0 0.0
    %2067 = vmatprep.subr.mxu0 0.0
    %2068 = vmatpush1.msra.mxu0 0.0
    %2069 = vmatprep.subr.mxu0 0.0
    %2070 = vmatpush1.msra.mxu0 0.0
    %2071 = vmatprep.subr.mxu0 0.0
    %2072 = vmatpush1.msra.mxu0 0.0
    %2073 = vmatprep.subr.mxu0 0.0
    %2074 = vmatpush1.msra.mxu0 0.0
    %2075 = vmatprep.subr.mxu0 0.0
    %2076 = vmatpush1.msra.mxu0 0.0
    %2077 = vmatprep.subr.mxu0 0.0
    %2078 = vmatpush1.msra.mxu0 0.0
    %2079 = vmatprep.subr.mxu0 0.0
    %2080 = vmatpush1.msra.mxu0 0.0
    %2081 = vmatprep.subr.mxu0 0.0
    %2082 = vmatpush1.msra.mxu0 0.0
    %2083 = vmatprep.subr.mxu0 0.0
    %2084 = vmatpush1.msra.mxu0 0.0
    %2085 = vmatprep.mubr.f32.mxu0 0.0
    %2086 = vmatmul.mubr.f32.gmra.mrb[0].mxu0 %v2019
    %v2087 = vpop.f32.mrb[0].mxu0
    %v2088 = vadd.f32 0.0, %v2087
    %v2089 = vpop.f32.mrb[0].mxu0
    %2090 = vdwg.mxu0
    %v2092 = vsel %vm505, %v2012, 0
    %v2095 = vsel %vm505, %v2088, 0
    %2097 = vmatprep.subr.mxu0 0.0
    %2098 = vmatpush1.msra.mxu0 %v504
    %2099 = vmatprep.subr.mxu0 0.0
    %2100 = vmatpush1.msra.mxu0 0.0
    %2101 = vmatprep.subr.mxu0 0.0
    %2102 = vmatpush1.msra.mxu0 0.0
    %2103 = vmatprep.subr.mxu0 0.0
    %2104 = vmatpush1.msra.mxu0 0.0
    %2105 = vmatprep.subr.mxu0 0.0
    %2106 = vmatpush1.msra.mxu0 0.0
    %2107 = vmatprep.subr.mxu0 0.0
    %2108 = vmatpush1.msra.mxu0 0.0
    %2109 = vmatprep.subr.mxu0 0.0
    %2110 = vmatpush1.msra.mxu0 0.0
    %2111 = vmatprep.subr.mxu0 0.0
    %2112 = vmatpush1.msra.mxu0 0.0
    %2113 = vmatprep.subr.mxu0 0.0
    %2114 = vmatpush1.msra.mxu0 0.0
    %2115 = vmatprep.subr.mxu0 0.0
    %2116 = vmatpush1.msra.mxu0 0.0
    %2117 = vmatprep.subr.mxu0 0.0
    %2118 = vmatpush1.msra.mxu0 0.0
    %2119 = vmatprep.subr.mxu0 0.0
    %2120 = vmatpush1.msra.mxu0 0.0
    %2121 = vmatprep.subr.mxu0 0.0
    %2122 = vmatpush1.msra.mxu0 0.0
    %2123 = vmatprep.subr.mxu0 0.0
    %2124 = vmatpush1.msra.mxu0 0.0
    %2125 = vmatprep.subr.mxu0 0.0
    %2126 = vmatpush1.msra.mxu0 0.0
    %2127 = vmatprep.subr.mxu0 0.0
    %2128 = vmatpush1.msra.mxu0 0.0
    %2129 = vmatprep.subr.mxu0 0.0
    %2130 = vmatpush1.msra.mxu0 0.0
    %2131 = vmatprep.subr.mxu0 0.0
    %2132 = vmatpush1.msra.mxu0 0.0
    %2133 = vmatprep.subr.mxu0 0.0
    %2134 = vmatpush1.msra.mxu0 0.0
    %2135 = vmatprep.subr.mxu0 0.0
    %2136 = vmatpush1.msra.mxu0 0.0
    %2137 = vmatprep.subr.mxu0 0.0
    %2138 = vmatpush1.msra.mxu0 0.0
    %2139 = vmatprep.subr.mxu0 0.0
    %2140 = vmatpush1.msra.mxu0 0.0
    %2141 = vmatprep.subr.mxu0 0.0
    %2142 = vmatpush1.msra.mxu0 0.0
    %2143 = vmatprep.subr.mxu0 0.0
    %2144 = vmatpush1.msra.mxu0 0.0
    %2145 = vmatprep.subr.mxu0 0.0
    %2146 = vmatpush1.msra.mxu0 0.0
    %2147 = vmatprep.subr.mxu0 0.0
    %2148 = vmatpush1.msra.mxu0 0.0
    %2149 = vmatprep.subr.mxu0 0.0
    %2150 = vmatpush1.msra.mxu0 0.0
    %2151 = vmatprep.subr.mxu0 0.0
    %2152 = vmatpush1.msra.mxu0 0.0
    %2153 = vmatprep.subr.mxu0 0.0
    %2154 = vmatpush1.msra.mxu0 0.0
    %2155 = vmatprep.subr.mxu0 0.0
    %2156 = vmatpush1.msra.mxu0 0.0
    %2157 = vmatprep.subr.mxu0 0.0
    %2158 = vmatpush1.msra.mxu0 0.0
    %2159 = vmatprep.subr.mxu0 0.0
    %2160 = vmatpush1.msra.mxu0 0.0
    %2161 = vmatprep.mubr.f32.mxu0 0.0
    %2162 = vmatmul.mubr.f32.gmra.mrb[0].mxu0 %v2092
    %v2163 = vpop.f32.mrb[0].mxu0
    %v2164 = vadd.f32 0.0, %v2163
    %v2165 = vpop.f32.mrb[0].mxu0
    %2166 = vmatprep.mubr.f32.mxu0 0.0
    %2167 = vmatmul.mubr.f32.gmra.mrb[0].mxu0 %v2095
    %v2168 = vpop.f32.mrb[0].mxu0
    %v2169 = vadd.f32 0.0, %v2168
    %v2170 = vpop.f32.mrb[0].mxu0
    %2171 = vdwg.mxu0
    %v2172 = vadd.f32 %v1755, %v2164
    %v2173 = vadd.f32 %v1756, %v2169
    %v2174 = vadd.f32 %v187, %v2172
    %v2175 = vadd.f32 %v188, %v2173
    %v2176 = vld [vmem:[#allocation10] sm:$0x1]
    %v2178 = vlaneseq
    %v2179 = vshrl.u32 %v2178, 7
    %v2180 = vsub.s32 0, %v2179
    %v2181 = vrot.slane %v2176, %v2180
    %v2183 = vadd.f32 %v2174, %v2181
    %v2184 = vadd.f32 %v2175, %v2181
    %v2185 = vld [vmem:[#allocation11] sm:$0x1]
    %v2186 = vld [vmem:[#allocation13] sm:$0x1]
    %v2187 = vsel %vm193, %v2183, 0.0
    %2188 = vadd.xlane.f32.xlu0 %v2187
    %v2189 = vpop.xlane.xlu0 %2188
    %v2190 = vsel %vm193, %v2184, 0.0
    %2191 = vadd.xlane.f32.xlu0 %v2190
    %v2192 = vpop.xlane.xlu0 %2191
    %v2193 = vmul.f32 %v2189, %v200
    %v2194 = vmul.f32 %v2192, %v200
    %v2195 = vsub.f32 %v2183, %v2193
    %v2196 = vsub.f32 %v2184, %v2194
    %v2197 = vmul.f32 %v2195, %v2195
    %v2198 = vmul.f32 %v2196, %v2196
    %v2199 = vsel %vm193, %v2197, 0.0
    %2200 = vadd.xlane.f32.xlu0 %v2199
    %v2201 = vpop.xlane.xlu0 %2200
    %v2202 = vsel %vm193, %v2198, 0.0
    %2203 = vadd.xlane.f32.xlu0 %v2202
    %v2204 = vpop.xlane.xlu0 %2203
    %v2205 = vmul.f32 %v2201, %v200
    %v2206 = vmul.f32 %v2204, %v200
    %v2207 = vadd.f32 %v2205, 1e-05
    %v2208 = vadd.f32 %v2206, 1e-05
    %v2209 = vrsqrt.pop %v2207
    %v2210 = vrsqrt.pop %v2208
    %v2211 = vmul.f32 %v2195, %v2209
    %v2212 = vmul.f32 %v2196, %v2210
    %v2214 = vlaneseq
    %v2215 = vshrl.u32 %v2214, 7
    %v2216 = vsub.s32 0, %v2215
    %v2217 = vrot.slane %v2185, %v2216
    %v2219 = vmul.f32 %v2211, %v2217
    %v2220 = vmul.f32 %v2212, %v2217
    %v2222 = vlaneseq
    %v2223 = vshrl.u32 %v2222, 7
    %v2224 = vsub.s32 0, %v2223
    %v2225 = vrot.slane %v2186, %v2224
    %v2227 = vadd.f32 %v2219, %v2225
    %v2228 = vadd.f32 %v2220, %v2225
    %v2229 = vld [vmem:[%s14] sm:$0xff]
    %v2230 = vld [vmem:[%s14 + $0x8] sm:$0xff]
    %v2231 = vld [vmem:[%s14 + $0x10] sm:$0xff]
    %v2232 = vld [vmem:[%s14 + $0x18] sm:$0xff]
    %v2233 = vld [vmem:[#allocation14] sm:$0x1]
    %v2235 = vlaneseq
    %v2236 = vshrl.u32 %v2235, 7
    %v2237 = vsub.s32 0, %v2236
    %v2238 = vrot.slane %v2233, %v2237
    %v2241 = vsel %vm193, %v2227, 0
    %v2244 = vsel %vm193, %v2228, 0
    %2246 = vmatprep.subr.mxu0 0.0
    %2247 = vmatpush1.msra.mxu0 %v2229
    %2248 = vmatprep.subr.mxu0 0.0
    %2249 = vmatpush1.msra.mxu0 %v2230
    %2250 = vmatprep.subr.mxu0 0.0
    %2251 = vmatpush1.msra.mxu0 %v2231
    %2252 = vmatprep.subr.mxu0 0.0
    %2253 = vmatpush1.msra.mxu0 %v2232
    %2254 = vmatprep.subr.mxu0 0.0
    %2255 = vmatpush1.msra.mxu0 0.0
    %2256 = vmatprep.subr.mxu0 0.0
    %2257 = vmatpush1.msra.mxu0 0.0
    %2258 = vmatprep.subr.mxu0 0.0
    %2259 = vmatpush1.msra.mxu0 0.0
    %2260 = vmatprep.subr.mxu0 0.0
    %2261 = vmatpush1.msra.mxu0 0.0
    %2262 = vmatprep.subr.mxu0 0.0
    %2263 = vmatpush1.msra.mxu0 0.0
    %2264 = vmatprep.subr.mxu0 0.0
    %2265 = vmatpush1.msra.mxu0 0.0
    %2266 = vmatprep.subr.mxu0 0.0
    %2267 = vmatpush1.msra.mxu0 0.0
    %2268 = vmatprep.subr.mxu0 0.0
    %2269 = vmatpush1.msra.mxu0 0.0
    %2270 = vmatprep.subr.mxu0 0.0
    %2271 = vmatpush1.msra.mxu0 0.0
    %2272 = vmatprep.subr.mxu0 0.0
    %2273 = vmatpush1.msra.mxu0 0.0
    %2274 = vmatprep.subr.mxu0 0.0
    %2275 = vmatpush1.msra.mxu0 0.0
    %2276 = vmatprep.subr.mxu0 0.0
    %2277 = vmatpush1.msra.mxu0 0.0
    %2278 = vmatprep.subr.mxu0 0.0
    %2279 = vmatpush1.msra.mxu0 0.0
    %2280 = vmatprep.subr.mxu0 0.0
    %2281 = vmatpush1.msra.mxu0 0.0
    %2282 = vmatprep.subr.mxu0 0.0
    %2283 = vmatpush1.msra.mxu0 0.0
    %2284 = vmatprep.subr.mxu0 0.0
    %2285 = vmatpush1.msra.mxu0 0.0
    %2286 = vmatprep.subr.mxu0 0.0
    %2287 = vmatpush1.msra.mxu0 0.0
    %2288 = vmatprep.subr.mxu0 0.0
    %2289 = vmatpush1.msra.mxu0 0.0
    %2290 = vmatprep.subr.mxu0 0.0
    %2291 = vmatpush1.msra.mxu0 0.0
    %2292 = vmatprep.subr.mxu0 0.0
    %2293 = vmatpush1.msra.mxu0 0.0
    %2294 = vmatprep.subr.mxu0 0.0
    %2295 = vmatpush1.msra.mxu0 0.0
    %2296 = vmatprep.subr.mxu0 0.0
    %2297 = vmatpush1.msra.mxu0 0.0
    %2298 = vmatprep.subr.mxu0 0.0
    %2299 = vmatpush1.msra.mxu0 0.0
    %2300 = vmatprep.subr.mxu0 0.0
    %2301 = vmatpush1.msra.mxu0 0.0
    %2302 = vmatprep.subr.mxu0 0.0
    %2303 = vmatpush1.msra.mxu0 0.0
    %2304 = vmatprep.subr.mxu0 0.0
    %2305 = vmatpush1.msra.mxu0 0.0
    %2306 = vmatprep.subr.mxu0 0.0
    %2307 = vmatpush1.msra.mxu0 0.0
    %2308 = vmatprep.subr.mxu0 0.0
    %2309 = vmatpush1.msra.mxu0 0.0
    %2310 = vmatprep.mubr.f32.mxu0 0.0
    %2311 = vmatmul.mubr.f32.gmra.mrb[0].mxu0 %v2241
    %v2312 = vpop.f32.mrb[0].mxu0
    %v2313 = vadd.f32 %v2238, %v2312
    %v2314 = vpop.f32.mrb[0].mxu0
    %2315 = vmatprep.mubr.f32.mxu0 0.0
    %2316 = vmatmul.mubr.f32.gmra.mrb[0].mxu0 %v2244
    %v2317 = vpop.f32.mrb[0].mxu0
    %v2318 = vadd.f32 %v2238, %v2317
    %v2319 = vpop.f32.mrb[0].mxu0
    %2320 = vdwg.mxu0
    %v2321 = vmul.f32 %v2313, 0.5
    %v2322 = vmul.f32 %v2318, 0.5
    %v2323 = vmul.f32 %v2313, 0.70710677
    %v2324 = vmul.f32 %v2318, 0.70710677
    %v2325 = verf.f32.pop %v2323
    %v2326 = verf.f32.pop %v2324
    %v2327 = vadd.f32 %v2325, 1.0
    %v2328 = vadd.f32 %v2326, 1.0
    %v2329 = vmul.f32 %v2321, %v2327
    %v2330 = vmul.f32 %v2322, %v2328
    %v2331 = vld [vmem:[%s16] sm:$0xff]
    %v2332 = vld [vmem:[%s16 + $0x8] sm:$0xff]
    %v2333 = vld [vmem:[%s16 + $0x10] sm:$0xff]
    %v2334 = vld [vmem:[%s16 + $0x18] sm:$0xff]
    %v2335 = vld [vmem:[%s16 + $0x20] sm:$0xff]
    %v2336 = vld [vmem:[%s16 + $0x28] sm:$0xff]
    %v2337 = vld [vmem:[%s16 + $0x30] sm:$0xff]
    %v2338 = vld [vmem:[%s16 + $0x38] sm:$0xff]
    %v2339 = vld [vmem:[%s16 + $0x40] sm:$0xff]
    %v2340 = vld [vmem:[%s16 + $0x48] sm:$0xff]
    %v2341 = vld [vmem:[%s16 + $0x50] sm:$0xff]
    %v2342 = vld [vmem:[%s16 + $0x58] sm:$0xff]
    %v2343 = vld [vmem:[%s16 + $0x60] sm:$0xff]
    %v2344 = vld [vmem:[%s16 + $0x68] sm:$0xff]
    %v2345 = vld [vmem:[%s16 + $0x70] sm:$0xff]
    %v2346 = vld [vmem:[%s16 + $0x78] sm:$0xff]
    %2347 = vmatprep.subr.mxu0 0.0
    %2348 = vmatpush1.msra.mxu0 %v2331
    %2349 = vmatprep.subr.mxu0 0.0
    %2350 = vmatpush1.msra.mxu0 %v2332
    %2351 = vmatprep.subr.mxu0 0.0
    %2352 = vmatpush1.msra.mxu0 %v2333
    %2353 = vmatprep.subr.mxu0 0.0
    %2354 = vmatpush1.msra.mxu0 %v2334
    %2355 = vmatprep.subr.mxu0 0.0
    %2356 = vmatpush1.msra.mxu0 %v2335
    %2357 = vmatprep.subr.mxu0 0.0
    %2358 = vmatpush1.msra.mxu0 %v2336
    %2359 = vmatprep.subr.mxu0 0.0
    %2360 = vmatpush1.msra.mxu0 %v2337
    %2361 = vmatprep.subr.mxu0 0.0
    %2362 = vmatpush1.msra.mxu0 %v2338
    %2363 = vmatprep.subr.mxu0 0.0
    %2364 = vmatpush1.msra.mxu0 %v2339
    %2365 = vmatprep.subr.mxu0 0.0
    %2366 = vmatpush1.msra.mxu0 %v2340
    %2367 = vmatprep.subr.mxu0 0.0
    %2368 = vmatpush1.msra.mxu0 %v2341
    %2369 = vmatprep.subr.mxu0 0.0
    %2370 = vmatpush1.msra.mxu0 %v2342
    %2371 = vmatprep.subr.mxu0 0.0
    %2372 = vmatpush1.msra.mxu0 %v2343
    %2373 = vmatprep.subr.mxu0 0.0
    %2374 = vmatpush1.msra.mxu0 %v2344
    %2375 = vmatprep.subr.mxu0 0.0
    %2376 = vmatpush1.msra.mxu0 %v2345
    %2377 = vmatprep.subr.mxu0 0.0
    %2378 = vmatpush1.msra.mxu0 %v2346
    %2379 = vmatprep.subr.mxu0 0.0
    %2380 = vmatpush1.msra.mxu0 0.0
    %2381 = vmatprep.subr.mxu0 0.0
    %2382 = vmatpush1.msra.mxu0 0.0
    %2383 = vmatprep.subr.mxu0 0.0
    %2384 = vmatpush1.msra.mxu0 0.0
    %2385 = vmatprep.subr.mxu0 0.0
    %2386 = vmatpush1.msra.mxu0 0.0
    %2387 = vmatprep.subr.mxu0 0.0
    %2388 = vmatpush1.msra.mxu0 0.0
    %2389 = vmatprep.subr.mxu0 0.0
    %2390 = vmatpush1.msra.mxu0 0.0
    %2391 = vmatprep.subr.mxu0 0.0
    %2392 = vmatpush1.msra.mxu0 0.0
    %2393 = vmatprep.subr.mxu0 0.0
    %2394 = vmatpush1.msra.mxu0 0.0
    %2395 = vmatprep.subr.mxu0 0.0
    %2396 = vmatpush1.msra.mxu0 0.0
    %2397 = vmatprep.subr.mxu0 0.0
    %2398 = vmatpush1.msra.mxu0 0.0
    %2399 = vmatprep.subr.mxu0 0.0
    %2400 = vmatpush1.msra.mxu0 0.0
    %2401 = vmatprep.subr.mxu0 0.0
    %2402 = vmatpush1.msra.mxu0 0.0
    %2403 = vmatprep.subr.mxu0 0.0
    %2404 = vmatpush1.msra.mxu0 0.0
    %2405 = vmatprep.subr.mxu0 0.0
    %2406 = vmatpush1.msra.mxu0 0.0
    %2407 = vmatprep.subr.mxu0 0.0
    %2408 = vmatpush1.msra.mxu0 0.0
    %2409 = vmatprep.subr.mxu0 0.0
    %2410 = vmatpush1.msra.mxu0 0.0
    %2411 = vmatprep.mubr.f32.mxu0 0.0
    %2412 = vmatmul.mubr.f32.gmra.mrb[0].mxu0 %v2329
    %v2413 = vpop.f32.mrb[0].mxu0
    %v2414 = vadd.f32 0.0, %v2413
    %v2415 = vpop.f32.mrb[0].mxu0
    %2416 = vmatprep.mubr.f32.mxu0 0.0
    %2417 = vmatmul.mubr.f32.gmra.mrb[0].mxu0 %v2330
    %v2418 = vpop.f32.mrb[0].mxu0
    %v2419 = vadd.f32 0.0, %v2418
    %v2420 = vpop.f32.mrb[0].mxu0
    %2421 = vdwg.mxu0
    %v2422 = vadd.f32 %v2183, %v2414
    %v2423 = vadd.f32 %v2184, %v2419
    %v2424 = vld [vmem:[%s17] sm:$0x1]
    %v2426 = vlaneseq
    %v2427 = vshrl.u32 %v2426, 7
    %v2428 = vsub.s32 0, %v2427
    %v2429 = vrot.slane %v2424, %v2428
    %v2431 = vadd.f32 %v2422, %v2429
    %v2432 = vadd.f32 %v2423, %v2429
    %s2433 = scalar_lea.vmem %s2, 1
    %v2434 = vld [vmem:[%s2433] sm:$0x1]
    %s2435 = scalar_lea.vmem [#allocation2], 1
    %v2436 = vld [vmem:[%s2435] sm:$0x1]
    %v2437 = vsel %vm193, %v2431, 0.0
    %2438 = vadd.xlane.f32.xlu0 %v2437
    %v2439 = vpop.xlane.xlu0 %2438
    %v2440 = vsel %vm193, %v2432, 0.0
    %2441 = vadd.xlane.f32.xlu0 %v2440
    %v2442 = vpop.xlane.xlu0 %2441
    %v2443 = vmul.f32 %v2439, %v200
    %v2444 = vmul.f32 %v2442, %v200
    %v2445 = vsub.f32 %v2431, %v2443
    %v2446 = vsub.f32 %v2432, %v2444
    %v2447 = vmul.f32 %v2445, %v2445
    %v2448 = vmul.f32 %v2446, %v2446
    %v2449 = vsel %vm193, %v2447, 0.0
    %2450 = vadd.xlane.f32.xlu0 %v2449
    %v2451 = vpop.xlane.xlu0 %2450
    %v2452 = vsel %vm193, %v2448, 0.0
    %2453 = vadd.xlane.f32.xlu0 %v2452
    %v2454 = vpop.xlane.xlu0 %2453
    %v2455 = vmul.f32 %v2451, %v200
    %v2456 = vmul.f32 %v2454, %v200
    %v2457 = vadd.f32 %v2455, 1e-05
    %v2458 = vadd.f32 %v2456, 1e-05
    %v2459 = vrsqrt.pop %v2457
    %v2460 = vrsqrt.pop %v2458
    %v2461 = vmul.f32 %v2445, %v2459
    %v2462 = vmul.f32 %v2446, %v2460
    %v2464 = vlaneseq
    %v2465 = vshrl.u32 %v2464, 7
    %v2466 = vsub.s32 0, %v2465
    %v2467 = vrot.slane %v2434, %v2466
    %v2469 = vmul.f32 %v2461, %v2467
    %v2470 = vmul.f32 %v2462, %v2467
    %v2472 = vlaneseq
    %v2473 = vshrl.u32 %v2472, 7
    %v2474 = vsub.s32 0, %v2473
    %v2475 = vrot.slane %v2436, %v2474
    %v2477 = vadd.f32 %v2469, %v2475
    %v2478 = vadd.f32 %v2470, %v2475
    %s2479 = scalar_lea.vmem %s4, 32
    %v2480 = vld [vmem:[%s2479] sm:$0xff]
    %v2481 = vld [vmem:[%s2479 + $0x8] sm:$0xff]
    %v2482 = vld [vmem:[%s2479 + $0x10] sm:$0xff]
    %v2483 = vld [vmem:[%s2479 + $0x18] sm:$0xff]
    %s2484 = scalar_lea.vmem [#allocation5], 1
    %v2485 = vld [vmem:[%s2484] sm:$0x1]
    %v2487 = vlaneseq
    %v2488 = vshrl.u32 %v2487, 7
    %v2489 = vsub.s32 0, %v2488
    %v2490 = vrot.slane %v2485, %v2489
    %v2493 = vsel %vm193, %v2477, 0
    %v2496 = vsel %vm193, %v2478, 0
    %2498 = vmatprep.subr.mxu0 0.0
    %2499 = vmatpush1.msra.mxu0 %v2480
    %2500 = vmatprep.subr.mxu0 0.0
    %2501 = vmatpush1.msra.mxu0 %v2481
    %2502 = vmatprep.subr.mxu0 0.0
    %2503 = vmatpush1.msra.mxu0 %v2482
    %2504 = vmatprep.subr.mxu0 0.0
    %2505 = vmatpush1.msra.mxu0 %v2483
    %2506 = vmatprep.subr.mxu0 0.0
    %2507 = vmatpush1.msra.mxu0 0.0
    %2508 = vmatprep.subr.mxu0 0.0
    %2509 = vmatpush1.msra.mxu0 0.0
    %2510 = vmatprep.subr.mxu0 0.0
    %2511 = vmatpush1.msra.mxu0 0.0
    %2512 = vmatprep.subr.mxu0 0.0
    %2513 = vmatpush1.msra.mxu0 0.0
    %2514 = vmatprep.subr.mxu0 0.0
    %2515 = vmatpush1.msra.mxu0 0.0
    %2516 = vmatprep.subr.mxu0 0.0
    %2517 = vmatpush1.msra.mxu0 0.0
    %2518 = vmatprep.subr.mxu0 0.0
    %2519 = vmatpush1.msra.mxu0 0.0
    %2520 = vmatprep.subr.mxu0 0.0
    %2521 = vmatpush1.msra.mxu0 0.0
    %2522 = vmatprep.subr.mxu0 0.0
    %2523 = vmatpush1.msra.mxu0 0.0
    %2524 = vmatprep.subr.mxu0 0.0
    %2525 = vmatpush1.msra.mxu0 0.0
    %2526 = vmatprep.subr.mxu0 0.0
    %2527 = vmatpush1.msra.mxu0 0.0
    %2528 = vmatprep.subr.mxu0 0.0
    %2529 = vmatpush1.msra.mxu0 0.0
    %2530 = vmatprep.subr.mxu0 0.0
    %2531 = vmatpush1.msra.mxu0 0.0
    %2532 = vmatprep.subr.mxu0 0.0
    %2533 = vmatpush1.msra.mxu0 0.0
    %2534 = vmatprep.subr.mxu0 0.0
    %2535 = vmatpush1.msra.mxu0 0.0
    %2536 = vmatprep.subr.mxu0 0.0
    %2537 = vmatpush1.msra.mxu0 0.0
    %2538 = vmatprep.subr.mxu0 0.0
    %2539 = vmatpush1.msra.mxu0 0.0
    %2540 = vmatprep.subr.mxu0 0.0
    %2541 = vmatpush1.msra.mxu0 0.0
    %2542 = vmatprep.subr.mxu0 0.0
    %2543 = vmatpush1.msra.mxu0 0.0
    %2544 = vmatprep.subr.mxu0 0.0
    %2545 = vmatpush1.msra.mxu0 0.0
    %2546 = vmatprep.subr.mxu0 0.0
    %2547 = vmatpush1.msra.mxu0 0.0
    %2548 = vmatprep.subr.mxu0 0.0
    %2549 = vmatpush1.msra.mxu0 0.0
    %2550 = vmatprep.subr.mxu0 0.0
    %2551 = vmatpush1.msra.mxu0 0.0
    %2552 = vmatprep.subr.mxu0 0.0
    %2553 = vmatpush1.msra.mxu0 0.0
    %2554 = vmatprep.subr.mxu0 0.0
    %2555 = vmatpush1.msra.mxu0 0.0
    %2556 = vmatprep.subr.mxu0 0.0
    %2557 = vmatpush1.msra.mxu0 0.0
    %2558 = vmatprep.subr.mxu0 0.0
    %2559 = vmatpush1.msra.mxu0 0.0
    %2560 = vmatprep.subr.mxu0 0.0
    %2561 = vmatpush1.msra.mxu0 0.0
    %2562 = vmatprep.mubr.f32.mxu0 0.0
    %2563 = vmatmul.mubr.f32.gmra.mrb[0].mxu0 %v2493
    %v2564 = vpop.f32.mrb[0].mxu0
    %v2565 = vadd.f32 %v2490, %v2564
    %v2566 = vpop.f32.mrb[0].mxu0
    %2567 = vmatprep.mubr.f32.mxu0 0.0
    %2568 = vmatmul.mubr.f32.gmra.mrb[0].mxu0 %v2496
    %v2569 = vpop.f32.mrb[0].mxu0
    %v2570 = vadd.f32 %v2490, %v2569
    %v2571 = vpop.f32.mrb[0].mxu0
    %2572 = vdwg.mxu0
    %s2573 = scalar_lea.vmem %s6, 32
    %v2574 = vld [vmem:[%s2573] sm:$0xff]
    %v2575 = vld [vmem:[%s2573 + $0x8] sm:$0xff]
    %v2576 = vld [vmem:[%s2573 + $0x10] sm:$0xff]
    %v2577 = vld [vmem:[%s2573 + $0x18] sm:$0xff]
    %s2578 = scalar_lea.vmem [#allocation7], 1
    %v2579 = vld [vmem:[%s2578] sm:$0x1]
    %v2581 = vlaneseq
    %v2582 = vshrl.u32 %v2581, 7
    %v2583 = vsub.s32 0, %v2582
    %v2584 = vrot.slane %v2579, %v2583
    %2586 = vmatprep.subr.mxu0 0.0
    %2587 = vmatpush1.msra.mxu0 %v2574
    %2588 = vmatprep.subr.mxu0 0.0
    %2589 = vmatpush1.msra.mxu0 %v2575
    %2590 = vmatprep.subr.mxu0 0.0
    %2591 = vmatpush1.msra.mxu0 %v2576
    %2592 = vmatprep.subr.mxu0 0.0
    %2593 = vmatpush1.msra.mxu0 %v2577
    %2594 = vmatprep.subr.mxu0 0.0
    %2595 = vmatpush1.msra.mxu0 0.0
    %2596 = vmatprep.subr.mxu0 0.0
    %2597 = vmatpush1.msra.mxu0 0.0
    %2598 = vmatprep.subr.mxu0 0.0
    %2599 = vmatpush1.msra.mxu0 0.0
    %2600 = vmatprep.subr.mxu0 0.0
    %2601 = vmatpush1.msra.mxu0 0.0
    %2602 = vmatprep.subr.mxu0 0.0
    %2603 = vmatpush1.msra.mxu0 0.0
    %2604 = vmatprep.subr.mxu0 0.0
    %2605 = vmatpush1.msra.mxu0 0.0
    %2606 = vmatprep.subr.mxu0 0.0
    %2607 = vmatpush1.msra.mxu0 0.0
    %2608 = vmatprep.subr.mxu0 0.0
    %2609 = vmatpush1.msra.mxu0 0.0
    %2610 = vmatprep.subr.mxu0 0.0
    %2611 = vmatpush1.msra.mxu0 0.0
    %2612 = vmatprep.subr.mxu0 0.0
    %2613 = vmatpush1.msra.mxu0 0.0
    %2614 = vmatprep.subr.mxu0 0.0
    %2615 = vmatpush1.msra.mxu0 0.0
    %2616 = vmatprep.subr.mxu0 0.0
    %2617 = vmatpush1.msra.mxu0 0.0
    %2618 = vmatprep.subr.mxu0 0.0
    %2619 = vmatpush1.msra.mxu0 0.0
    %2620 = vmatprep.subr.mxu0 0.0
    %2621 = vmatpush1.msra.mxu0 0.0
    %2622 = vmatprep.subr.mxu0 0.0
    %2623 = vmatpush1.msra.mxu0 0.0
    %2624 = vmatprep.subr.mxu0 0.0
    %2625 = vmatpush1.msra.mxu0 0.0
    %2626 = vmatprep.subr.mxu0 0.0
    %2627 = vmatpush1.msra.mxu0 0.0
    %2628 = vmatprep.subr.mxu0 0.0
    %2629 = vmatpush1.msra.mxu0 0.0
    %2630 = vmatprep.subr.mxu0 0.0
    %2631 = vmatpush1.msra.mxu0 0.0
    %2632 = vmatprep.subr.mxu0 0.0
    %2633 = vmatpush1.msra.mxu0 0.0
    %2634 = vmatprep.subr.mxu0 0.0
    %2635 = vmatpush1.msra.mxu0 0.0
    %2636 = vmatprep.subr.mxu0 0.0
    %2637 = vmatpush1.msra.mxu0 0.0
    %2638 = vmatprep.subr.mxu0 0.0
    %2639 = vmatpush1.msra.mxu0 0.0
    %2640 = vmatprep.subr.mxu0 0.0
    %2641 = vmatpush1.msra.mxu0 0.0
    %2642 = vmatprep.subr.mxu0 0.0
    %2643 = vmatpush1.msra.mxu0 0.0
    %2644 = vmatprep.subr.mxu0 0.0
    %2645 = vmatpush1.msra.mxu0 0.0
    %2646 = vmatprep.subr.mxu0 0.0
    %2647 = vmatpush1.msra.mxu0 0.0
    %2648 = vmatprep.subr.mxu0 0.0
    %2649 = vmatpush1.msra.mxu0 0.0
    %2650 = vmatprep.mubr.f32.mxu0 0.0
    %2651 = vmatmul.mubr.f32.gmra.mrb[0].mxu0 %v2493
    %v2652 = vpop.f32.mrb[0].mxu0
    %v2653 = vadd.f32 %v2584, %v2652
    %v2654 = vpop.f32.mrb[0].mxu0
    %2655 = vmatprep.mubr.f32.mxu0 0.0
    %2656 = vmatmul.mubr.f32.gmra.mrb[0].mxu0 %v2496
    %v2657 = vpop.f32.mrb[0].mxu0
    %v2658 = vadd.f32 %v2584, %v2657
    %v2659 = vpop.f32.mrb[0].mxu0
    %2660 = vdwg.mxu0
    %s2661 = scalar_lea.vmem %s8, 32
    %v2662 = vld [vmem:[%s2661] sm:$0xff]
    %v2663 = vld [vmem:[%s2661 + $0x8] sm:$0xff]
    %v2664 = vld [vmem:[%s2661 + $0x10] sm:$0xff]
    %v2665 = vld [vmem:[%s2661 + $0x18] sm:$0xff]
    %s2666 = scalar_lea.vmem [#allocation8], 1
    %v2667 = vld [vmem:[%s2666] sm:$0x1]
    %v2669 = vlaneseq
    %v2670 = vshrl.u32 %v2669, 7
    %v2671 = vsub.s32 0, %v2670
    %v2672 = vrot.slane %v2667, %v2671
    %2674 = vmatprep.subr.mxu0 0.0
    %2675 = vmatpush1.msra.mxu0 %v2662
    %2676 = vmatprep.subr.mxu0 0.0
    %2677 = vmatpush1.msra.mxu0 %v2663
    %2678 = vmatprep.subr.mxu0 0.0
    %2679 = vmatpush1.msra.mxu0 %v2664
    %2680 = vmatprep.subr.mxu0 0.0
    %2681 = vmatpush1.msra.mxu0 %v2665
    %2682 = vmatprep.subr.mxu0 0.0
    %2683 = vmatpush1.msra.mxu0 0.0
    %2684 = vmatprep.subr.mxu0 0.0
    %2685 = vmatpush1.msra.mxu0 0.0
    %2686 = vmatprep.subr.mxu0 0.0
    %2687 = vmatpush1.msra.mxu0 0.0
    %2688 = vmatprep.subr.mxu0 0.0
    %2689 = vmatpush1.msra.mxu0 0.0
    %2690 = vmatprep.subr.mxu0 0.0
    %2691 = vmatpush1.msra.mxu0 0.0
    %2692 = vmatprep.subr.mxu0 0.0
    %2693 = vmatpush1.msra.mxu0 0.0
    %2694 = vmatprep.subr.mxu0 0.0
    %2695 = vmatpush1.msra.mxu0 0.0
    %2696 = vmatprep.subr.mxu0 0.0
    %2697 = vmatpush1.msra.mxu0 0.0
    %2698 = vmatprep.subr.mxu0 0.0
    %2699 = vmatpush1.msra.mxu0 0.0
    %2700 = vmatprep.subr.mxu0 0.0
    %2701 = vmatpush1.msra.mxu0 0.0
    %2702 = vmatprep.subr.mxu0 0.0
    %2703 = vmatpush1.msra.mxu0 0.0
    %2704 = vmatprep.subr.mxu0 0.0
    %2705 = vmatpush1.msra.mxu0 0.0
    %2706 = vmatprep.subr.mxu0 0.0
    %2707 = vmatpush1.msra.mxu0 0.0
    %2708 = vmatprep.subr.mxu0 0.0
    %2709 = vmatpush1.msra.mxu0 0.0
    %2710 = vmatprep.subr.mxu0 0.0
    %2711 = vmatpush1.msra.mxu0 0.0
    %2712 = vmatprep.subr.mxu0 0.0
    %2713 = vmatpush1.msra.mxu0 0.0
    %2714 = vmatprep.subr.mxu0 0.0
    %2715 = vmatpush1.msra.mxu0 0.0
    %2716 = vmatprep.subr.mxu0 0.0
    %2717 = vmatpush1.msra.mxu0 0.0
    %2718 = vmatprep.subr.mxu0 0.0
    %2719 = vmatpush1.msra.mxu0 0.0
    %2720 = vmatprep.subr.mxu0 0.0
    %2721 = vmatpush1.msra.mxu0 0.0
    %2722 = vmatprep.subr.mxu0 0.0
    %2723 = vmatpush1.msra.mxu0 0.0
    %2724 = vmatprep.subr.mxu0 0.0
    %2725 = vmatpush1.msra.mxu0 0.0
    %2726 = vmatprep.subr.mxu0 0.0
    %2727 = vmatpush1.msra.mxu0 0.0
    %2728 = vmatprep.subr.mxu0 0.0
    %2729 = vmatpush1.msra.mxu0 0.0
    %2730 = vmatprep.subr.mxu0 0.0
    %2731 = vmatpush1.msra.mxu0 0.0
    %2732 = vmatprep.subr.mxu0 0.0
    %2733 = vmatpush1.msra.mxu0 0.0
    %2734 = vmatprep.subr.mxu0 0.0
    %2735 = vmatpush1.msra.mxu0 0.0
    %2736 = vmatprep.subr.mxu0 0.0
    %2737 = vmatpush1.msra.mxu0 0.0
    %2738 = vmatprep.mubr.f32.mxu0 0.0
    %2739 = vmatmul.mubr.f32.gmra.mrb[0].mxu0 %v2493
    %v2740 = vpop.f32.mrb[0].mxu0
    %v2741 = vadd.f32 %v2672, %v2740
    %v2742 = vpop.f32.mrb[0].mxu0
    %2743 = vmatprep.mubr.f32.mxu0 0.0
    %2744 = vmatmul.mubr.f32.gmra.mrb[0].mxu0 %v2496
    %v2745 = vpop.f32.mrb[0].mxu0
    %v2746 = vadd.f32 %v2672, %v2745
    %v2747 = vpop.f32.mrb[0].mxu0
    %2748 = vdwg.mxu0
    %s2749 = scalar_lea.vmem %s10, 32
    %v2750 = vld [vmem:[%s2749] sm:$0xff]
    %v2751 = vld [vmem:[%s2749 + $0x8] sm:$0xff]
    %v2752 = vld [vmem:[%s2749 + $0x10] sm:$0xff]
    %v2753 = vld [vmem:[%s2749 + $0x18] sm:$0xff]
    %v2755 = vsel %vm505, %v2565, 0
    %v2758 = vsel %vm505, %v2653, 0
    %2760 = vmatprep.subr.mxu0 0.0
    %2761 = vmatpush1.xpose.msra.mxu0 %v2758
    %2762 = vmatprep.subr.mxu0 0.0
    %2763 = vmatpush1.xpose.msra.mxu0 0.0
    %2764 = vmatprep.subr.mxu0 0.0
    %2765 = vmatpush1.xpose.msra.mxu0 0.0
    %2766 = vmatprep.subr.mxu0 0.0
    %2767 = vmatpush1.xpose.msra.mxu0 0.0
    %2768 = vmatprep.subr.mxu0 0.0
    %2769 = vmatpush1.xpose.msra.mxu0 0.0
    %2770 = vmatprep.subr.mxu0 0.0
    %2771 = vmatpush1.xpose.msra.mxu0 0.0
    %2772 = vmatprep.subr.mxu0 0.0
    %2773 = vmatpush1.xpose.msra.mxu0 0.0
    %2774 = vmatprep.subr.mxu0 0.0
    %2775 = vmatpush1.xpose.msra.mxu0 0.0
    %2776 = vmatprep.subr.mxu0 0.0
    %2777 = vmatpush1.xpose.msra.mxu0 0.0
    %2778 = vmatprep.subr.mxu0 0.0
    %2779 = vmatpush1.xpose.msra.mxu0 0.0
    %2780 = vmatprep.subr.mxu0 0.0
    %2781 = vmatpush1.xpose.msra.mxu0 0.0
    %2782 = vmatprep.subr.mxu0 0.0
    %2783 = vmatpush1.xpose.msra.mxu0 0.0
    %2784 = vmatprep.subr.mxu0 0.0
    %2785 = vmatpush1.xpose.msra.mxu0 0.0
    %2786 = vmatprep.subr.mxu0 0.0
    %2787 = vmatpush1.xpose.msra.mxu0 0.0
    %2788 = vmatprep.subr.mxu0 0.0
    %2789 = vmatpush1.xpose.msra.mxu0 0.0
    %2790 = vmatprep.subr.mxu0 0.0
    %2791 = vmatpush1.xpose.msra.mxu0 0.0
    %2792 = vmatprep.subr.mxu0 0.0
    %2793 = vmatpush1.xpose.msra.mxu0 0.0
    %2794 = vmatprep.subr.mxu0 0.0
    %2795 = vmatpush1.xpose.msra.mxu0 0.0
    %2796 = vmatprep.subr.mxu0 0.0
    %2797 = vmatpush1.xpose.msra.mxu0 0.0
    %2798 = vmatprep.subr.mxu0 0.0
    %2799 = vmatpush1.xpose.msra.mxu0 0.0
    %2800 = vmatprep.subr.mxu0 0.0
    %2801 = vmatpush1.xpose.msra.mxu0 0.0
    %2802 = vmatprep.subr.mxu0 0.0
    %2803 = vmatpush1.xpose.msra.mxu0 0.0
    %2804 = vmatprep.subr.mxu0 0.0
    %2805 = vmatpush1.xpose.msra.mxu0 0.0
    %2806 = vmatprep.subr.mxu0 0.0
    %2807 = vmatpush1.xpose.msra.mxu0 0.0
    %2808 = vmatprep.subr.mxu0 0.0
    %2809 = vmatpush1.xpose.msra.mxu0 0.0
    %2810 = vmatprep.subr.mxu0 0.0
    %2811 = vmatpush1.xpose.msra.mxu0 0.0
    %2812 = vmatprep.subr.mxu0 0.0
    %2813 = vmatpush1.xpose.msra.mxu0 0.0
    %2814 = vmatprep.subr.mxu0 0.0
    %2815 = vmatpush1.xpose.msra.mxu0 0.0
    %2816 = vmatprep.subr.mxu0 0.0
    %2817 = vmatpush1.xpose.msra.mxu0 0.0
    %2818 = vmatprep.subr.mxu0 0.0
    %2819 = vmatpush1.xpose.msra.mxu0 0.0
    %2820 = vmatprep.subr.mxu0 0.0
    %2821 = vmatpush1.xpose.msra.mxu0 0.0
    %2822 = vmatprep.subr.mxu0 0.0
    %2823 = vmatpush1.xpose.msra.mxu0 0.0
    %2824 = vmatprep.mubr.f32.mxu0 0.0
    %2825 = vmatmul.mubr.f32.gmra.mrb[0].mxu0 %v2755
    %v2826 = vpop.f32.mrb[0].mxu0
    %v2827 = vadd.f32 0.0, %v2826
    %v2828 = vpop.f32.mrb[0].mxu0
    %2829 = vdwg.mxu0
    %v2831 = vsel %vm505, %v2570, 0
    %v2834 = vsel %vm505, %v2658, 0
    %2836 = vmatprep.subr.mxu0 0.0
    %2837 = vmatpush1.xpose.msra.mxu0 %v2834
    %2838 = vmatprep.subr.mxu0 0.0
    %2839 = vmatpush1.xpose.msra.mxu0 0.0
    %2840 = vmatprep.subr.mxu0 0.0
    %2841 = vmatpush1.xpose.msra.mxu0 0.0
    %2842 = vmatprep.subr.mxu0 0.0
    %2843 = vmatpush1.xpose.msra.mxu0 0.0
    %2844 = vmatprep.subr.mxu0 0.0
    %2845 = vmatpush1.xpose.msra.mxu0 0.0
    %2846 = vmatprep.subr.mxu0 0.0
    %2847 = vmatpush1.xpose.msra.mxu0 0.0
    %2848 = vmatprep.subr.mxu0 0.0
    %2849 = vmatpush1.xpose.msra.mxu0 0.0
    %2850 = vmatprep.subr.mxu0 0.0
    %2851 = vmatpush1.xpose.msra.mxu0 0.0
    %2852 = vmatprep.subr.mxu0 0.0
    %2853 = vmatpush1.xpose.msra.mxu0 0.0
    %2854 = vmatprep.subr.mxu0 0.0
    %2855 = vmatpush1.xpose.msra.mxu0 0.0
    %2856 = vmatprep.subr.mxu0 0.0
    %2857 = vmatpush1.xpose.msra.mxu0 0.0
    %2858 = vmatprep.subr.mxu0 0.0
    %2859 = vmatpush1.xpose.msra.mxu0 0.0
    %2860 = vmatprep.subr.mxu0 0.0
    %2861 = vmatpush1.xpose.msra.mxu0 0.0
    %2862 = vmatprep.subr.mxu0 0.0
    %2863 = vmatpush1.xpose.msra.mxu0 0.0
    %2864 = vmatprep.subr.mxu0 0.0
    %2865 = vmatpush1.xpose.msra.mxu0 0.0
    %2866 = vmatprep.subr.mxu0 0.0
    %2867 = vmatpush1.xpose.msra.mxu0 0.0
    %2868 = vmatprep.subr.mxu0 0.0
    %2869 = vmatpush1.xpose.msra.mxu0 0.0
    %2870 = vmatprep.subr.mxu0 0.0
    %2871 = vmatpush1.xpose.msra.mxu0 0.0
    %2872 = vmatprep.subr.mxu0 0.0
    %2873 = vmatpush1.xpose.msra.mxu0 0.0
    %2874 = vmatprep.subr.mxu0 0.0
    %2875 = vmatpush1.xpose.msra.mxu0 0.0
    %2876 = vmatprep.subr.mxu0 0.0
    %2877 = vmatpush1.xpose.msra.mxu0 0.0
    %2878 = vmatprep.subr.mxu0 0.0
    %2879 = vmatpush1.xpose.msra.mxu0 0.0
    %2880 = vmatprep.subr.mxu0 0.0
    %2881 = vmatpush1.xpose.msra.mxu0 0.0
    %2882 = vmatprep.subr.mxu0 0.0
    %2883 = vmatpush1.xpose.msra.mxu0 0.0
    %2884 = vmatprep.subr.mxu0 0.0
    %2885 = vmatpush1.xpose.msra.mxu0 0.0
    %2886 = vmatprep.subr.mxu0 0.0
    %2887 = vmatpush1.xpose.msra.mxu0 0.0
    %2888 = vmatprep.subr.mxu0 0.0
    %2889 = vmatpush1.xpose.msra.mxu0 0.0
    %2890 = vmatprep.subr.mxu0 0.0
    %2891 = vmatpush1.xpose.msra.mxu0 0.0
    %2892 = vmatprep.subr.mxu0 0.0
    %2893 = vmatpush1.xpose.msra.mxu0 0.0
    %2894 = vmatprep.subr.mxu0 0.0
    %2895 = vmatpush1.xpose.msra.mxu0 0.0
    %2896 = vmatprep.subr.mxu0 0.0
    %2897 = vmatpush1.xpose.msra.mxu0 0.0
    %2898 = vmatprep.subr.mxu0 0.0
    %2899 = vmatpush1.xpose.msra.mxu0 0.0
    %2900 = vmatprep.mubr.f32.mxu0 0.0
    %2901 = vmatmul.mubr.f32.gmra.mrb[0].mxu0 %v2831
    %v2902 = vpop.f32.mrb[0].mxu0
    %v2903 = vadd.f32 0.0, %v2902
    %v2904 = vpop.f32.mrb[0].mxu0
    %2905 = vdwg.mxu0
    %v2906 = vmul.f32 %v2827, 0.35355338
    %v2907 = vmul.f32 %v2903, 0.35355338
    %v2908 = vadd.f32 %v2906, %v665
    %v2909 = vadd.f32 %v2907, %v669
    %v2910 = vsel %vm505, %v2908, -inf
    %2911 = vmax.xlane.f32.xlu0 %v2910
    %v2912 = vpop.xlane.xlu0 %2911
    %v2913 = vsel %vm505, %v2909, -inf
    %2914 = vmax.xlane.f32.xlu0 %v2913
    %v2915 = vpop.xlane.xlu0 %2914
    %v2916 = vsub.f32 %v2908, %v2912
    %v2917 = vsub.f32 %v2909, %v2915
    %v2918 = vmul.f32 %v2916, 1.442695
    %v2919 = vpow.pop %v2918
    %v2920 = vmul.f32 %v2917, 1.442695
    %v2921 = vpow.pop %v2920
    %v2922 = vsel %vm505, %v2919, 0.0
    %2923 = vadd.xlane.f32.xlu0 %v2922
    %v2924 = vpop.xlane.xlu0 %2923
    %v2925 = vsel %vm505, %v2921, 0.0
    %2926 = vadd.xlane.f32.xlu0 %v2925
    %v2927 = vpop.xlane.xlu0 %2926
    %v2928 = vrcp.pop %v2924
    %v2929 = vrcp.pop %v2927
    %v2930 = vmul.f32 %v2919, %v2928
    %v2931 = vmul.f32 %v2921, %v2929
    %v2933 = vsel %vm505, %v2930, 0
    %2935 = vmatprep.subr.mxu0 0.0
    %2936 = vmatpush1.msra.mxu0 %v2741
    %2937 = vmatprep.subr.mxu0 0.0
    %2938 = vmatpush1.msra.mxu0 0.0
    %2939 = vmatprep.subr.mxu0 0.0
    %2940 = vmatpush1.msra.mxu0 0.0
    %2941 = vmatprep.subr.mxu0 0.0
    %2942 = vmatpush1.msra.mxu0 0.0
    %2943 = vmatprep.subr.mxu0 0.0
    %2944 = vmatpush1.msra.mxu0 0.0
    %2945 = vmatprep.subr.mxu0 0.0
    %2946 = vmatpush1.msra.mxu0 0.0
    %2947 = vmatprep.subr.mxu0 0.0
    %2948 = vmatpush1.msra.mxu0 0.0
    %2949 = vmatprep.subr.mxu0 0.0
    %2950 = vmatpush1.msra.mxu0 0.0
    %2951 = vmatprep.subr.mxu0 0.0
    %2952 = vmatpush1.msra.mxu0 0.0
    %2953 = vmatprep.subr.mxu0 0.0
    %2954 = vmatpush1.msra.mxu0 0.0
    %2955 = vmatprep.subr.mxu0 0.0
    %2956 = vmatpush1.msra.mxu0 0.0
    %2957 = vmatprep.subr.mxu0 0.0
    %2958 = vmatpush1.msra.mxu0 0.0
    %2959 = vmatprep.subr.mxu0 0.0
    %2960 = vmatpush1.msra.mxu0 0.0
    %2961 = vmatprep.subr.mxu0 0.0
    %2962 = vmatpush1.msra.mxu0 0.0
    %2963 = vmatprep.subr.mxu0 0.0
    %2964 = vmatpush1.msra.mxu0 0.0
    %2965 = vmatprep.subr.mxu0 0.0
    %2966 = vmatpush1.msra.mxu0 0.0
    %2967 = vmatprep.subr.mxu0 0.0
    %2968 = vmatpush1.msra.mxu0 0.0
    %2969 = vmatprep.subr.mxu0 0.0
    %2970 = vmatpush1.msra.mxu0 0.0
    %2971 = vmatprep.subr.mxu0 0.0
    %2972 = vmatpush1.msra.mxu0 0.0
    %2973 = vmatprep.subr.mxu0 0.0
    %2974 = vmatpush1.msra.mxu0 0.0
    %2975 = vmatprep.subr.mxu0 0.0
    %2976 = vmatpush1.msra.mxu0 0.0
    %2977 = vmatprep.subr.mxu0 0.0
    %2978 = vmatpush1.msra.mxu0 0.0
    %2979 = vmatprep.subr.mxu0 0.0
    %2980 = vmatpush1.msra.mxu0 0.0
    %2981 = vmatprep.subr.mxu0 0.0
    %2982 = vmatpush1.msra.mxu0 0.0
    %2983 = vmatprep.subr.mxu0 0.0
    %2984 = vmatpush1.msra.mxu0 0.0
    %2985 = vmatprep.subr.mxu0 0.0
    %2986 = vmatpush1.msra.mxu0 0.0
    %2987 = vmatprep.subr.mxu0 0.0
    %2988 = vmatpush1.msra.mxu0 0.0
    %2989 = vmatprep.subr.mxu0 0.0
    %2990 = vmatpush1.msra.mxu0 0.0
    %2991 = vmatprep.subr.mxu0 0.0
    %2992 = vmatpush1.msra.mxu0 0.0
    %2993 = vmatprep.subr.mxu0 0.0
    %2994 = vmatpush1.msra.mxu0 0.0
    %2995 = vmatprep.subr.mxu0 0.0
    %2996 = vmatpush1.msra.mxu0 0.0
    %2997 = vmatprep.subr.mxu0 0.0
    %2998 = vmatpush1.msra.mxu0 0.0
    %2999 = vmatprep.mubr.f32.mxu0 0.0
    %3000 = vmatmul.mubr.f32.gmra.mrb[0].mxu0 %v2933
    %v3001 = vpop.f32.mrb[0].mxu0
    %v3002 = vadd.f32 0.0, %v3001
    %v3003 = vpop.f32.mrb[0].mxu0
    %3004 = vdwg.mxu0
    %v3006 = vsel %vm505, %v2931, 0
    %3008 = vmatprep.subr.mxu0 0.0
    %3009 = vmatpush1.msra.mxu0 %v2746
    %3010 = vmatprep.subr.mxu0 0.0
    %3011 = vmatpush1.msra.mxu0 0.0
    %3012 = vmatprep.subr.mxu0 0.0
    %3013 = vmatpush1.msra.mxu0 0.0
    %3014 = vmatprep.subr.mxu0 0.0
    %3015 = vmatpush1.msra.mxu0 0.0
    %3016 = vmatprep.subr.mxu0 0.0
    %3017 = vmatpush1.msra.mxu0 0.0
    %3018 = vmatprep.subr.mxu0 0.0
    %3019 = vmatpush1.msra.mxu0 0.0
    %3020 = vmatprep.subr.mxu0 0.0
    %3021 = vmatpush1.msra.mxu0 0.0
    %3022 = vmatprep.subr.mxu0 0.0
    %3023 = vmatpush1.msra.mxu0 0.0
    %3024 = vmatprep.subr.mxu0 0.0
    %3025 = vmatpush1.msra.mxu0 0.0
    %3026 = vmatprep.subr.mxu0 0.0
    %3027 = vmatpush1.msra.mxu0 0.0
    %3028 = vmatprep.subr.mxu0 0.0
    %3029 = vmatpush1.msra.mxu0 0.0
    %3030 = vmatprep.subr.mxu0 0.0
    %3031 = vmatpush1.msra.mxu0 0.0
    %3032 = vmatprep.subr.mxu0 0.0
    %3033 = vmatpush1.msra.mxu0 0.0
    %3034 = vmatprep.subr.mxu0 0.0
    %3035 = vmatpush1.msra.mxu0 0.0
    %3036 = vmatprep.subr.mxu0 0.0
    %3037 = vmatpush1.msra.mxu0 0.0
    %3038 = vmatprep.subr.mxu0 0.0
    %3039 = vmatpush1.msra.mxu0 0.0
    %3040 = vmatprep.subr.mxu0 0.0
    %3041 = vmatpush1.msra.mxu0 0.0
    %3042 = vmatprep.subr.mxu0 0.0
    %3043 = vmatpush1.msra.mxu0 0.0
    %3044 = vmatprep.subr.mxu0 0.0
    %3045 = vmatpush1.msra.mxu0 0.0
    %3046 = vmatprep.subr.mxu0 0.0
    %3047 = vmatpush1.msra.mxu0 0.0
    %3048 = vmatprep.subr.mxu0 0.0
    %3049 = vmatpush1.msra.mxu0 0.0
    %3050 = vmatprep.subr.mxu0 0.0
    %3051 = vmatpush1.msra.mxu0 0.0
    %3052 = vmatprep.subr.mxu0 0.0
    %3053 = vmatpush1.msra.mxu0 0.0
    %3054 = vmatprep.subr.mxu0 0.0
    %3055 = vmatpush1.msra.mxu0 0.0
    %3056 = vmatprep.subr.mxu0 0.0
    %3057 = vmatpush1.msra.mxu0 0.0
    %3058 = vmatprep.subr.mxu0 0.0
    %3059 = vmatpush1.msra.mxu0 0.0
    %3060 = vmatprep.subr.mxu0 0.0
    %3061 = vmatpush1.msra.mxu0 0.0
    %3062 = vmatprep.subr.mxu0 0.0
    %3063 = vmatpush1.msra.mxu0 0.0
    %3064 = vmatprep.subr.mxu0 0.0
    %3065 = vmatpush1.msra.mxu0 0.0
    %3066 = vmatprep.subr.mxu0 0.0
    %3067 = vmatpush1.msra.mxu0 0.0
    %3068 = vmatprep.subr.mxu0 0.0
    %3069 = vmatpush1.msra.mxu0 0.0
    %3070 = vmatprep.subr.mxu0 0.0
    %3071 = vmatpush1.msra.mxu0 0.0
    %3072 = vmatprep.mubr.f32.mxu0 0.0
    %3073 = vmatmul.mubr.f32.gmra.mrb[0].mxu0 %v3006
    %v3074 = vpop.f32.mrb[0].mxu0
    %v3075 = vadd.f32 0.0, %v3074
    %v3076 = vpop.f32.mrb[0].mxu0
    %3077 = vdwg.mxu0
    %3078 = vrot.lane.b32.xlu0 %v2565, 120
    %v3079 = vpop.permute.xlu0 %3078
    %3080 = vrot.lane.b32.xlu0 %v2653, 120
    %v3081 = vpop.permute.xlu0 %3080
    %v3082 = vsel %vm505, %v3079, 0
    %v3084 = vsel %vm505, %v3081, 0
    %3086 = vmatprep.subr.mxu0 0.0
    %3087 = vmatpush1.xpose.msra.mxu0 %v3084
    %3088 = vmatprep.subr.mxu0 0.0
    %3089 = vmatpush1.xpose.msra.mxu0 0.0
    %3090 = vmatprep.subr.mxu0 0.0
    %3091 = vmatpush1.xpose.msra.mxu0 0.0
    %3092 = vmatprep.subr.mxu0 0.0
    %3093 = vmatpush1.xpose.msra.mxu0 0.0
    %3094 = vmatprep.subr.mxu0 0.0
    %3095 = vmatpush1.xpose.msra.mxu0 0.0
    %3096 = vmatprep.subr.mxu0 0.0
    %3097 = vmatpush1.xpose.msra.mxu0 0.0
    %3098 = vmatprep.subr.mxu0 0.0
    %3099 = vmatpush1.xpose.msra.mxu0 0.0
    %3100 = vmatprep.subr.mxu0 0.0
    %3101 = vmatpush1.xpose.msra.mxu0 0.0
    %3102 = vmatprep.subr.mxu0 0.0
    %3103 = vmatpush1.xpose.msra.mxu0 0.0
    %3104 = vmatprep.subr.mxu0 0.0
    %3105 = vmatpush1.xpose.msra.mxu0 0.0
    %3106 = vmatprep.subr.mxu0 0.0
    %3107 = vmatpush1.xpose.msra.mxu0 0.0
    %3108 = vmatprep.subr.mxu0 0.0
    %3109 = vmatpush1.xpose.msra.mxu0 0.0
    %3110 = vmatprep.subr.mxu0 0.0
    %3111 = vmatpush1.xpose.msra.mxu0 0.0
    %3112 = vmatprep.subr.mxu0 0.0
    %3113 = vmatpush1.xpose.msra.mxu0 0.0
    %3114 = vmatprep.subr.mxu0 0.0
    %3115 = vmatpush1.xpose.msra.mxu0 0.0
    %3116 = vmatprep.subr.mxu0 0.0
    %3117 = vmatpush1.xpose.msra.mxu0 0.0
    %3118 = vmatprep.subr.mxu0 0.0
    %3119 = vmatpush1.xpose.msra.mxu0 0.0
    %3120 = vmatprep.subr.mxu0 0.0
    %3121 = vmatpush1.xpose.msra.mxu0 0.0
    %3122 = vmatprep.subr.mxu0 0.0
    %3123 = vmatpush1.xpose.msra.mxu0 0.0
    %3124 = vmatprep.subr.mxu0 0.0
    %3125 = vmatpush1.xpose.msra.mxu0 0.0
    %3126 = vmatprep.subr.mxu0 0.0
    %3127 = vmatpush1.xpose.msra.mxu0 0.0
    %3128 = vmatprep.subr.mxu0 0.0
    %3129 = vmatpush1.xpose.msra.mxu0 0.0
    %3130 = vmatprep.subr.mxu0 0.0
    %3131 = vmatpush1.xpose.msra.mxu0 0.0
    %3132 = vmatprep.subr.mxu0 0.0
    %3133 = vmatpush1.xpose.msra.mxu0 0.0
    %3134 = vmatprep.subr.mxu0 0.0
    %3135 = vmatpush1.xpose.msra.mxu0 0.0
    %3136 = vmatprep.subr.mxu0 0.0
    %3137 = vmatpush1.xpose.msra.mxu0 0.0
    %3138 = vmatprep.subr.mxu0 0.0
    %3139 = vmatpush1.xpose.msra.mxu0 0.0
    %3140 = vmatprep.subr.mxu0 0.0
    %3141 = vmatpush1.xpose.msra.mxu0 0.0
    %3142 = vmatprep.subr.mxu0 0.0
    %3143 = vmatpush1.xpose.msra.mxu0 0.0
    %3144 = vmatprep.subr.mxu0 0.0
    %3145 = vmatpush1.xpose.msra.mxu0 0.0
    %3146 = vmatprep.subr.mxu0 0.0
    %3147 = vmatpush1.xpose.msra.mxu0 0.0
    %3148 = vmatprep.subr.mxu0 0.0
    %3149 = vmatpush1.xpose.msra.mxu0 0.0
    %3150 = vmatprep.mubr.f32.mxu0 0.0
    %3151 = vmatmul.mubr.f32.gmra.mrb[0].mxu0 %v3082
    %v3152 = vpop.f32.mrb[0].mxu0
    %v3153 = vadd.f32 0.0, %v3152
    %v3154 = vpop.f32.mrb[0].mxu0
    %3155 = vdwg.mxu0
    %3156 = vrot.lane.b32.xlu0 %v2570, 120
    %v3157 = vpop.permute.xlu0 %3156
    %3158 = vrot.lane.b32.xlu0 %v2658, 120
    %v3159 = vpop.permute.xlu0 %3158
    %v3160 = vsel %vm505, %v3157, 0
    %v3162 = vsel %vm505, %v3159, 0
    %3164 = vmatprep.subr.mxu0 0.0
    %3165 = vmatpush1.xpose.msra.mxu0 %v3162
    %3166 = vmatprep.subr.mxu0 0.0
    %3167 = vmatpush1.xpose.msra.mxu0 0.0
    %3168 = vmatprep.subr.mxu0 0.0
    %3169 = vmatpush1.xpose.msra.mxu0 0.0
    %3170 = vmatprep.subr.mxu0 0.0
    %3171 = vmatpush1.xpose.msra.mxu0 0.0
    %3172 = vmatprep.subr.mxu0 0.0
    %3173 = vmatpush1.xpose.msra.mxu0 0.0
    %3174 = vmatprep.subr.mxu0 0.0
    %3175 = vmatpush1.xpose.msra.mxu0 0.0
    %3176 = vmatprep.subr.mxu0 0.0
    %3177 = vmatpush1.xpose.msra.mxu0 0.0
    %3178 = vmatprep.subr.mxu0 0.0
    %3179 = vmatpush1.xpose.msra.mxu0 0.0
    %3180 = vmatprep.subr.mxu0 0.0
    %3181 = vmatpush1.xpose.msra.mxu0 0.0
    %3182 = vmatprep.subr.mxu0 0.0
    %3183 = vmatpush1.xpose.msra.mxu0 0.0
    %3184 = vmatprep.subr.mxu0 0.0
    %3185 = vmatpush1.xpose.msra.mxu0 0.0
    %3186 = vmatprep.subr.mxu0 0.0
    %3187 = vmatpush1.xpose.msra.mxu0 0.0
    %3188 = vmatprep.subr.mxu0 0.0
    %3189 = vmatpush1.xpose.msra.mxu0 0.0
    %3190 = vmatprep.subr.mxu0 0.0
    %3191 = vmatpush1.xpose.msra.mxu0 0.0
    %3192 = vmatprep.subr.mxu0 0.0
    %3193 = vmatpush1.xpose.msra.mxu0 0.0
    %3194 = vmatprep.subr.mxu0 0.0
    %3195 = vmatpush1.xpose.msra.mxu0 0.0
    %3196 = vmatprep.subr.mxu0 0.0
    %3197 = vmatpush1.xpose.msra.mxu0 0.0
    %3198 = vmatprep.subr.mxu0 0.0
    %3199 = vmatpush1.xpose.msra.mxu0 0.0
    %3200 = vmatprep.subr.mxu0 0.0
    %3201 = vmatpush1.xpose.msra.mxu0 0.0
    %3202 = vmatprep.subr.mxu0 0.0
    %3203 = vmatpush1.xpose.msra.mxu0 0.0
    %3204 = vmatprep.subr.mxu0 0.0
    %3205 = vmatpush1.xpose.msra.mxu0 0.0
    %3206 = vmatprep.subr.mxu0 0.0
    %3207 = vmatpush1.xpose.msra.mxu0 0.0
    %3208 = vmatprep.subr.mxu0 0.0
    %3209 = vmatpush1.xpose.msra.mxu0 0.0
    %3210 = vmatprep.subr.mxu0 0.0
    %3211 = vmatpush1.xpose.msra.mxu0 0.0
    %3212 = vmatprep.subr.mxu0 0.0
    %3213 = vmatpush1.xpose.msra.mxu0 0.0
    %3214 = vmatprep.subr.mxu0 0.0
    %3215 = vmatpush1.xpose.msra.mxu0 0.0
    %3216 = vmatprep.subr.mxu0 0.0
    %3217 = vmatpush1.xpose.msra.mxu0 0.0
    %3218 = vmatprep.subr.mxu0 0.0
    %3219 = vmatpush1.xpose.msra.mxu0 0.0
    %3220 = vmatprep.subr.mxu0 0.0
    %3221 = vmatpush1.xpose.msra.mxu0 0.0
    %3222 = vmatprep.subr.mxu0 0.0
    %3223 = vmatpush1.xpose.msra.mxu0 0.0
    %3224 = vmatprep.subr.mxu0 0.0
    %3225 = vmatpush1.xpose.msra.mxu0 0.0
    %3226 = vmatprep.subr.mxu0 0.0
    %3227 = vmatpush1.xpose.msra.mxu0 0.0
    %3228 = vmatprep.mubr.f32.mxu0 0.0
    %3229 = vmatmul.mubr.f32.gmra.mrb[0].mxu0 %v3160
    %v3230 = vpop.f32.mrb[0].mxu0
    %v3231 = vadd.f32 0.0, %v3230
    %v3232 = vpop.f32.mrb[0].mxu0
    %3233 = vdwg.mxu0
    %v3234 = vmul.f32 %v3153, 0.35355338
    %v3235 = vmul.f32 %v3231, 0.35355338
    %v3236 = vadd.f32 %v3234, %v665
    %v3237 = vadd.f32 %v3235, %v669
    %v3238 = vsel %vm505, %v3236, -inf
    %3239 = vmax.xlane.f32.xlu0 %v3238
    %v3240 = vpop.xlane.xlu0 %3239
    %v3241 = vsel %vm505, %v3237, -inf
    %3242 = vmax.xlane.f32.xlu0 %v3241
    %v3243 = vpop.xlane.xlu0 %3242
    %v3244 = vsub.f32 %v3236, %v3240
    %v3245 = vsub.f32 %v3237, %v3243
    %v3246 = vmul.f32 %v3244, 1.442695
    %v3247 = vpow.pop %v3246
    %v3248 = vmul.f32 %v3245, 1.442695
    %v3249 = vpow.pop %v3248
    %v3250 = vsel %vm505, %v3247, 0.0
    %3251 = vadd.xlane.f32.xlu0 %v3250
    %v3252 = vpop.xlane.xlu0 %3251
    %v3253 = vsel %vm505, %v3249, 0.0
    %3254 = vadd.xlane.f32.xlu0 %v3253
    %v3255 = vpop.xlane.xlu0 %3254
    %v3256 = vrcp.pop %v3252
    %v3257 = vrcp.pop %v3255
    %v3258 = vmul.f32 %v3247, %v3256
    %v3259 = vmul.f32 %v3249, %v3257
    %3261 = vrot.lane.b32.xlu0 %v2741, 120
    %v3262 = vpop.permute.xlu0 %3261
    %v3265 = vsel %vm505, %v3258, 0
    %3267 = vmatprep.subr.mxu0 0.0
    %3268 = vmatpush1.msra.mxu0 %v3262
    %3269 = vmatprep.subr.mxu0 0.0
    %3270 = vmatpush1.msra.mxu0 0.0
    %3271 = vmatprep.subr.mxu0 0.0
    %3272 = vmatpush1.msra.mxu0 0.0
    %3273 = vmatprep.subr.mxu0 0.0
    %3274 = vmatpush1.msra.mxu0 0.0
    %3275 = vmatprep.subr.mxu0 0.0
    %3276 = vmatpush1.msra.mxu0 0.0
    %3277 = vmatprep.subr.mxu0 0.0
    %3278 = vmatpush1.msra.mxu0 0.0
    %3279 = vmatprep.subr.mxu0 0.0
    %3280 = vmatpush1.msra.mxu0 0.0
    %3281 = vmatprep.subr.mxu0 0.0
    %3282 = vmatpush1.msra.mxu0 0.0
    %3283 = vmatprep.subr.mxu0 0.0
    %3284 = vmatpush1.msra.mxu0 0.0
    %3285 = vmatprep.subr.mxu0 0.0
    %3286 = vmatpush1.msra.mxu0 0.0
    %3287 = vmatprep.subr.mxu0 0.0
    %3288 = vmatpush1.msra.mxu0 0.0
    %3289 = vmatprep.subr.mxu0 0.0
    %3290 = vmatpush1.msra.mxu0 0.0
    %3291 = vmatprep.subr.mxu0 0.0
    %3292 = vmatpush1.msra.mxu0 0.0
    %3293 = vmatprep.subr.mxu0 0.0
    %3294 = vmatpush1.msra.mxu0 0.0
    %3295 = vmatprep.subr.mxu0 0.0
    %3296 = vmatpush1.msra.mxu0 0.0
    %3297 = vmatprep.subr.mxu0 0.0
    %3298 = vmatpush1.msra.mxu0 0.0
    %3299 = vmatprep.subr.mxu0 0.0
    %3300 = vmatpush1.msra.mxu0 0.0
    %3301 = vmatprep.subr.mxu0 0.0
    %3302 = vmatpush1.msra.mxu0 0.0
    %3303 = vmatprep.subr.mxu0 0.0
    %3304 = vmatpush1.msra.mxu0 0.0
    %3305 = vmatprep.subr.mxu0 0.0
    %3306 = vmatpush1.msra.mxu0 0.0
    %3307 = vmatprep.subr.mxu0 0.0
    %3308 = vmatpush1.msra.mxu0 0.0
    %3309 = vmatprep.subr.mxu0 0.0
    %3310 = vmatpush1.msra.mxu0 0.0
    %3311 = vmatprep.subr.mxu0 0.0
    %3312 = vmatpush1.msra.mxu0 0.0
    %3313 = vmatprep.subr.mxu0 0.0
    %3314 = vmatpush1.msra.mxu0 0.0
    %3315 = vmatprep.subr.mxu0 0.0
    %3316 = vmatpush1.msra.mxu0 0.0
    %3317 = vmatprep.subr.mxu0 0.0
    %3318 = vmatpush1.msra.mxu0 0.0
    %3319 = vmatprep.subr.mxu0 0.0
    %3320 = vmatpush1.msra.mxu0 0.0
    %3321 = vmatprep.subr.mxu0 0.0
    %3322 = vmatpush1.msra.mxu0 0.0
    %3323 = vmatprep.subr.mxu0 0.0
    %3324 = vmatpush1.msra.mxu0 0.0
    %3325 = vmatprep.subr.mxu0 0.0
    %3326 = vmatpush1.msra.mxu0 0.0
    %3327 = vmatprep.subr.mxu0 0.0
    %3328 = vmatpush1.msra.mxu0 0.0
    %3329 = vmatprep.subr.mxu0 0.0
    %3330 = vmatpush1.msra.mxu0 0.0
    %3331 = vmatprep.mubr.f32.mxu0 0.0
    %3332 = vmatmul.mubr.f32.gmra.mrb[0].mxu0 %v3265
    %v3333 = vpop.f32.mrb[0].mxu0
    %v3334 = vadd.f32 0.0, %v3333
    %v3335 = vpop.f32.mrb[0].mxu0
    %3336 = vdwg.mxu0
    %3338 = vrot.lane.b32.xlu0 %v2746, 120
    %v3339 = vpop.permute.xlu0 %3338
    %v3342 = vsel %vm505, %v3259, 0
    %3344 = vmatprep.subr.mxu0 0.0
    %3345 = vmatpush1.msra.mxu0 %v3339
    %3346 = vmatprep.subr.mxu0 0.0
    %3347 = vmatpush1.msra.mxu0 0.0
    %3348 = vmatprep.subr.mxu0 0.0
    %3349 = vmatpush1.msra.mxu0 0.0
    %3350 = vmatprep.subr.mxu0 0.0
    %3351 = vmatpush1.msra.mxu0 0.0
    %3352 = vmatprep.subr.mxu0 0.0
    %3353 = vmatpush1.msra.mxu0 0.0
    %3354 = vmatprep.subr.mxu0 0.0
    %3355 = vmatpush1.msra.mxu0 0.0
    %3356 = vmatprep.subr.mxu0 0.0
    %3357 = vmatpush1.msra.mxu0 0.0
    %3358 = vmatprep.subr.mxu0 0.0
    %3359 = vmatpush1.msra.mxu0 0.0
    %3360 = vmatprep.subr.mxu0 0.0
    %3361 = vmatpush1.msra.mxu0 0.0
    %3362 = vmatprep.subr.mxu0 0.0
    %3363 = vmatpush1.msra.mxu0 0.0
    %3364 = vmatprep.subr.mxu0 0.0
    %3365 = vmatpush1.msra.mxu0 0.0
    %3366 = vmatprep.subr.mxu0 0.0
    %3367 = vmatpush1.msra.mxu0 0.0
    %3368 = vmatprep.subr.mxu0 0.0
    %3369 = vmatpush1.msra.mxu0 0.0
    %3370 = vmatprep.subr.mxu0 0.0
    %3371 = vmatpush1.msra.mxu0 0.0
    %3372 = vmatprep.subr.mxu0 0.0
    %3373 = vmatpush1.msra.mxu0 0.0
    %3374 = vmatprep.subr.mxu0 0.0
    %3375 = vmatpush1.msra.mxu0 0.0
    %3376 = vmatprep.subr.mxu0 0.0
    %3377 = vmatpush1.msra.mxu0 0.0
    %3378 = vmatprep.subr.mxu0 0.0
    %3379 = vmatpush1.msra.mxu0 0.0
    %3380 = vmatprep.subr.mxu0 0.0
    %3381 = vmatpush1.msra.mxu0 0.0
    %3382 = vmatprep.subr.mxu0 0.0
    %3383 = vmatpush1.msra.mxu0 0.0
    %3384 = vmatprep.subr.mxu0 0.0
    %3385 = vmatpush1.msra.mxu0 0.0
    %3386 = vmatprep.subr.mxu0 0.0
    %3387 = vmatpush1.msra.mxu0 0.0
    %3388 = vmatprep.subr.mxu0 0.0
    %3389 = vmatpush1.msra.mxu0 0.0
    %3390 = vmatprep.subr.mxu0 0.0
    %3391 = vmatpush1.msra.mxu0 0.0
    %3392 = vmatprep.subr.mxu0 0.0
    %3393 = vmatpush1.msra.mxu0 0.0
    %3394 = vmatprep.subr.mxu0 0.0
    %3395 = vmatpush1.msra.mxu0 0.0
    %3396 = vmatprep.subr.mxu0 0.0
    %3397 = vmatpush1.msra.mxu0 0.0
    %3398 = vmatprep.subr.mxu0 0.0
    %3399 = vmatpush1.msra.mxu0 0.0
    %3400 = vmatprep.subr.mxu0 0.0
    %3401 = vmatpush1.msra.mxu0 0.0
    %3402 = vmatprep.subr.mxu0 0.0
    %3403 = vmatpush1.msra.mxu0 0.0
    %3404 = vmatprep.subr.mxu0 0.0
    %3405 = vmatpush1.msra.mxu0 0.0
    %3406 = vmatprep.subr.mxu0 0.0
    %3407 = vmatpush1.msra.mxu0 0.0
    %3408 = vmatprep.mubr.f32.mxu0 0.0
    %3409 = vmatmul.mubr.f32.gmra.mrb[0].mxu0 %v3342
    %v3410 = vpop.f32.mrb[0].mxu0
    %v3411 = vadd.f32 0.0, %v3410
    %v3412 = vpop.f32.mrb[0].mxu0
    %3413 = vdwg.mxu0
    %v3415 = vsel %vm505, %v3334, 0
    %v3418 = vsel %vm505, %v3411, 0
    %3420 = vmatprep.subr.mxu0 0.0
    %3421 = vmatpush1.msra.mxu0 %v2751
    %3422 = vmatprep.subr.mxu0 0.0
    %3423 = vmatpush1.msra.mxu0 0.0
    %3424 = vmatprep.subr.mxu0 0.0
    %3425 = vmatpush1.msra.mxu0 0.0
    %3426 = vmatprep.subr.mxu0 0.0
    %3427 = vmatpush1.msra.mxu0 0.0
    %3428 = vmatprep.subr.mxu0 0.0
    %3429 = vmatpush1.msra.mxu0 0.0
    %3430 = vmatprep.subr.mxu0 0.0
    %3431 = vmatpush1.msra.mxu0 0.0
    %3432 = vmatprep.subr.mxu0 0.0
    %3433 = vmatpush1.msra.mxu0 0.0
    %3434 = vmatprep.subr.mxu0 0.0
    %3435 = vmatpush1.msra.mxu0 0.0
    %3436 = vmatprep.subr.mxu0 0.0
    %3437 = vmatpush1.msra.mxu0 0.0
    %3438 = vmatprep.subr.mxu0 0.0
    %3439 = vmatpush1.msra.mxu0 0.0
    %3440 = vmatprep.subr.mxu0 0.0
    %3441 = vmatpush1.msra.mxu0 0.0
    %3442 = vmatprep.subr.mxu0 0.0
    %3443 = vmatpush1.msra.mxu0 0.0
    %3444 = vmatprep.subr.mxu0 0.0
    %3445 = vmatpush1.msra.mxu0 0.0
    %3446 = vmatprep.subr.mxu0 0.0
    %3447 = vmatpush1.msra.mxu0 0.0
    %3448 = vmatprep.subr.mxu0 0.0
    %3449 = vmatpush1.msra.mxu0 0.0
    %3450 = vmatprep.subr.mxu0 0.0
    %3451 = vmatpush1.msra.mxu0 0.0
    %3452 = vmatprep.subr.mxu0 0.0
    %3453 = vmatpush1.msra.mxu0 0.0
    %3454 = vmatprep.subr.mxu0 0.0
    %3455 = vmatpush1.msra.mxu0 0.0
    %3456 = vmatprep.subr.mxu0 0.0
    %3457 = vmatpush1.msra.mxu0 0.0
    %3458 = vmatprep.subr.mxu0 0.0
    %3459 = vmatpush1.msra.mxu0 0.0
    %3460 = vmatprep.subr.mxu0 0.0
    %3461 = vmatpush1.msra.mxu0 0.0
    %3462 = vmatprep.subr.mxu0 0.0
    %3463 = vmatpush1.msra.mxu0 0.0
    %3464 = vmatprep.subr.mxu0 0.0
    %3465 = vmatpush1.msra.mxu0 0.0
    %3466 = vmatprep.subr.mxu0 0.0
    %3467 = vmatpush1.msra.mxu0 0.0
    %3468 = vmatprep.subr.mxu0 0.0
    %3469 = vmatpush1.msra.mxu0 0.0
    %3470 = vmatprep.subr.mxu0 0.0
    %3471 = vmatpush1.msra.mxu0 0.0
    %3472 = vmatprep.subr.mxu0 0.0
    %3473 = vmatpush1.msra.mxu0 0.0
    %3474 = vmatprep.subr.mxu0 0.0
    %3475 = vmatpush1.msra.mxu0 0.0
    %3476 = vmatprep.subr.mxu0 0.0
    %3477 = vmatpush1.msra.mxu0 0.0
    %3478 = vmatprep.subr.mxu0 0.0
    %3479 = vmatpush1.msra.mxu0 0.0
    %3480 = vmatprep.subr.mxu0 0.0
    %3481 = vmatpush1.msra.mxu0 0.0
    %3482 = vmatprep.subr.mxu0 0.0
    %3483 = vmatpush1.msra.mxu0 0.0
    %3484 = vmatprep.mubr.f32.mxu0 0.0
    %3485 = vmatmul.mubr.f32.gmra.mrb[0].mxu0 %v3415
    %v3486 = vpop.f32.mrb[0].mxu0
    %v3487 = vadd.f32 0.0, %v3486
    %v3488 = vpop.f32.mrb[0].mxu0
    %3489 = vmatprep.mubr.f32.mxu0 0.0
    %3490 = vmatmul.mubr.f32.gmra.mrb[0].mxu0 %v3418
    %v3491 = vpop.f32.mrb[0].mxu0
    %v3492 = vadd.f32 0.0, %v3491
    %v3493 = vpop.f32.mrb[0].mxu0
    %3494 = vdwg.mxu0
    %v3496 = vsel %vm505, %v3002, 0
    %v3499 = vsel %vm505, %v3075, 0
    %3501 = vmatprep.subr.mxu0 0.0
    %3502 = vmatpush1.msra.mxu0 %v2750
    %3503 = vmatprep.subr.mxu0 0.0
    %3504 = vmatpush1.msra.mxu0 0.0
    %3505 = vmatprep.subr.mxu0 0.0
    %3506 = vmatpush1.msra.mxu0 0.0
    %3507 = vmatprep.subr.mxu0 0.0
    %3508 = vmatpush1.msra.mxu0 0.0
    %3509 = vmatprep.subr.mxu0 0.0
    %3510 = vmatpush1.msra.mxu0 0.0
    %3511 = vmatprep.subr.mxu0 0.0
    %3512 = vmatpush1.msra.mxu0 0.0
    %3513 = vmatprep.subr.mxu0 0.0
    %3514 = vmatpush1.msra.mxu0 0.0
    %3515 = vmatprep.subr.mxu0 0.0
    %3516 = vmatpush1.msra.mxu0 0.0
    %3517 = vmatprep.subr.mxu0 0.0
    %3518 = vmatpush1.msra.mxu0 0.0
    %3519 = vmatprep.subr.mxu0 0.0
    %3520 = vmatpush1.msra.mxu0 0.0
    %3521 = vmatprep.subr.mxu0 0.0
    %3522 = vmatpush1.msra.mxu0 0.0
    %3523 = vmatprep.subr.mxu0 0.0
    %3524 = vmatpush1.msra.mxu0 0.0
    %3525 = vmatprep.subr.mxu0 0.0
    %3526 = vmatpush1.msra.mxu0 0.0
    %3527 = vmatprep.subr.mxu0 0.0
    %3528 = vmatpush1.msra.mxu0 0.0
    %3529 = vmatprep.subr.mxu0 0.0
    %3530 = vmatpush1.msra.mxu0 0.0
    %3531 = vmatprep.subr.mxu0 0.0
    %3532 = vmatpush1.msra.mxu0 0.0
    %3533 = vmatprep.subr.mxu0 0.0
    %3534 = vmatpush1.msra.mxu0 0.0
    %3535 = vmatprep.subr.mxu0 0.0
    %3536 = vmatpush1.msra.mxu0 0.0
    %3537 = vmatprep.subr.mxu0 0.0
    %3538 = vmatpush1.msra.mxu0 0.0
    %3539 = vmatprep.subr.mxu0 0.0
    %3540 = vmatpush1.msra.mxu0 0.0
    %3541 = vmatprep.subr.mxu0 0.0
    %3542 = vmatpush1.msra.mxu0 0.0
    %3543 = vmatprep.subr.mxu0 0.0
    %3544 = vmatpush1.msra.mxu0 0.0
    %3545 = vmatprep.subr.mxu0 0.0
    %3546 = vmatpush1.msra.mxu0 0.0
    %3547 = vmatprep.subr.mxu0 0.0
    %3548 = vmatpush1.msra.mxu0 0.0
    %3549 = vmatprep.subr.mxu0 0.0
    %3550 = vmatpush1.msra.mxu0 0.0
    %3551 = vmatprep.subr.mxu0 0.0
    %3552 = vmatpush1.msra.mxu0 0.0
    %3553 = vmatprep.subr.mxu0 0.0
    %3554 = vmatpush1.msra.mxu0 0.0
    %3555 = vmatprep.subr.mxu0 0.0
    %3556 = vmatpush1.msra.mxu0 0.0
    %3557 = vmatprep.subr.mxu0 0.0
    %3558 = vmatpush1.msra.mxu0 0.0
    %3559 = vmatprep.subr.mxu0 0.0
    %3560 = vmatpush1.msra.mxu0 0.0
    %3561 = vmatprep.subr.mxu0 0.0
    %3562 = vmatpush1.msra.mxu0 0.0
    %3563 = vmatprep.subr.mxu0 0.0
    %3564 = vmatpush1.msra.mxu0 0.0
    %3565 = vmatprep.mubr.f32.mxu0 0.0
    %3566 = vmatmul.mubr.f32.gmra.mrb[0].mxu0 %v3496
    %v3567 = vpop.f32.mrb[0].mxu0
    %v3568 = vadd.f32 %v3487, %v3567
    %v3569 = vpop.f32.mrb[0].mxu0
    %3570 = vmatprep.mubr.f32.mxu0 0.0
    %3571 = vmatmul.mubr.f32.gmra.mrb[0].mxu0 %v3499
    %v3572 = vpop.f32.mrb[0].mxu0
    %v3573 = vadd.f32 %v3492, %v3572
    %v3574 = vpop.f32.mrb[0].mxu0
    %3575 = vdwg.mxu0
    %3576 = vrot.lane.b32.xlu0 %v2565, 112
    %v3577 = vpop.permute.xlu0 %3576
    %3578 = vrot.lane.b32.xlu0 %v2653, 112
    %v3579 = vpop.permute.xlu0 %3578
    %v3580 = vsel %vm505, %v3577, 0
    %v3582 = vsel %vm505, %v3579, 0
    %3584 = vmatprep.subr.mxu0 0.0
    %3585 = vmatpush1.xpose.msra.mxu0 %v3582
    %3586 = vmatprep.subr.mxu0 0.0
    %3587 = vmatpush1.xpose.msra.mxu0 0.0
    %3588 = vmatprep.subr.mxu0 0.0
    %3589 = vmatpush1.xpose.msra.mxu0 0.0
    %3590 = vmatprep.subr.mxu0 0.0
    %3591 = vmatpush1.xpose.msra.mxu0 0.0
    %3592 = vmatprep.subr.mxu0 0.0
    %3593 = vmatpush1.xpose.msra.mxu0 0.0
    %3594 = vmatprep.subr.mxu0 0.0
    %3595 = vmatpush1.xpose.msra.mxu0 0.0
    %3596 = vmatprep.subr.mxu0 0.0
    %3597 = vmatpush1.xpose.msra.mxu0 0.0
    %3598 = vmatprep.subr.mxu0 0.0
    %3599 = vmatpush1.xpose.msra.mxu0 0.0
    %3600 = vmatprep.subr.mxu0 0.0
    %3601 = vmatpush1.xpose.msra.mxu0 0.0
    %3602 = vmatprep.subr.mxu0 0.0
    %3603 = vmatpush1.xpose.msra.mxu0 0.0
    %3604 = vmatprep.subr.mxu0 0.0
    %3605 = vmatpush1.xpose.msra.mxu0 0.0
    %3606 = vmatprep.subr.mxu0 0.0
    %3607 = vmatpush1.xpose.msra.mxu0 0.0
    %3608 = vmatprep.subr.mxu0 0.0
    %3609 = vmatpush1.xpose.msra.mxu0 0.0
    %3610 = vmatprep.subr.mxu0 0.0
    %3611 = vmatpush1.xpose.msra.mxu0 0.0
    %3612 = vmatprep.subr.mxu0 0.0
    %3613 = vmatpush1.xpose.msra.mxu0 0.0
    %3614 = vmatprep.subr.mxu0 0.0
    %3615 = vmatpush1.xpose.msra.mxu0 0.0
    %3616 = vmatprep.subr.mxu0 0.0
    %3617 = vmatpush1.xpose.msra.mxu0 0.0
    %3618 = vmatprep.subr.mxu0 0.0
    %3619 = vmatpush1.xpose.msra.mxu0 0.0
    %3620 = vmatprep.subr.mxu0 0.0
    %3621 = vmatpush1.xpose.msra.mxu0 0.0
    %3622 = vmatprep.subr.mxu0 0.0
    %3623 = vmatpush1.xpose.msra.mxu0 0.0
    %3624 = vmatprep.subr.mxu0 0.0
    %3625 = vmatpush1.xpose.msra.mxu0 0.0
    %3626 = vmatprep.subr.mxu0 0.0
    %3627 = vmatpush1.xpose.msra.mxu0 0.0
    %3628 = vmatprep.subr.mxu0 0.0
    %3629 = vmatpush1.xpose.msra.mxu0 0.0
    %3630 = vmatprep.subr.mxu0 0.0
    %3631 = vmatpush1.xpose.msra.mxu0 0.0
    %3632 = vmatprep.subr.mxu0 0.0
    %3633 = vmatpush1.xpose.msra.mxu0 0.0
    %3634 = vmatprep.subr.mxu0 0.0
    %3635 = vmatpush1.xpose.msra.mxu0 0.0
    %3636 = vmatprep.subr.mxu0 0.0
    %3637 = vmatpush1.xpose.msra.mxu0 0.0
    %3638 = vmatprep.subr.mxu0 0.0
    %3639 = vmatpush1.xpose.msra.mxu0 0.0
    %3640 = vmatprep.subr.mxu0 0.0
    %3641 = vmatpush1.xpose.msra.mxu0 0.0
    %3642 = vmatprep.subr.mxu0 0.0
    %3643 = vmatpush1.xpose.msra.mxu0 0.0
    %3644 = vmatprep.subr.mxu0 0.0
    %3645 = vmatpush1.xpose.msra.mxu0 0.0
    %3646 = vmatprep.subr.mxu0 0.0
    %3647 = vmatpush1.xpose.msra.mxu0 0.0
    %3648 = vmatprep.mubr.f32.mxu0 0.0
    %3649 = vmatmul.mubr.f32.gmra.mrb[0].mxu0 %v3580
    %v3650 = vpop.f32.mrb[0].mxu0
    %v3651 = vadd.f32 0.0, %v3650
    %v3652 = vpop.f32.mrb[0].mxu0
    %3653 = vdwg.mxu0
    %3654 = vrot.lane.b32.xlu0 %v2570, 112
    %v3655 = vpop.permute.xlu0 %3654
    %3656 = vrot.lane.b32.xlu0 %v2658, 112
    %v3657 = vpop.permute.xlu0 %3656
    %v3658 = vsel %vm505, %v3655, 0
    %v3660 = vsel %vm505, %v3657, 0
    %3662 = vmatprep.subr.mxu0 0.0
    %3663 = vmatpush1.xpose.msra.mxu0 %v3660
    %3664 = vmatprep.subr.mxu0 0.0
    %3665 = vmatpush1.xpose.msra.mxu0 0.0
    %3666 = vmatprep.subr.mxu0 0.0
    %3667 = vmatpush1.xpose.msra.mxu0 0.0
    %3668 = vmatprep.subr.mxu0 0.0
    %3669 = vmatpush1.xpose.msra.mxu0 0.0
    %3670 = vmatprep.subr.mxu0 0.0
    %3671 = vmatpush1.xpose.msra.mxu0 0.0
    %3672 = vmatprep.subr.mxu0 0.0
    %3673 = vmatpush1.xpose.msra.mxu0 0.0
    %3674 = vmatprep.subr.mxu0 0.0
    %3675 = vmatpush1.xpose.msra.mxu0 0.0
    %3676 = vmatprep.subr.mxu0 0.0
    %3677 = vmatpush1.xpose.msra.mxu0 0.0
    %3678 = vmatprep.subr.mxu0 0.0
    %3679 = vmatpush1.xpose.msra.mxu0 0.0
    %3680 = vmatprep.subr.mxu0 0.0
    %3681 = vmatpush1.xpose.msra.mxu0 0.0
    %3682 = vmatprep.subr.mxu0 0.0
    %3683 = vmatpush1.xpose.msra.mxu0 0.0
    %3684 = vmatprep.subr.mxu0 0.0
    %3685 = vmatpush1.xpose.msra.mxu0 0.0
    %3686 = vmatprep.subr.mxu0 0.0
    %3687 = vmatpush1.xpose.msra.mxu0 0.0
    %3688 = vmatprep.subr.mxu0 0.0
    %3689 = vmatpush1.xpose.msra.mxu0 0.0
    %3690 = vmatprep.subr.mxu0 0.0
    %3691 = vmatpush1.xpose.msra.mxu0 0.0
    %3692 = vmatprep.subr.mxu0 0.0
    %3693 = vmatpush1.xpose.msra.mxu0 0.0
    %3694 = vmatprep.subr.mxu0 0.0
    %3695 = vmatpush1.xpose.msra.mxu0 0.0
    %3696 = vmatprep.subr.mxu0 0.0
    %3697 = vmatpush1.xpose.msra.mxu0 0.0
    %3698 = vmatprep.subr.mxu0 0.0
    %3699 = vmatpush1.xpose.msra.mxu0 0.0
    %3700 = vmatprep.subr.mxu0 0.0
    %3701 = vmatpush1.xpose.msra.mxu0 0.0
    %3702 = vmatprep.subr.mxu0 0.0
    %3703 = vmatpush1.xpose.msra.mxu0 0.0
    %3704 = vmatprep.subr.mxu0 0.0
    %3705 = vmatpush1.xpose.msra.mxu0 0.0
    %3706 = vmatprep.subr.mxu0 0.0
    %3707 = vmatpush1.xpose.msra.mxu0 0.0
    %3708 = vmatprep.subr.mxu0 0.0
    %3709 = vmatpush1.xpose.msra.mxu0 0.0
    %3710 = vmatprep.subr.mxu0 0.0
    %3711 = vmatpush1.xpose.msra.mxu0 0.0
    %3712 = vmatprep.subr.mxu0 0.0
    %3713 = vmatpush1.xpose.msra.mxu0 0.0
    %3714 = vmatprep.subr.mxu0 0.0
    %3715 = vmatpush1.xpose.msra.mxu0 0.0
    %3716 = vmatprep.subr.mxu0 0.0
    %3717 = vmatpush1.xpose.msra.mxu0 0.0
    %3718 = vmatprep.subr.mxu0 0.0
    %3719 = vmatpush1.xpose.msra.mxu0 0.0
    %3720 = vmatprep.subr.mxu0 0.0
    %3721 = vmatpush1.xpose.msra.mxu0 0.0
    %3722 = vmatprep.subr.mxu0 0.0
    %3723 = vmatpush1.xpose.msra.mxu0 0.0
    %3724 = vmatprep.subr.mxu0 0.0
    %3725 = vmatpush1.xpose.msra.mxu0 0.0
    %3726 = vmatprep.mubr.f32.mxu0 0.0
    %3727 = vmatmul.mubr.f32.gmra.mrb[0].mxu0 %v3658
    %v3728 = vpop.f32.mrb[0].mxu0
    %v3729 = vadd.f32 0.0, %v3728
    %v3730 = vpop.f32.mrb[0].mxu0
    %3731 = vdwg.mxu0
    %v3732 = vmul.f32 %v3651, 0.35355338
    %v3733 = vmul.f32 %v3729, 0.35355338
    %v3734 = vadd.f32 %v3732, %v665
    %v3735 = vadd.f32 %v3733, %v669
    %v3736 = vsel %vm505, %v3734, -inf
    %3737 = vmax.xlane.f32.xlu0 %v3736
    %v3738 = vpop.xlane.xlu0 %3737
    %v3739 = vsel %vm505, %v3735, -inf
    %3740 = vmax.xlane.f32.xlu0 %v3739
    %v3741 = vpop.xlane.xlu0 %3740
    %v3742 = vsub.f32 %v3734, %v3738
    %v3743 = vsub.f32 %v3735, %v3741
    %v3744 = vmul.f32 %v3742, 1.442695
    %v3745 = vpow.pop %v3744
    %v3746 = vmul.f32 %v3743, 1.442695
    %v3747 = vpow.pop %v3746
    %v3748 = vsel %vm505, %v3745, 0.0
    %3749 = vadd.xlane.f32.xlu0 %v3748
    %v3750 = vpop.xlane.xlu0 %3749
    %v3751 = vsel %vm505, %v3747, 0.0
    %3752 = vadd.xlane.f32.xlu0 %v3751
    %v3753 = vpop.xlane.xlu0 %3752
    %v3754 = vrcp.pop %v3750
    %v3755 = vrcp.pop %v3753
    %v3756 = vmul.f32 %v3745, %v3754
    %v3757 = vmul.f32 %v3747, %v3755
    %3758 = vrot.lane.b32.xlu0 %v2741, 112
    %v3759 = vpop.permute.xlu0 %3758
    %v3762 = vsel %vm505, %v3756, 0
    %3764 = vmatprep.subr.mxu0 0.0
    %3765 = vmatpush1.msra.mxu0 %v3759
    %3766 = vmatprep.subr.mxu0 0.0
    %3767 = vmatpush1.msra.mxu0 0.0
    %3768 = vmatprep.subr.mxu0 0.0
    %3769 = vmatpush1.msra.mxu0 0.0
    %3770 = vmatprep.subr.mxu0 0.0
    %3771 = vmatpush1.msra.mxu0 0.0
    %3772 = vmatprep.subr.mxu0 0.0
    %3773 = vmatpush1.msra.mxu0 0.0
    %3774 = vmatprep.subr.mxu0 0.0
    %3775 = vmatpush1.msra.mxu0 0.0
    %3776 = vmatprep.subr.mxu0 0.0
    %3777 = vmatpush1.msra.mxu0 0.0
    %3778 = vmatprep.subr.mxu0 0.0
    %3779 = vmatpush1.msra.mxu0 0.0
    %3780 = vmatprep.subr.mxu0 0.0
    %3781 = vmatpush1.msra.mxu0 0.0
    %3782 = vmatprep.subr.mxu0 0.0
    %3783 = vmatpush1.msra.mxu0 0.0
    %3784 = vmatprep.subr.mxu0 0.0
    %3785 = vmatpush1.msra.mxu0 0.0
    %3786 = vmatprep.subr.mxu0 0.0
    %3787 = vmatpush1.msra.mxu0 0.0
    %3788 = vmatprep.subr.mxu0 0.0
    %3789 = vmatpush1.msra.mxu0 0.0
    %3790 = vmatprep.subr.mxu0 0.0
    %3791 = vmatpush1.msra.mxu0 0.0
    %3792 = vmatprep.subr.mxu0 0.0
    %3793 = vmatpush1.msra.mxu0 0.0
    %3794 = vmatprep.subr.mxu0 0.0
    %3795 = vmatpush1.msra.mxu0 0.0
    %3796 = vmatprep.subr.mxu0 0.0
    %3797 = vmatpush1.msra.mxu0 0.0
    %3798 = vmatprep.subr.mxu0 0.0
    %3799 = vmatpush1.msra.mxu0 0.0
    %3800 = vmatprep.subr.mxu0 0.0
    %3801 = vmatpush1.msra.mxu0 0.0
    %3802 = vmatprep.subr.mxu0 0.0
    %3803 = vmatpush1.msra.mxu0 0.0
    %3804 = vmatprep.subr.mxu0 0.0
    %3805 = vmatpush1.msra.mxu0 0.0
    %3806 = vmatprep.subr.mxu0 0.0
    %3807 = vmatpush1.msra.mxu0 0.0
    %3808 = vmatprep.subr.mxu0 0.0
    %3809 = vmatpush1.msra.mxu0 0.0
    %3810 = vmatprep.subr.mxu0 0.0
    %3811 = vmatpush1.msra.mxu0 0.0
    %3812 = vmatprep.subr.mxu0 0.0
    %3813 = vmatpush1.msra.mxu0 0.0
    %3814 = vmatprep.subr.mxu0 0.0
    %3815 = vmatpush1.msra.mxu0 0.0
    %3816 = vmatprep.subr.mxu0 0.0
    %3817 = vmatpush1.msra.mxu0 0.0
    %3818 = vmatprep.subr.mxu0 0.0
    %3819 = vmatpush1.msra.mxu0 0.0
    %3820 = vmatprep.subr.mxu0 0.0
    %3821 = vmatpush1.msra.mxu0 0.0
    %3822 = vmatprep.subr.mxu0 0.0
    %3823 = vmatpush1.msra.mxu0 0.0
    %3824 = vmatprep.subr.mxu0 0.0
    %3825 = vmatpush1.msra.mxu0 0.0
    %3826 = vmatprep.subr.mxu0 0.0
    %3827 = vmatpush1.msra.mxu0 0.0
    %3828 = vmatprep.mubr.f32.mxu0 0.0
    %3829 = vmatmul.mubr.f32.gmra.mrb[0].mxu0 %v3762
    %v3830 = vpop.f32.mrb[0].mxu0
    %v3831 = vadd.f32 0.0, %v3830
    %v3832 = vpop.f32.mrb[0].mxu0
    %3833 = vdwg.mxu0
    %3834 = vrot.lane.b32.xlu0 %v2746, 112
    %v3835 = vpop.permute.xlu0 %3834
    %v3838 = vsel %vm505, %v3757, 0
    %3840 = vmatprep.subr.mxu0 0.0
    %3841 = vmatpush1.msra.mxu0 %v3835
    %3842 = vmatprep.subr.mxu0 0.0
    %3843 = vmatpush1.msra.mxu0 0.0
    %3844 = vmatprep.subr.mxu0 0.0
    %3845 = vmatpush1.msra.mxu0 0.0
    %3846 = vmatprep.subr.mxu0 0.0
    %3847 = vmatpush1.msra.mxu0 0.0
    %3848 = vmatprep.subr.mxu0 0.0
    %3849 = vmatpush1.msra.mxu0 0.0
    %3850 = vmatprep.subr.mxu0 0.0
    %3851 = vmatpush1.msra.mxu0 0.0
    %3852 = vmatprep.subr.mxu0 0.0
    %3853 = vmatpush1.msra.mxu0 0.0
    %3854 = vmatprep.subr.mxu0 0.0
    %3855 = vmatpush1.msra.mxu0 0.0
    %3856 = vmatprep.subr.mxu0 0.0
    %3857 = vmatpush1.msra.mxu0 0.0
    %3858 = vmatprep.subr.mxu0 0.0
    %3859 = vmatpush1.msra.mxu0 0.0
    %3860 = vmatprep.subr.mxu0 0.0
    %3861 = vmatpush1.msra.mxu0 0.0
    %3862 = vmatprep.subr.mxu0 0.0
    %3863 = vmatpush1.msra.mxu0 0.0
    %3864 = vmatprep.subr.mxu0 0.0
    %3865 = vmatpush1.msra.mxu0 0.0
    %3866 = vmatprep.subr.mxu0 0.0
    %3867 = vmatpush1.msra.mxu0 0.0
    %3868 = vmatprep.subr.mxu0 0.0
    %3869 = vmatpush1.msra.mxu0 0.0
    %3870 = vmatprep.subr.mxu0 0.0
    %3871 = vmatpush1.msra.mxu0 0.0
    %3872 = vmatprep.subr.mxu0 0.0
    %3873 = vmatpush1.msra.mxu0 0.0
    %3874 = vmatprep.subr.mxu0 0.0
    %3875 = vmatpush1.msra.mxu0 0.0
    %3876 = vmatprep.subr.mxu0 0.0
    %3877 = vmatpush1.msra.mxu0 0.0
    %3878 = vmatprep.subr.mxu0 0.0
    %3879 = vmatpush1.msra.mxu0 0.0
    %3880 = vmatprep.subr.mxu0 0.0
    %3881 = vmatpush1.msra.mxu0 0.0
    %3882 = vmatprep.subr.mxu0 0.0
    %3883 = vmatpush1.msra.mxu0 0.0
    %3884 = vmatprep.subr.mxu0 0.0
    %3885 = vmatpush1.msra.mxu0 0.0
    %3886 = vmatprep.subr.mxu0 0.0
    %3887 = vmatpush1.msra.mxu0 0.0
    %3888 = vmatprep.subr.mxu0 0.0
    %3889 = vmatpush1.msra.mxu0 0.0
    %3890 = vmatprep.subr.mxu0 0.0
    %3891 = vmatpush1.msra.mxu0 0.0
    %3892 = vmatprep.subr.mxu0 0.0
    %3893 = vmatpush1.msra.mxu0 0.0
    %3894 = vmatprep.subr.mxu0 0.0
    %3895 = vmatpush1.msra.mxu0 0.0
    %3896 = vmatprep.subr.mxu0 0.0
    %3897 = vmatpush1.msra.mxu0 0.0
    %3898 = vmatprep.subr.mxu0 0.0
    %3899 = vmatpush1.msra.mxu0 0.0
    %3900 = vmatprep.subr.mxu0 0.0
    %3901 = vmatpush1.msra.mxu0 0.0
    %3902 = vmatprep.subr.mxu0 0.0
    %3903 = vmatpush1.msra.mxu0 0.0
    %3904 = vmatprep.mubr.f32.mxu0 0.0
    %3905 = vmatmul.mubr.f32.gmra.mrb[0].mxu0 %v3838
    %v3906 = vpop.f32.mrb[0].mxu0
    %v3907 = vadd.f32 0.0, %v3906
    %v3908 = vpop.f32.mrb[0].mxu0
    %3909 = vdwg.mxu0
    %v3911 = vsel %vm505, %v3831, 0
    %v3914 = vsel %vm505, %v3907, 0
    %3916 = vmatprep.subr.mxu0 0.0
    %3917 = vmatpush1.msra.mxu0 %v2752
    %3918 = vmatprep.subr.mxu0 0.0
    %3919 = vmatpush1.msra.mxu0 0.0
    %3920 = vmatprep.subr.mxu0 0.0
    %3921 = vmatpush1.msra.mxu0 0.0
    %3922 = vmatprep.subr.mxu0 0.0
    %3923 = vmatpush1.msra.mxu0 0.0
    %3924 = vmatprep.subr.mxu0 0.0
    %3925 = vmatpush1.msra.mxu0 0.0
    %3926 = vmatprep.subr.mxu0 0.0
    %3927 = vmatpush1.msra.mxu0 0.0
    %3928 = vmatprep.subr.mxu0 0.0
    %3929 = vmatpush1.msra.mxu0 0.0
    %3930 = vmatprep.subr.mxu0 0.0
    %3931 = vmatpush1.msra.mxu0 0.0
    %3932 = vmatprep.subr.mxu0 0.0
    %3933 = vmatpush1.msra.mxu0 0.0
    %3934 = vmatprep.subr.mxu0 0.0
    %3935 = vmatpush1.msra.mxu0 0.0
    %3936 = vmatprep.subr.mxu0 0.0
    %3937 = vmatpush1.msra.mxu0 0.0
    %3938 = vmatprep.subr.mxu0 0.0
    %3939 = vmatpush1.msra.mxu0 0.0
    %3940 = vmatprep.subr.mxu0 0.0
    %3941 = vmatpush1.msra.mxu0 0.0
    %3942 = vmatprep.subr.mxu0 0.0
    %3943 = vmatpush1.msra.mxu0 0.0
    %3944 = vmatprep.subr.mxu0 0.0
    %3945 = vmatpush1.msra.mxu0 0.0
    %3946 = vmatprep.subr.mxu0 0.0
    %3947 = vmatpush1.msra.mxu0 0.0
    %3948 = vmatprep.subr.mxu0 0.0
    %3949 = vmatpush1.msra.mxu0 0.0
    %3950 = vmatprep.subr.mxu0 0.0
    %3951 = vmatpush1.msra.mxu0 0.0
    %3952 = vmatprep.subr.mxu0 0.0
    %3953 = vmatpush1.msra.mxu0 0.0
    %3954 = vmatprep.subr.mxu0 0.0
    %3955 = vmatpush1.msra.mxu0 0.0
    %3956 = vmatprep.subr.mxu0 0.0
    %3957 = vmatpush1.msra.mxu0 0.0
    %3958 = vmatprep.subr.mxu0 0.0
    %3959 = vmatpush1.msra.mxu0 0.0
    %3960 = vmatprep.subr.mxu0 0.0
    %3961 = vmatpush1.msra.mxu0 0.0
    %3962 = vmatprep.subr.mxu0 0.0
    %3963 = vmatpush1.msra.mxu0 0.0
    %3964 = vmatprep.subr.mxu0 0.0
    %3965 = vmatpush1.msra.mxu0 0.0
    %3966 = vmatprep.subr.mxu0 0.0
    %3967 = vmatpush1.msra.mxu0 0.0
    %3968 = vmatprep.subr.mxu0 0.0
    %3969 = vmatpush1.msra.mxu0 0.0
    %3970 = vmatprep.subr.mxu0 0.0
    %3971 = vmatpush1.msra.mxu0 0.0
    %3972 = vmatprep.subr.mxu0 0.0
    %3973 = vmatpush1.msra.mxu0 0.0
    %3974 = vmatprep.subr.mxu0 0.0
    %3975 = vmatpush1.msra.mxu0 0.0
    %3976 = vmatprep.subr.mxu0 0.0
    %3977 = vmatpush1.msra.mxu0 0.0
    %3978 = vmatprep.subr.mxu0 0.0
    %3979 = vmatpush1.msra.mxu0 0.0
    %3980 = vmatprep.mubr.f32.mxu0 0.0
    %3981 = vmatmul.mubr.f32.gmra.mrb[0].mxu0 %v3911
    %v3982 = vpop.f32.mrb[0].mxu0
    %v3983 = vadd.f32 0.0, %v3982
    %v3984 = vpop.f32.mrb[0].mxu0
    %3985 = vmatprep.mubr.f32.mxu0 0.0
    %3986 = vmatmul.mubr.f32.gmra.mrb[0].mxu0 %v3914
    %v3987 = vpop.f32.mrb[0].mxu0
    %v3988 = vadd.f32 0.0, %v3987
    %v3989 = vpop.f32.mrb[0].mxu0
    %3990 = vdwg.mxu0
    %v3991 = vadd.f32 %v3568, %v3983
    %v3992 = vadd.f32 %v3573, %v3988
    %3993 = vrot.lane.b32.xlu0 %v2565, 104
    %v3994 = vpop.permute.xlu0 %3993
    %3995 = vrot.lane.b32.xlu0 %v2653, 104
    %v3996 = vpop.permute.xlu0 %3995
    %v3997 = vsel %vm505, %v3994, 0
    %v3999 = vsel %vm505, %v3996, 0
    %4001 = vmatprep.subr.mxu0 0.0
    %4002 = vmatpush1.xpose.msra.mxu0 %v3999
    %4003 = vmatprep.subr.mxu0 0.0
    %4004 = vmatpush1.xpose.msra.mxu0 0.0
    %4005 = vmatprep.subr.mxu0 0.0
    %4006 = vmatpush1.xpose.msra.mxu0 0.0
    %4007 = vmatprep.subr.mxu0 0.0
    %4008 = vmatpush1.xpose.msra.mxu0 0.0
    %4009 = vmatprep.subr.mxu0 0.0
    %4010 = vmatpush1.xpose.msra.mxu0 0.0
    %4011 = vmatprep.subr.mxu0 0.0
    %4012 = vmatpush1.xpose.msra.mxu0 0.0
    %4013 = vmatprep.subr.mxu0 0.0
    %4014 = vmatpush1.xpose.msra.mxu0 0.0
    %4015 = vmatprep.subr.mxu0 0.0
    %4016 = vmatpush1.xpose.msra.mxu0 0.0
    %4017 = vmatprep.subr.mxu0 0.0
    %4018 = vmatpush1.xpose.msra.mxu0 0.0
    %4019 = vmatprep.subr.mxu0 0.0
    %4020 = vmatpush1.xpose.msra.mxu0 0.0
    %4021 = vmatprep.subr.mxu0 0.0
    %4022 = vmatpush1.xpose.msra.mxu0 0.0
    %4023 = vmatprep.subr.mxu0 0.0
    %4024 = vmatpush1.xpose.msra.mxu0 0.0
    %4025 = vmatprep.subr.mxu0 0.0
    %4026 = vmatpush1.xpose.msra.mxu0 0.0
    %4027 = vmatprep.subr.mxu0 0.0
    %4028 = vmatpush1.xpose.msra.mxu0 0.0
    %4029 = vmatprep.subr.mxu0 0.0
    %4030 = vmatpush1.xpose.msra.mxu0 0.0
    %4031 = vmatprep.subr.mxu0 0.0
    %4032 = vmatpush1.xpose.msra.mxu0 0.0
    %4033 = vmatprep.subr.mxu0 0.0
    %4034 = vmatpush1.xpose.msra.mxu0 0.0
    %4035 = vmatprep.subr.mxu0 0.0
    %4036 = vmatpush1.xpose.msra.mxu0 0.0
    %4037 = vmatprep.subr.mxu0 0.0
    %4038 = vmatpush1.xpose.msra.mxu0 0.0
    %4039 = vmatprep.subr.mxu0 0.0
    %4040 = vmatpush1.xpose.msra.mxu0 0.0
    %4041 = vmatprep.subr.mxu0 0.0
    %4042 = vmatpush1.xpose.msra.mxu0 0.0
    %4043 = vmatprep.subr.mxu0 0.0
    %4044 = vmatpush1.xpose.msra.mxu0 0.0
    %4045 = vmatprep.subr.mxu0 0.0
    %4046 = vmatpush1.xpose.msra.mxu0 0.0
    %4047 = vmatprep.subr.mxu0 0.0
    %4048 = vmatpush1.xpose.msra.mxu0 0.0
    %4049 = vmatprep.subr.mxu0 0.0
    %4050 = vmatpush1.xpose.msra.mxu0 0.0
    %4051 = vmatprep.subr.mxu0 0.0
    %4052 = vmatpush1.xpose.msra.mxu0 0.0
    %4053 = vmatprep.subr.mxu0 0.0
    %4054 = vmatpush1.xpose.msra.mxu0 0.0
    %4055 = vmatprep.subr.mxu0 0.0
    %4056 = vmatpush1.xpose.msra.mxu0 0.0
    %4057 = vmatprep.subr.mxu0 0.0
    %4058 = vmatpush1.xpose.msra.mxu0 0.0
    %4059 = vmatprep.subr.mxu0 0.0
    %4060 = vmatpush1.xpose.msra.mxu0 0.0
    %4061 = vmatprep.subr.mxu0 0.0
    %4062 = vmatpush1.xpose.msra.mxu0 0.0
    %4063 = vmatprep.subr.mxu0 0.0
    %4064 = vmatpush1.xpose.msra.mxu0 0.0
    %4065 = vmatprep.mubr.f32.mxu0 0.0
    %4066 = vmatmul.mubr.f32.gmra.mrb[0].mxu0 %v3997
    %v4067 = vpop.f32.mrb[0].mxu0
    %v4068 = vadd.f32 0.0, %v4067
    %v4069 = vpop.f32.mrb[0].mxu0
    %4070 = vdwg.mxu0
    %4071 = vrot.lane.b32.xlu0 %v2570, 104
    %v4072 = vpop.permute.xlu0 %4071
    %4073 = vrot.lane.b32.xlu0 %v2658, 104
    %v4074 = vpop.permute.xlu0 %4073
    %v4075 = vsel %vm505, %v4072, 0
    %v4077 = vsel %vm505, %v4074, 0
    %4079 = vmatprep.subr.mxu0 0.0
    %4080 = vmatpush1.xpose.msra.mxu0 %v4077
    %4081 = vmatprep.subr.mxu0 0.0
    %4082 = vmatpush1.xpose.msra.mxu0 0.0
    %4083 = vmatprep.subr.mxu0 0.0
    %4084 = vmatpush1.xpose.msra.mxu0 0.0
    %4085 = vmatprep.subr.mxu0 0.0
    %4086 = vmatpush1.xpose.msra.mxu0 0.0
    %4087 = vmatprep.subr.mxu0 0.0
    %4088 = vmatpush1.xpose.msra.mxu0 0.0
    %4089 = vmatprep.subr.mxu0 0.0
    %4090 = vmatpush1.xpose.msra.mxu0 0.0
    %4091 = vmatprep.subr.mxu0 0.0
    %4092 = vmatpush1.xpose.msra.mxu0 0.0
    %4093 = vmatprep.subr.mxu0 0.0
    %4094 = vmatpush1.xpose.msra.mxu0 0.0
    %4095 = vmatprep.subr.mxu0 0.0
    %4096 = vmatpush1.xpose.msra.mxu0 0.0
    %4097 = vmatprep.subr.mxu0 0.0
    %4098 = vmatpush1.xpose.msra.mxu0 0.0
    %4099 = vmatprep.subr.mxu0 0.0
    %4100 = vmatpush1.xpose.msra.mxu0 0.0
    %4101 = vmatprep.subr.mxu0 0.0
    %4102 = vmatpush1.xpose.msra.mxu0 0.0
    %4103 = vmatprep.subr.mxu0 0.0
    %4104 = vmatpush1.xpose.msra.mxu0 0.0
    %4105 = vmatprep.subr.mxu0 0.0
    %4106 = vmatpush1.xpose.msra.mxu0 0.0
    %4107 = vmatprep.subr.mxu0 0.0
    %4108 = vmatpush1.xpose.msra.mxu0 0.0
    %4109 = vmatprep.subr.mxu0 0.0
    %4110 = vmatpush1.xpose.msra.mxu0 0.0
    %4111 = vmatprep.subr.mxu0 0.0
    %4112 = vmatpush1.xpose.msra.mxu0 0.0
    %4113 = vmatprep.subr.mxu0 0.0
    %4114 = vmatpush1.xpose.msra.mxu0 0.0
    %4115 = vmatprep.subr.mxu0 0.0
    %4116 = vmatpush1.xpose.msra.mxu0 0.0
    %4117 = vmatprep.subr.mxu0 0.0
    %4118 = vmatpush1.xpose.msra.mxu0 0.0
    %4119 = vmatprep.subr.mxu0 0.0
    %4120 = vmatpush1.xpose.msra.mxu0 0.0
    %4121 = vmatprep.subr.mxu0 0.0
    %4122 = vmatpush1.xpose.msra.mxu0 0.0
    %4123 = vmatprep.subr.mxu0 0.0
    %4124 = vmatpush1.xpose.msra.mxu0 0.0
    %4125 = vmatprep.subr.mxu0 0.0
    %4126 = vmatpush1.xpose.msra.mxu0 0.0
    %4127 = vmatprep.subr.mxu0 0.0
    %4128 = vmatpush1.xpose.msra.mxu0 0.0
    %4129 = vmatprep.subr.mxu0 0.0
    %4130 = vmatpush1.xpose.msra.mxu0 0.0
    %4131 = vmatprep.subr.mxu0 0.0
    %4132 = vmatpush1.xpose.msra.mxu0 0.0
    %4133 = vmatprep.subr.mxu0 0.0
    %4134 = vmatpush1.xpose.msra.mxu0 0.0
    %4135 = vmatprep.subr.mxu0 0.0
    %4136 = vmatpush1.xpose.msra.mxu0 0.0
    %4137 = vmatprep.subr.mxu0 0.0
    %4138 = vmatpush1.xpose.msra.mxu0 0.0
    %4139 = vmatprep.subr.mxu0 0.0
    %4140 = vmatpush1.xpose.msra.mxu0 0.0
    %4141 = vmatprep.subr.mxu0 0.0
    %4142 = vmatpush1.xpose.msra.mxu0 0.0
    %4143 = vmatprep.mubr.f32.mxu0 0.0
    %4144 = vmatmul.mubr.f32.gmra.mrb[0].mxu0 %v4075
    %v4145 = vpop.f32.mrb[0].mxu0
    %v4146 = vadd.f32 0.0, %v4145
    %v4147 = vpop.f32.mrb[0].mxu0
    %4148 = vdwg.mxu0
    %v4149 = vmul.f32 %v4068, 0.35355338
    %v4150 = vmul.f32 %v4146, 0.35355338
    %v4151 = vadd.f32 %v4149, %v665
    %v4152 = vadd.f32 %v4150, %v669
    %v4153 = vsel %vm505, %v4151, -inf
    %4154 = vmax.xlane.f32.xlu0 %v4153
    %v4155 = vpop.xlane.xlu0 %4154
    %v4156 = vsel %vm505, %v4152, -inf
    %4157 = vmax.xlane.f32.xlu0 %v4156
    %v4158 = vpop.xlane.xlu0 %4157
    %v4159 = vsub.f32 %v4151, %v4155
    %v4160 = vsub.f32 %v4152, %v4158
    %v4161 = vmul.f32 %v4159, 1.442695
    %v4162 = vpow.pop %v4161
    %v4163 = vmul.f32 %v4160, 1.442695
    %v4164 = vpow.pop %v4163
    %v4165 = vsel %vm505, %v4162, 0.0
    %4166 = vadd.xlane.f32.xlu0 %v4165
    %v4167 = vpop.xlane.xlu0 %4166
    %v4168 = vsel %vm505, %v4164, 0.0
    %4169 = vadd.xlane.f32.xlu0 %v4168
    %v4170 = vpop.xlane.xlu0 %4169
    %v4171 = vrcp.pop %v4167
    %v4172 = vrcp.pop %v4170
    %v4173 = vmul.f32 %v4162, %v4171
    %v4174 = vmul.f32 %v4164, %v4172
    %4175 = vrot.lane.b32.xlu0 %v2741, 104
    %v4176 = vpop.permute.xlu0 %4175
    %v4179 = vsel %vm505, %v4173, 0
    %4181 = vmatprep.subr.mxu0 0.0
    %4182 = vmatpush1.msra.mxu0 %v4176
    %4183 = vmatprep.subr.mxu0 0.0
    %4184 = vmatpush1.msra.mxu0 0.0
    %4185 = vmatprep.subr.mxu0 0.0
    %4186 = vmatpush1.msra.mxu0 0.0
    %4187 = vmatprep.subr.mxu0 0.0
    %4188 = vmatpush1.msra.mxu0 0.0
    %4189 = vmatprep.subr.mxu0 0.0
    %4190 = vmatpush1.msra.mxu0 0.0
    %4191 = vmatprep.subr.mxu0 0.0
    %4192 = vmatpush1.msra.mxu0 0.0
    %4193 = vmatprep.subr.mxu0 0.0
    %4194 = vmatpush1.msra.mxu0 0.0
    %4195 = vmatprep.subr.mxu0 0.0
    %4196 = vmatpush1.msra.mxu0 0.0
    %4197 = vmatprep.subr.mxu0 0.0
    %4198 = vmatpush1.msra.mxu0 0.0
    %4199 = vmatprep.subr.mxu0 0.0
    %4200 = vmatpush1.msra.mxu0 0.0
    %4201 = vmatprep.subr.mxu0 0.0
    %4202 = vmatpush1.msra.mxu0 0.0
    %4203 = vmatprep.subr.mxu0 0.0
    %4204 = vmatpush1.msra.mxu0 0.0
    %4205 = vmatprep.subr.mxu0 0.0
    %4206 = vmatpush1.msra.mxu0 0.0
    %4207 = vmatprep.subr.mxu0 0.0
    %4208 = vmatpush1.msra.mxu0 0.0
    %4209 = vmatprep.subr.mxu0 0.0
    %4210 = vmatpush1.msra.mxu0 0.0
    %4211 = vmatprep.subr.mxu0 0.0
    %4212 = vmatpush1.msra.mxu0 0.0
    %4213 = vmatprep.subr.mxu0 0.0
    %4214 = vmatpush1.msra.mxu0 0.0
    %4215 = vmatprep.subr.mxu0 0.0
    %4216 = vmatpush1.msra.mxu0 0.0
    %4217 = vmatprep.subr.mxu0 0.0
    %4218 = vmatpush1.msra.mxu0 0.0
    %4219 = vmatprep.subr.mxu0 0.0
    %4220 = vmatpush1.msra.mxu0 0.0
    %4221 = vmatprep.subr.mxu0 0.0
    %4222 = vmatpush1.msra.mxu0 0.0
    %4223 = vmatprep.subr.mxu0 0.0
    %4224 = vmatpush1.msra.mxu0 0.0
    %4225 = vmatprep.subr.mxu0 0.0
    %4226 = vmatpush1.msra.mxu0 0.0
    %4227 = vmatprep.subr.mxu0 0.0
    %4228 = vmatpush1.msra.mxu0 0.0
    %4229 = vmatprep.subr.mxu0 0.0
    %4230 = vmatpush1.msra.mxu0 0.0
    %4231 = vmatprep.subr.mxu0 0.0
    %4232 = vmatpush1.msra.mxu0 0.0
    %4233 = vmatprep.subr.mxu0 0.0
    %4234 = vmatpush1.msra.mxu0 0.0
    %4235 = vmatprep.subr.mxu0 0.0
    %4236 = vmatpush1.msra.mxu0 0.0
    %4237 = vmatprep.subr.mxu0 0.0
    %4238 = vmatpush1.msra.mxu0 0.0
    %4239 = vmatprep.subr.mxu0 0.0
    %4240 = vmatpush1.msra.mxu0 0.0
    %4241 = vmatprep.subr.mxu0 0.0
    %4242 = vmatpush1.msra.mxu0 0.0
    %4243 = vmatprep.subr.mxu0 0.0
    %4244 = vmatpush1.msra.mxu0 0.0
    %4245 = vmatprep.mubr.f32.mxu0 0.0
    %4246 = vmatmul.mubr.f32.gmra.mrb[0].mxu0 %v4179
    %v4247 = vpop.f32.mrb[0].mxu0
    %v4248 = vadd.f32 0.0, %v4247
    %v4249 = vpop.f32.mrb[0].mxu0
    %4250 = vdwg.mxu0
    %4251 = vrot.lane.b32.xlu0 %v2746, 104
    %v4252 = vpop.permute.xlu0 %4251
    %v4255 = vsel %vm505, %v4174, 0
    %4257 = vmatprep.subr.mxu0 0.0
    %4258 = vmatpush1.msra.mxu0 %v4252
    %4259 = vmatprep.subr.mxu0 0.0
    %4260 = vmatpush1.msra.mxu0 0.0
    %4261 = vmatprep.subr.mxu0 0.0
    %4262 = vmatpush1.msra.mxu0 0.0
    %4263 = vmatprep.subr.mxu0 0.0
    %4264 = vmatpush1.msra.mxu0 0.0
    %4265 = vmatprep.subr.mxu0 0.0
    %4266 = vmatpush1.msra.mxu0 0.0
    %4267 = vmatprep.subr.mxu0 0.0
    %4268 = vmatpush1.msra.mxu0 0.0
    %4269 = vmatprep.subr.mxu0 0.0
    %4270 = vmatpush1.msra.mxu0 0.0
    %4271 = vmatprep.subr.mxu0 0.0
    %4272 = vmatpush1.msra.mxu0 0.0
    %4273 = vmatprep.subr.mxu0 0.0
    %4274 = vmatpush1.msra.mxu0 0.0
    %4275 = vmatprep.subr.mxu0 0.0
    %4276 = vmatpush1.msra.mxu0 0.0
    %4277 = vmatprep.subr.mxu0 0.0
    %4278 = vmatpush1.msra.mxu0 0.0
    %4279 = vmatprep.subr.mxu0 0.0
    %4280 = vmatpush1.msra.mxu0 0.0
    %4281 = vmatprep.subr.mxu0 0.0
    %4282 = vmatpush1.msra.mxu0 0.0
    %4283 = vmatprep.subr.mxu0 0.0
    %4284 = vmatpush1.msra.mxu0 0.0
    %4285 = vmatprep.subr.mxu0 0.0
    %4286 = vmatpush1.msra.mxu0 0.0
    %4287 = vmatprep.subr.mxu0 0.0
    %4288 = vmatpush1.msra.mxu0 0.0
    %4289 = vmatprep.subr.mxu0 0.0
    %4290 = vmatpush1.msra.mxu0 0.0
    %4291 = vmatprep.subr.mxu0 0.0
    %4292 = vmatpush1.msra.mxu0 0.0
    %4293 = vmatprep.subr.mxu0 0.0
    %4294 = vmatpush1.msra.mxu0 0.0
    %4295 = vmatprep.subr.mxu0 0.0
    %4296 = vmatpush1.msra.mxu0 0.0
    %4297 = vmatprep.subr.mxu0 0.0
    %4298 = vmatpush1.msra.mxu0 0.0
    %4299 = vmatprep.subr.mxu0 0.0
    %4300 = vmatpush1.msra.mxu0 0.0
    %4301 = vmatprep.subr.mxu0 0.0
    %4302 = vmatpush1.msra.mxu0 0.0
    %4303 = vmatprep.subr.mxu0 0.0
    %4304 = vmatpush1.msra.mxu0 0.0
    %4305 = vmatprep.subr.mxu0 0.0
    %4306 = vmatpush1.msra.mxu0 0.0
    %4307 = vmatprep.subr.mxu0 0.0
    %4308 = vmatpush1.msra.mxu0 0.0
    %4309 = vmatprep.subr.mxu0 0.0
    %4310 = vmatpush1.msra.mxu0 0.0
    %4311 = vmatprep.subr.mxu0 0.0
    %4312 = vmatpush1.msra.mxu0 0.0
    %4313 = vmatprep.subr.mxu0 0.0
    %4314 = vmatpush1.msra.mxu0 0.0
    %4315 = vmatprep.subr.mxu0 0.0
    %4316 = vmatpush1.msra.mxu0 0.0
    %4317 = vmatprep.subr.mxu0 0.0
    %4318 = vmatpush1.msra.mxu0 0.0
    %4319 = vmatprep.subr.mxu0 0.0
    %4320 = vmatpush1.msra.mxu0 0.0
    %4321 = vmatprep.mubr.f32.mxu0 0.0
    %4322 = vmatmul.mubr.f32.gmra.mrb[0].mxu0 %v4255
    %v4323 = vpop.f32.mrb[0].mxu0
    %v4324 = vadd.f32 0.0, %v4323
    %v4325 = vpop.f32.mrb[0].mxu0
    %4326 = vdwg.mxu0
    %v4328 = vsel %vm505, %v4248, 0
    %v4331 = vsel %vm505, %v4324, 0
    %4333 = vmatprep.subr.mxu0 0.0
    %4334 = vmatpush1.msra.mxu0 %v2753
    %4335 = vmatprep.subr.mxu0 0.0
    %4336 = vmatpush1.msra.mxu0 0.0
    %4337 = vmatprep.subr.mxu0 0.0
    %4338 = vmatpush1.msra.mxu0 0.0
    %4339 = vmatprep.subr.mxu0 0.0
    %4340 = vmatpush1.msra.mxu0 0.0
    %4341 = vmatprep.subr.mxu0 0.0
    %4342 = vmatpush1.msra.mxu0 0.0
    %4343 = vmatprep.subr.mxu0 0.0
    %4344 = vmatpush1.msra.mxu0 0.0
    %4345 = vmatprep.subr.mxu0 0.0
    %4346 = vmatpush1.msra.mxu0 0.0
    %4347 = vmatprep.subr.mxu0 0.0
    %4348 = vmatpush1.msra.mxu0 0.0
    %4349 = vmatprep.subr.mxu0 0.0
    %4350 = vmatpush1.msra.mxu0 0.0
    %4351 = vmatprep.subr.mxu0 0.0
    %4352 = vmatpush1.msra.mxu0 0.0
    %4353 = vmatprep.subr.mxu0 0.0
    %4354 = vmatpush1.msra.mxu0 0.0
    %4355 = vmatprep.subr.mxu0 0.0
    %4356 = vmatpush1.msra.mxu0 0.0
    %4357 = vmatprep.subr.mxu0 0.0
    %4358 = vmatpush1.msra.mxu0 0.0
    %4359 = vmatprep.subr.mxu0 0.0
    %4360 = vmatpush1.msra.mxu0 0.0
    %4361 = vmatprep.subr.mxu0 0.0
    %4362 = vmatpush1.msra.mxu0 0.0
    %4363 = vmatprep.subr.mxu0 0.0
    %4364 = vmatpush1.msra.mxu0 0.0
    %4365 = vmatprep.subr.mxu0 0.0
    %4366 = vmatpush1.msra.mxu0 0.0
    %4367 = vmatprep.subr.mxu0 0.0
    %4368 = vmatpush1.msra.mxu0 0.0
    %4369 = vmatprep.subr.mxu0 0.0
    %4370 = vmatpush1.msra.mxu0 0.0
    %4371 = vmatprep.subr.mxu0 0.0
    %4372 = vmatpush1.msra.mxu0 0.0
    %4373 = vmatprep.subr.mxu0 0.0
    %4374 = vmatpush1.msra.mxu0 0.0
    %4375 = vmatprep.subr.mxu0 0.0
    %4376 = vmatpush1.msra.mxu0 0.0
    %4377 = vmatprep.subr.mxu0 0.0
    %4378 = vmatpush1.msra.mxu0 0.0
    %4379 = vmatprep.subr.mxu0 0.0
    %4380 = vmatpush1.msra.mxu0 0.0
    %4381 = vmatprep.subr.mxu0 0.0
    %4382 = vmatpush1.msra.mxu0 0.0
    %4383 = vmatprep.subr.mxu0 0.0
    %4384 = vmatpush1.msra.mxu0 0.0
    %4385 = vmatprep.subr.mxu0 0.0
    %4386 = vmatpush1.msra.mxu0 0.0
    %4387 = vmatprep.subr.mxu0 0.0
    %4388 = vmatpush1.msra.mxu0 0.0
    %4389 = vmatprep.subr.mxu0 0.0
    %4390 = vmatpush1.msra.mxu0 0.0
    %4391 = vmatprep.subr.mxu0 0.0
    %4392 = vmatpush1.msra.mxu0 0.0
    %4393 = vmatprep.subr.mxu0 0.0
    %4394 = vmatpush1.msra.mxu0 0.0
    %4395 = vmatprep.subr.mxu0 0.0
    %4396 = vmatpush1.msra.mxu0 0.0
    %4397 = vmatprep.mubr.f32.mxu0 0.0
    %4398 = vmatmul.mubr.f32.gmra.mrb[0].mxu0 %v4328
    %v4399 = vpop.f32.mrb[0].mxu0
    %v4400 = vadd.f32 0.0, %v4399
    %v4401 = vpop.f32.mrb[0].mxu0
    %4402 = vmatprep.mubr.f32.mxu0 0.0
    %4403 = vmatmul.mubr.f32.gmra.mrb[0].mxu0 %v4331
    %v4404 = vpop.f32.mrb[0].mxu0
    %v4405 = vadd.f32 0.0, %v4404
    %v4406 = vpop.f32.mrb[0].mxu0
    %4407 = vdwg.mxu0
    %v4408 = vadd.f32 %v3991, %v4400
    %v4409 = vadd.f32 %v3992, %v4405
    %v4410 = vadd.f32 %v2431, %v4408
    %v4411 = vadd.f32 %v2432, %v4409
    %s4412 = scalar_lea.vmem [#allocation10], 1
    %v4413 = vld [vmem:[%s4412] sm:$0x1]
    %v4415 = vlaneseq
    %v4416 = vshrl.u32 %v4415, 7
    %v4417 = vsub.s32 0, %v4416
    %v4418 = vrot.slane %v4413, %v4417
    %v4420 = vadd.f32 %v4410, %v4418
    %v4421 = vadd.f32 %v4411, %v4418
    %s4422 = scalar_lea.vmem [#allocation11], 1
    %v4423 = vld [vmem:[%s4422] sm:$0x1]
    %s4424 = scalar_lea.vmem [#allocation13], 1
    %v4425 = vld [vmem:[%s4424] sm:$0x1]
    %v4426 = vsel %vm193, %v4420, 0.0
    %4427 = vadd.xlane.f32.xlu0 %v4426
    %v4428 = vpop.xlane.xlu0 %4427
    %v4429 = vsel %vm193, %v4421, 0.0
    %4430 = vadd.xlane.f32.xlu0 %v4429
    %v4431 = vpop.xlane.xlu0 %4430
    %v4432 = vmul.f32 %v4428, %v200
    %v4433 = vmul.f32 %v4431, %v200
    %v4434 = vsub.f32 %v4420, %v4432
    %v4435 = vsub.f32 %v4421, %v4433
    %v4436 = vmul.f32 %v4434, %v4434
    %v4437 = vmul.f32 %v4435, %v4435
    %v4438 = vsel %vm193, %v4436, 0.0
    %4439 = vadd.xlane.f32.xlu0 %v4438
    %v4440 = vpop.xlane.xlu0 %4439
    %v4441 = vsel %vm193, %v4437, 0.0
    %4442 = vadd.xlane.f32.xlu0 %v4441
    %v4443 = vpop.xlane.xlu0 %4442
    %v4444 = vmul.f32 %v4440, %v200
    %v4445 = vmul.f32 %v4443, %v200
    %v4446 = vadd.f32 %v4444, 1e-05
    %v4447 = vadd.f32 %v4445, 1e-05
    %v4448 = vrsqrt.pop %v4446
    %v4449 = vrsqrt.pop %v4447
    %v4450 = vmul.f32 %v4434, %v4448
    %v4451 = vmul.f32 %v4435, %v4449
    %v4453 = vlaneseq
    %v4454 = vshrl.u32 %v4453, 7
    %v4455 = vsub.s32 0, %v4454
    %v4456 = vrot.slane %v4423, %v4455
    %v4458 = vmul.f32 %v4450, %v4456
    %v4459 = vmul.f32 %v4451, %v4456
    %v4461 = vlaneseq
    %v4462 = vshrl.u32 %v4461, 7
    %v4463 = vsub.s32 0, %v4462
    %v4464 = vrot.slane %v4425, %v4463
    %v4466 = vadd.f32 %v4458, %v4464
    %v4467 = vadd.f32 %v4459, %v4464
    %s4468 = scalar_lea.vmem %s14, 32
    %v4469 = vld [vmem:[%s4468] sm:$0xff]
    %v4470 = vld [vmem:[%s4468 + $0x8] sm:$0xff]
    %v4471 = vld [vmem:[%s4468 + $0x10] sm:$0xff]
    %v4472 = vld [vmem:[%s4468 + $0x18] sm:$0xff]
    %s4473 = scalar_lea.vmem [#allocation14], 1
    %v4474 = vld [vmem:[%s4473] sm:$0x1]
    %v4476 = vlaneseq
    %v4477 = vshrl.u32 %v4476, 7
    %v4478 = vsub.s32 0, %v4477
    %v4479 = vrot.slane %v4474, %v4478
    %v4482 = vsel %vm193, %v4466, 0
    %v4485 = vsel %vm193, %v4467, 0
    %4487 = vmatprep.subr.mxu0 0.0
    %4488 = vmatpush1.msra.mxu0 %v4469
    %4489 = vmatprep.subr.mxu0 0.0
    %4490 = vmatpush1.msra.mxu0 %v4470
    %4491 = vmatprep.subr.mxu0 0.0
    %4492 = vmatpush1.msra.mxu0 %v4471
    %4493 = vmatprep.subr.mxu0 0.0
    %4494 = vmatpush1.msra.mxu0 %v4472
    %4495 = vmatprep.subr.mxu0 0.0
    %4496 = vmatpush1.msra.mxu0 0.0
    %4497 = vmatprep.subr.mxu0 0.0
    %4498 = vmatpush1.msra.mxu0 0.0
    %4499 = vmatprep.subr.mxu0 0.0
    %4500 = vmatpush1.msra.mxu0 0.0
    %4501 = vmatprep.subr.mxu0 0.0
    %4502 = vmatpush1.msra.mxu0 0.0
    %4503 = vmatprep.subr.mxu0 0.0
    %4504 = vmatpush1.msra.mxu0 0.0
    %4505 = vmatprep.subr.mxu0 0.0
    %4506 = vmatpush1.msra.mxu0 0.0
    %4507 = vmatprep.subr.mxu0 0.0
    %4508 = vmatpush1.msra.mxu0 0.0
    %4509 = vmatprep.subr.mxu0 0.0
    %4510 = vmatpush1.msra.mxu0 0.0
    %4511 = vmatprep.subr.mxu0 0.0
    %4512 = vmatpush1.msra.mxu0 0.0
    %4513 = vmatprep.subr.mxu0 0.0
    %4514 = vmatpush1.msra.mxu0 0.0
    %4515 = vmatprep.subr.mxu0 0.0
    %4516 = vmatpush1.msra.mxu0 0.0
    %4517 = vmatprep.subr.mxu0 0.0
    %4518 = vmatpush1.msra.mxu0 0.0
    %4519 = vmatprep.subr.mxu0 0.0
    %4520 = vmatpush1.msra.mxu0 0.0
    %4521 = vmatprep.subr.mxu0 0.0
    %4522 = vmatpush1.msra.mxu0 0.0
    %4523 = vmatprep.subr.mxu0 0.0
    %4524 = vmatpush1.msra.mxu0 0.0
    %4525 = vmatprep.subr.mxu0 0.0
    %4526 = vmatpush1.msra.mxu0 0.0
    %4527 = vmatprep.subr.mxu0 0.0
    %4528 = vmatpush1.msra.mxu0 0.0
    %4529 = vmatprep.subr.mxu0 0.0
    %4530 = vmatpush1.msra.mxu0 0.0
    %4531 = vmatprep.subr.mxu0 0.0
    %4532 = vmatpush1.msra.mxu0 0.0
    %4533 = vmatprep.subr.mxu0 0.0
    %4534 = vmatpush1.msra.mxu0 0.0
    %4535 = vmatprep.subr.mxu0 0.0
    %4536 = vmatpush1.msra.mxu0 0.0
    %4537 = vmatprep.subr.mxu0 0.0
    %4538 = vmatpush1.msra.mxu0 0.0
    %4539 = vmatprep.subr.mxu0 0.0
    %4540 = vmatpush1.msra.mxu0 0.0
    %4541 = vmatprep.subr.mxu0 0.0
    %4542 = vmatpush1.msra.mxu0 0.0
    %4543 = vmatprep.subr.mxu0 0.0
    %4544 = vmatpush1.msra.mxu0 0.0
    %4545 = vmatprep.subr.mxu0 0.0
    %4546 = vmatpush1.msra.mxu0 0.0
    %4547 = vmatprep.subr.mxu0 0.0
    %4548 = vmatpush1.msra.mxu0 0.0
    %4549 = vmatprep.subr.mxu0 0.0
    %4550 = vmatpush1.msra.mxu0 0.0
    %4551 = vmatprep.mubr.f32.mxu0 0.0
    %4552 = vmatmul.mubr.f32.gmra.mrb[0].mxu0 %v4482
    %v4553 = vpop.f32.mrb[0].mxu0
    %v4554 = vadd.f32 %v4479, %v4553
    %v4555 = vpop.f32.mrb[0].mxu0
    %4556 = vmatprep.mubr.f32.mxu0 0.0
    %4557 = vmatmul.mubr.f32.gmra.mrb[0].mxu0 %v4485
    %v4558 = vpop.f32.mrb[0].mxu0
    %v4559 = vadd.f32 %v4479, %v4558
    %v4560 = vpop.f32.mrb[0].mxu0
    %4561 = vdwg.mxu0
    %v4562 = vmul.f32 %v4554, 0.5
    %v4563 = vmul.f32 %v4559, 0.5
    %v4564 = vmul.f32 %v4554, 0.70710677
    %v4565 = vmul.f32 %v4559, 0.70710677
    %v4566 = verf.f32.pop %v4564
    %v4567 = verf.f32.pop %v4565
    %v4568 = vadd.f32 %v4566, 1.0
    %v4569 = vadd.f32 %v4567, 1.0
    %v4570 = vmul.f32 %v4562, %v4568
    %v4571 = vmul.f32 %v4563, %v4569
    %s4572 = scalar_lea.vmem %s16, 128
    %v4573 = vld [vmem:[%s4572] sm:$0xff]
    %v4574 = vld [vmem:[%s4572 + $0x8] sm:$0xff]
    %v4575 = vld [vmem:[%s4572 + $0x10] sm:$0xff]
    %v4576 = vld [vmem:[%s4572 + $0x18] sm:$0xff]
    %v4577 = vld [vmem:[%s4572 + $0x20] sm:$0xff]
    %v4578 = vld [vmem:[%s4572 + $0x28] sm:$0xff]
    %v4579 = vld [vmem:[%s4572 + $0x30] sm:$0xff]
    %v4580 = vld [vmem:[%s4572 + $0x38] sm:$0xff]
    %v4581 = vld [vmem:[%s4572 + $0x40] sm:$0xff]
    %v4582 = vld [vmem:[%s4572 + $0x48] sm:$0xff]
    %v4583 = vld [vmem:[%s4572 + $0x50] sm:$0xff]
    %v4584 = vld [vmem:[%s4572 + $0x58] sm:$0xff]
    %v4585 = vld [vmem:[%s4572 + $0x60] sm:$0xff]
    %v4586 = vld [vmem:[%s4572 + $0x68] sm:$0xff]
    %v4587 = vld [vmem:[%s4572 + $0x70] sm:$0xff]
    %v4588 = vld [vmem:[%s4572 + $0x78] sm:$0xff]
    %4589 = vmatprep.subr.mxu0 0.0
    %4590 = vmatpush1.msra.mxu0 %v4573
    %4591 = vmatprep.subr.mxu0 0.0
    %4592 = vmatpush1.msra.mxu0 %v4574
    %4593 = vmatprep.subr.mxu0 0.0
    %4594 = vmatpush1.msra.mxu0 %v4575
    %4595 = vmatprep.subr.mxu0 0.0
    %4596 = vmatpush1.msra.mxu0 %v4576
    %4597 = vmatprep.subr.mxu0 0.0
    %4598 = vmatpush1.msra.mxu0 %v4577
    %4599 = vmatprep.subr.mxu0 0.0
    %4600 = vmatpush1.msra.mxu0 %v4578
    %4601 = vmatprep.subr.mxu0 0.0
    %4602 = vmatpush1.msra.mxu0 %v4579
    %4603 = vmatprep.subr.mxu0 0.0
    %4604 = vmatpush1.msra.mxu0 %v4580
    %4605 = vmatprep.subr.mxu0 0.0
    %4606 = vmatpush1.msra.mxu0 %v4581
    %4607 = vmatprep.subr.mxu0 0.0
    %4608 = vmatpush1.msra.mxu0 %v4582
    %4609 = vmatprep.subr.mxu0 0.0
    %4610 = vmatpush1.msra.mxu0 %v4583
    %4611 = vmatprep.subr.mxu0 0.0
    %4612 = vmatpush1.msra.mxu0 %v4584
    %4613 = vmatprep.subr.mxu0 0.0
    %4614 = vmatpush1.msra.mxu0 %v4585
    %4615 = vmatprep.subr.mxu0 0.0
    %4616 = vmatpush1.msra.mxu0 %v4586
    %4617 = vmatprep.subr.mxu0 0.0
    %4618 = vmatpush1.msra.mxu0 %v4587
    %4619 = vmatprep.subr.mxu0 0.0
    %4620 = vmatpush1.msra.mxu0 %v4588
    %4621 = vmatprep.subr.mxu0 0.0
    %4622 = vmatpush1.msra.mxu0 0.0
    %4623 = vmatprep.subr.mxu0 0.0
    %4624 = vmatpush1.msra.mxu0 0.0
    %4625 = vmatprep.subr.mxu0 0.0
    %4626 = vmatpush1.msra.mxu0 0.0
    %4627 = vmatprep.subr.mxu0 0.0
    %4628 = vmatpush1.msra.mxu0 0.0
    %4629 = vmatprep.subr.mxu0 0.0
    %4630 = vmatpush1.msra.mxu0 0.0
    %4631 = vmatprep.subr.mxu0 0.0
    %4632 = vmatpush1.msra.mxu0 0.0
    %4633 = vmatprep.subr.mxu0 0.0
    %4634 = vmatpush1.msra.mxu0 0.0
    %4635 = vmatprep.subr.mxu0 0.0
    %4636 = vmatpush1.msra.mxu0 0.0
    %4637 = vmatprep.subr.mxu0 0.0
    %4638 = vmatpush1.msra.mxu0 0.0
    %4639 = vmatprep.subr.mxu0 0.0
    %4640 = vmatpush1.msra.mxu0 0.0
    %4641 = vmatprep.subr.mxu0 0.0
    %4642 = vmatpush1.msra.mxu0 0.0
    %4643 = vmatprep.subr.mxu0 0.0
    %4644 = vmatpush1.msra.mxu0 0.0
    %4645 = vmatprep.subr.mxu0 0.0
    %4646 = vmatpush1.msra.mxu0 0.0
    %4647 = vmatprep.subr.mxu0 0.0
    %4648 = vmatpush1.msra.mxu0 0.0
    %4649 = vmatprep.subr.mxu0 0.0
    %4650 = vmatpush1.msra.mxu0 0.0
    %4651 = vmatprep.subr.mxu0 0.0
    %4652 = vmatpush1.msra.mxu0 0.0
    %4653 = vmatprep.mubr.f32.mxu0 0.0
    %4654 = vmatmul.mubr.f32.gmra.mrb[0].mxu0 %v4570
    %v4655 = vpop.f32.mrb[0].mxu0
    %v4656 = vadd.f32 0.0, %v4655
    %v4657 = vpop.f32.mrb[0].mxu0
    %4658 = vmatprep.mubr.f32.mxu0 0.0
    %4659 = vmatmul.mubr.f32.gmra.mrb[0].mxu0 %v4571
    %v4660 = vpop.f32.mrb[0].mxu0
    %v4661 = vadd.f32 0.0, %v4660
    %v4662 = vpop.f32.mrb[0].mxu0
    %4663 = vdwg.mxu0
    %v4664 = vadd.f32 %v4420, %v4656
    %v4665 = vadd.f32 %v4421, %v4661
    %s4666 = scalar_lea.vmem %s17, 1
    %v4667 = vld [vmem:[%s4666] sm:$0x1]
    %v4669 = vlaneseq
    %v4670 = vshrl.u32 %v4669, 7
    %v4671 = vsub.s32 0, %v4670
    %v4672 = vrot.slane %v4667, %v4671
    %v4674 = vadd.f32 %v4664, %v4672
    %v4675 = vadd.f32 %v4665, %v4672
    %v4676 = vld [vmem:[%s18] sm:$0x1]
    %v4677 = vld [vmem:[%s19] sm:$0x1]
    %v4680 = vrot.slane %v4675, 7
    %vm4681 = vcmask 1041409
    %v4682 = vsel %vm4681, %v4680, %v4674
    %vm4684 = vcmask 254976
    %v4685 = vsel %vm4684, %v4682, 0.0
    %4686 = vadd.xlane.f32.xlu0 %v4685
    %v4687 = vpop.xlane.xlu0 %4686
    %v4688 = vmul.f32 %v4687, %v200
    %v4690 = vrot.slane %v4688, 1
    %v4693 = vsub.f32 %v4674, %v4688
    %v4694 = vsub.f32 %v4675, %v4690
    %v4695 = vmul.f32 %v4693, %v4693
    %v4696 = vmul.f32 %v4694, %v4694
    %v4699 = vrot.slane %v4696, 7
    %v4700 = vsel %vm4681, %v4699, %v4695
    %v4702 = vsel %vm4684, %v4700, 0.0
    %4703 = vadd.xlane.f32.xlu0 %v4702
    %v4704 = vpop.xlane.xlu0 %4703
    %v4705 = vmul.f32 %v4704, %v200
    %v4706 = vadd.f32 %v4705, 1e-05
    %v4707 = vrsqrt.pop %v4706
    %v4709 = vrot.slane %v4707, 1
    %v4712 = vmul.f32 %v4693, %v4707
    %v4713 = vmul.f32 %v4694, %v4709
    %v4715 = vlaneseq
    %v4716 = vshrl.u32 %v4715, 7
    %v4717 = vsub.s32 0, %v4716
    %v4718 = vrot.slane %v4676, %v4717
    %v4720 = vmul.f32 %v4712, %v4718
    %v4721 = vmul.f32 %v4713, %v4718
    %v4723 = vlaneseq
    %v4724 = vshrl.u32 %v4723, 7
    %v4725 = vsub.s32 0, %v4724
    %v4726 = vrot.slane %v4677, %v4725
    %v4728 = vadd.f32 %v4720, %v4726
    %v4729 = vadd.f32 %v4721, %v4726
    %v4730 = vld [vmem:[%s20] sm:$0xff]
    %v4731 = vld [vmem:[%s20 + $0x8] sm:$0xff]
    %v4732 = vld [vmem:[%s20 + $0x10] sm:$0xff]
    %v4733 = vld [vmem:[%s20 + $0x18] sm:$0xff]
    %v4734 = vld [vmem:[%s21] sm:$0x1]
    %v4736 = vlaneseq
    %v4737 = vshrl.u32 %v4736, 7
    %v4738 = vsub.s32 0, %v4737
    %v4739 = vrot.slane %v4734, %v4738
    %v4743 = vrot.slane %v4729, 7
    %v4744 = vsel %vm4681, %v4743, %v4728
    %v4745 = vsel %vm193, %v4744, 0
    %4747 = vmatprep.subr.mxu0 0.0
    %4748 = vmatpush1.msra.mxu0 %v4730
    %4749 = vmatprep.subr.mxu0 0.0
    %4750 = vmatpush1.msra.mxu0 %v4731
    %4751 = vmatprep.subr.mxu0 0.0
    %4752 = vmatpush1.msra.mxu0 %v4732
    %4753 = vmatprep.subr.mxu0 0.0
    %4754 = vmatpush1.msra.mxu0 %v4733
    %4755 = vmatprep.subr.mxu0 0.0
    %4756 = vmatpush1.msra.mxu0 0.0
    %4757 = vmatprep.subr.mxu0 0.0
    %4758 = vmatpush1.msra.mxu0 0.0
    %4759 = vmatprep.subr.mxu0 0.0
    %4760 = vmatpush1.msra.mxu0 0.0
    %4761 = vmatprep.subr.mxu0 0.0
    %4762 = vmatpush1.msra.mxu0 0.0
    %4763 = vmatprep.subr.mxu0 0.0
    %4764 = vmatpush1.msra.mxu0 0.0
    %4765 = vmatprep.subr.mxu0 0.0
    %4766 = vmatpush1.msra.mxu0 0.0
    %4767 = vmatprep.subr.mxu0 0.0
    %4768 = vmatpush1.msra.mxu0 0.0
    %4769 = vmatprep.subr.mxu0 0.0
    %4770 = vmatpush1.msra.mxu0 0.0
    %4771 = vmatprep.subr.mxu0 0.0
    %4772 = vmatpush1.msra.mxu0 0.0
    %4773 = vmatprep.subr.mxu0 0.0
    %4774 = vmatpush1.msra.mxu0 0.0
    %4775 = vmatprep.subr.mxu0 0.0
    %4776 = vmatpush1.msra.mxu0 0.0
    %4777 = vmatprep.subr.mxu0 0.0
    %4778 = vmatpush1.msra.mxu0 0.0
    %4779 = vmatprep.subr.mxu0 0.0
    %4780 = vmatpush1.msra.mxu0 0.0
    %4781 = vmatprep.subr.mxu0 0.0
    %4782 = vmatpush1.msra.mxu0 0.0
    %4783 = vmatprep.subr.mxu0 0.0
    %4784 = vmatpush1.msra.mxu0 0.0
    %4785 = vmatprep.subr.mxu0 0.0
    %4786 = vmatpush1.msra.mxu0 0.0
    %4787 = vmatprep.subr.mxu0 0.0
    %4788 = vmatpush1.msra.mxu0 0.0
    %4789 = vmatprep.subr.mxu0 0.0
    %4790 = vmatpush1.msra.mxu0 0.0
    %4791 = vmatprep.subr.mxu0 0.0
    %4792 = vmatpush1.msra.mxu0 0.0
    %4793 = vmatprep.subr.mxu0 0.0
    %4794 = vmatpush1.msra.mxu0 0.0
    %4795 = vmatprep.subr.mxu0 0.0
    %4796 = vmatpush1.msra.mxu0 0.0
    %4797 = vmatprep.subr.mxu0 0.0
    %4798 = vmatpush1.msra.mxu0 0.0
    %4799 = vmatprep.subr.mxu0 0.0
    %4800 = vmatpush1.msra.mxu0 0.0
    %4801 = vmatprep.subr.mxu0 0.0
    %4802 = vmatpush1.msra.mxu0 0.0
    %4803 = vmatprep.subr.mxu0 0.0
    %4804 = vmatpush1.msra.mxu0 0.0
    %4805 = vmatprep.subr.mxu0 0.0
    %4806 = vmatpush1.msra.mxu0 0.0
    %4807 = vmatprep.subr.mxu0 0.0
    %4808 = vmatpush1.msra.mxu0 0.0
    %4809 = vmatprep.subr.mxu0 0.0
    %4810 = vmatpush1.msra.mxu0 0.0
    %4811 = vmatprep.mubr.f32.mxu0 0.0
    %4812 = vmatmul.mubr.f32.gmra.mrb[0].mxu0 %v4745
    %v4813 = vpop.f32.mrb[0].mxu0
    %v4814 = vadd.f32 %v4739, %v4813
    %v4815 = vpop.f32.mrb[0].mxu0
    %4816 = vdwg.mxu0
    %v4817 = vmul.f32 %v4814, 0.5
    %v4818 = vmul.f32 %v4814, 0.70710677
    %v4819 = verf.f32.pop %v4818
    %v4820 = vadd.f32 %v4819, 1.0
    %v4821 = vmul.f32 %v4817, %v4820
    %v4822 = vld [vmem:[%s22] sm:$0xff]
    %v4823 = vld [vmem:[%s22 + $0x8] sm:$0xff]
    %v4824 = vld [vmem:[%s22 + $0x10] sm:$0xff]
    %v4825 = vld [vmem:[%s22 + $0x18] sm:$0xff]
    %v4826 = vld [vmem:[%s22 + $0x20] sm:$0xff]
    %v4827 = vld [vmem:[%s22 + $0x28] sm:$0xff]
    %v4828 = vld [vmem:[%s22 + $0x30] sm:$0xff]
    %v4829 = vld [vmem:[%s22 + $0x38] sm:$0xff]
    %v4830 = vld [vmem:[%s23] sm:$0x1]
    %v4832 = vlaneseq
    %v4833 = vshrl.u32 %v4832, 7
    %v4834 = vsub.s32 0, %v4833
    %v4835 = vrot.slane %v4830, %v4834
    %vm4837 = vcmask 523264
    %v4839 = vsel %vm4837, %v4821, 0
    %4841 = vmatprep.subr.mxu0 0.0
    %4842 = vmatpush1.msra.mxu0 %v4822
    %4843 = vmatprep.subr.mxu0 0.0
    %4844 = vmatpush1.msra.mxu0 %v4823
    %4845 = vmatprep.subr.mxu0 0.0
    %4846 = vmatpush1.msra.mxu0 %v4824
    %4847 = vmatprep.subr.mxu0 0.0
    %4848 = vmatpush1.msra.mxu0 %v4825
    %4849 = vmatprep.subr.mxu0 0.0
    %4850 = vmatpush1.msra.mxu0 %v4826
    %4851 = vmatprep.subr.mxu0 0.0
    %4852 = vmatpush1.msra.mxu0 %v4827
    %4853 = vmatprep.subr.mxu0 0.0
    %4854 = vmatpush1.msra.mxu0 %v4828
    %4855 = vmatprep.subr.mxu0 0.0
    %4856 = vmatpush1.msra.mxu0 %v4829
    %4857 = vmatprep.subr.mxu0 0.0
    %4858 = vmatpush1.msra.mxu0 0.0
    %4859 = vmatprep.subr.mxu0 0.0
    %4860 = vmatpush1.msra.mxu0 0.0
    %4861 = vmatprep.subr.mxu0 0.0
    %4862 = vmatpush1.msra.mxu0 0.0
    %4863 = vmatprep.subr.mxu0 0.0
    %4864 = vmatpush1.msra.mxu0 0.0
    %4865 = vmatprep.subr.mxu0 0.0
    %4866 = vmatpush1.msra.mxu0 0.0
    %4867 = vmatprep.subr.mxu0 0.0
    %4868 = vmatpush1.msra.mxu0 0.0
    %4869 = vmatprep.subr.mxu0 0.0
    %4870 = vmatpush1.msra.mxu0 0.0
    %4871 = vmatprep.subr.mxu0 0.0
    %4872 = vmatpush1.msra.mxu0 0.0
    %4873 = vmatprep.subr.mxu0 0.0
    %4874 = vmatpush1.msra.mxu0 0.0
    %4875 = vmatprep.subr.mxu0 0.0
    %4876 = vmatpush1.msra.mxu0 0.0
    %4877 = vmatprep.subr.mxu0 0.0
    %4878 = vmatpush1.msra.mxu0 0.0
    %4879 = vmatprep.subr.mxu0 0.0
    %4880 = vmatpush1.msra.mxu0 0.0
    %4881 = vmatprep.subr.mxu0 0.0
    %4882 = vmatpush1.msra.mxu0 0.0
    %4883 = vmatprep.subr.mxu0 0.0
    %4884 = vmatpush1.msra.mxu0 0.0
    %4885 = vmatprep.subr.mxu0 0.0
    %4886 = vmatpush1.msra.mxu0 0.0
    %4887 = vmatprep.subr.mxu0 0.0
    %4888 = vmatpush1.msra.mxu0 0.0
    %4889 = vmatprep.subr.mxu0 0.0
    %4890 = vmatpush1.msra.mxu0 0.0
    %4891 = vmatprep.subr.mxu0 0.0
    %4892 = vmatpush1.msra.mxu0 0.0
    %4893 = vmatprep.subr.mxu0 0.0
    %4894 = vmatpush1.msra.mxu0 0.0
    %4895 = vmatprep.subr.mxu0 0.0
    %4896 = vmatpush1.msra.mxu0 0.0
    %4897 = vmatprep.subr.mxu0 0.0
    %4898 = vmatpush1.msra.mxu0 0.0
    %4899 = vmatprep.subr.mxu0 0.0
    %4900 = vmatpush1.msra.mxu0 0.0
    %4901 = vmatprep.subr.mxu0 0.0
    %4902 = vmatpush1.msra.mxu0 0.0
    %4903 = vmatprep.subr.mxu0 0.0
    %4904 = vmatpush1.msra.mxu0 0.0
    %4905 = vmatprep.mubr.f32.mxu0 0.0
    %4906 = vmatmul.mubr.f32.gmra.mrb[0].mxu0 %v4839
    %v4907 = vpop.f32.mrb[0].mxu0
    %v4908 = vadd.f32 %v4835, %v4907
    %v4909 = vpop.f32.mrb[0].mxu0
    %4910 = vdwg.mxu0
    %vm4911 = vcmask 91136
    %4912 = vst.msk [vmem:[#allocation16] sm:$0x3] %vm4911, %v4908
    // Predicated region
    $region130: #{tpu_custom_call.1} parent=1 // pred_check
      _
    $region131: #{tpu_custom_call.1} parent=1 // pred_check_branch
      %4914 = sbr.rel (0) target = $region133
    $region132: #{tpu_custom_call.1} parent=1 // pred_region
      %s4916 = ssub.s32 32, 32
      %4917 = vsyncadd [#allocation4], %s4916
      %s4919 = sshll.u32 [#allocation16], 4
      %s4920 = int_to_ptr.vmem [resolvable:$true] %s4919
      %4922 = dma.vmem_to_hbm [thread:$0]  %s4920, 32, %s24, [#allocation4]
    $region133: #{tpu_custom_call.1} parent=1 // pred_fallthru
      _
    // Predicated region
    $region134: #{tpu_custom_call.1} parent=1 // pred_check
      _
    $region135: #{tpu_custom_call.1} parent=1 // pred_check_branch
      %4924 = sbr.rel (0) target = $region137
    $region136: #{tpu_custom_call.1} parent=1 // pred_region
      %4925 = dma.done [#allocation4], 32
    $region137: #{tpu_custom_call.1} parent=1 // pred_fallthru
      _
    %4926 = vsyncpa [#allocation3], 1
    %4927 = vsyncpa [#allocation6], 1
    %4928 = vsyncpa [#allocation9], 1
    %4929 = vsyncpa [#allocation12], 1
    %4930 = vsyncpa [#allocation15], 1
    %4931 = vsyncpa [#allocation4], 1

</llo_original>
